<compile_context>
chip_gen: v6e
topology: v6e:2x2x1
jax: 0.10.0
libtpu: 0.0.40
codegen_flags: <defaults>
</compile_context>

<pallas_src>
import math

import jax
import jax.numpy as jnp
from jax import lax
from jax.experimental import pallas as pl
from jax.experimental.pallas import tpu as pltpu

# ----- small model dims consistent with the module's structure -----
VOCAB = 100
NUM_LAYERS = 2
HIDDEN = 32          # stands in for hidden_size=768
NUM_HEADS = 4
HEAD_DIM = HIDDEN // NUM_HEADS
FFN = 64
LSTM_HIDDEN = 16     # stands in for lstm_hidden_size=256
NUM_LABELS = 2
MAX_POS = 16
LN_EPS = 1e-12
LANES = 128          # lane width of the weight slabs / padded output


# --------------------------------------------------------------------------
# Static slab layouts (name -> (rows, cols)) and row offsets.
# --------------------------------------------------------------------------
def _bf16_layout():
    lay = []
    for l in range(NUM_LAYERS):
        for h in range(NUM_HEADS):
            lay += [(f"wq_{l}_{h}", (HIDDEN, HEAD_DIM)),
                    (f"wk_{l}_{h}", (HIDDEN, HEAD_DIM)),
                    (f"wv_{l}_{h}", (HIDDEN, HEAD_DIM))]
        lay += [(f"w1_{l}", (HIDDEN, FFN)),
                (f"w2_{l}", (FFN, HIDDEN))]
    lay += [("w_ih", (HIDDEN, 4 * LSTM_HIDDEN)),
            ("w_hh", (LSTM_HIDDEN, 4 * LSTM_HIDDEN)),
            ("cls_w", (LSTM_HIDDEN, LANES))]
    return lay


def _f32_layout():
    # wo matrices first so their head-row slices stay 8-row tile-aligned.
    lay = [(f"wo_{l}", (HIDDEN, HIDDEN)) for l in range(NUM_LAYERS)]
    lay += [("emb_ln_g", (1, HIDDEN)), ("emb_ln_b", (1, HIDDEN))]
    for l in range(NUM_LAYERS):
        for h in range(NUM_HEADS):
            lay += [(f"bq_{l}_{h}", (1, HEAD_DIM)),
                    (f"bk_{l}_{h}", (1, HEAD_DIM)),
                    (f"bv_{l}_{h}", (1, HEAD_DIM))]
        lay += [(f"bo_{l}", (1, HIDDEN)),
                (f"ln1_g_{l}", (1, HIDDEN)), (f"ln1_b_{l}", (1, HIDDEN)),
                (f"b1_{l}", (1, FFN)), (f"b2_{l}", (1, HIDDEN)),
                (f"ln2_g_{l}", (1, HIDDEN)), (f"ln2_b_{l}", (1, HIDDEN))]
    lay += [("lstm_b", (1, 4 * LSTM_HIDDEN)), ("cls_b", (1, LANES))]
    return lay


def _offsets(layout, chunk_align, total_align):
    offs, row = {}, 0
    for name, (rows, _cols) in layout:
        offs[name] = row
        row += ((rows + chunk_align - 1) // chunk_align) * chunk_align
    total = ((row + total_align - 1) // total_align) * total_align
    return offs, total


_BF16_LAYOUT = _bf16_layout()
_F32_LAYOUT = _f32_layout()
# bf16 sublane packing is 16 rows/vreg -> align bf16 chunks to 16 rows.
_BF16_OFF, _BF16_ROWS = _offsets(_BF16_LAYOUT, 16, 16)
_F32_OFF, _F32_ROWS = _offsets(_F32_LAYOUT, 1, 8)


def _pack(layout, offs, total_rows, arrays, dtype):
    slab = jnp.zeros((total_rows, LANES), jnp.float32)
    for name, (rows, cols) in layout:
        a = jnp.asarray(arrays[name], jnp.float32).reshape(rows, cols)
        slab = slab.at[offs[name]:offs[name] + rows, :cols].set(a)
    return slab.astype(dtype)


# --------------------------------------------------------------------------
# Fused kernel: single invocation, everything resident in VMEM.
# --------------------------------------------------------------------------
def _layernorm(y, g, b):
    mu = jnp.mean(y, axis=-1, keepdims=True)
    var = jnp.mean(jnp.square(y - mu), axis=-1, keepdims=True)
    return (y - mu) * lax.rsqrt(var + LN_EPS) * g + b


def _make_kernel(batch, seq):
    H, NH, DH, F, HH = HIDDEN, NUM_HEADS, HEAD_DIM, FFN, LSTM_HIDDEN
    BS = batch * seq

    def kernel(emb_ref, mask_ref, wb_ref, wf_ref, out_ref):
        def bmat(name, rows, cols):                 # bf16 weight chunk
            r = _BF16_OFF[name]
            return wb_ref[r:r + rows, :cols]

        def fmat(name, rows, cols):                 # f32 chunk
            r = _F32_OFF[name]
            return wf_ref[r:r + rows, :cols]

        def frow(name, cols):                       # single f32 vector row
            return fmat(name, 1, cols)

        # ---- BERT embeddings LayerNorm (word+pos+type added in wrapper) ----
        x = _layernorm(emb_ref[...], frow("emb_ln_g", H), frow("emb_ln_b", H))
        add_mask = mask_ref[...]                    # (BS, BS) block-diag additive

        # ---- transformer encoder layers (statically unrolled) ----
        for l in range(NUM_LAYERS):
            xb = x.astype(jnp.bfloat16)
            wo_l = fmat(f"wo_{l}", H, H)            # f32; head rows 8-aligned
            acc = jnp.zeros((BS, H), jnp.float32)
            for h in range(NH):                     # unrolled heads
                # head-major per-head projections: results start at lane 0,
                # 1/sqrt(dh) already folded into wq/bq.
                q = jnp.dot(xb, bmat(f"wq_{l}_{h}", H, DH),
                            preferred_element_type=jnp.float32) + frow(f"bq_{l}_{h}", DH)
                k = jnp.dot(xb, bmat(f"wk_{l}_{h}", H, DH),
                            preferred_element_type=jnp.float32) + frow(f"bk_{l}_{h}", DH)
                v = jnp.dot(xb, bmat(f"wv_{l}_{h}", H, DH),
                            preferred_element_type=jnp.float32) + frow(f"bv_{l}_{h}", DH)
                # scores = q @ k^T (no materialized transpose)
                s = lax.dot_general(q.astype(jnp.bfloat16), k.astype(jnp.bfloat16),
                                    (((1,), (1,)), ((), ())),
                                    preferred_element_type=jnp.float32)
                s = s + add_mask
                s = s - jnp.max(s, axis=-1, keepdims=True)
                p = jnp.exp(s)
                p = p * pl.reciprocal(jnp.sum(p, axis=-1, keepdims=True), approx=True)
                ctx = jnp.dot(p.astype(jnp.bfloat16), v.astype(jnp.bfloat16),
                              preferred_element_type=jnp.float32)
                # fold output projection per head (no concat / transpose)
                wo_h = wo_l[h * DH:(h + 1) * DH, :].astype(jnp.bfloat16)
                acc = acc + jnp.dot(ctx.astype(jnp.bfloat16), wo_h,
                                    preferred_element_type=jnp.float32)

            x = _layernorm(acc + frow(f"bo_{l}", H) + x,
                           frow(f"ln1_g_{l}", H), frow(f"ln1_b_{l}", H))

            xb = x.astype(jnp.bfloat16)
            h1 = jnp.dot(xb, bmat(f"w1_{l}", H, F),
                         preferred_element_type=jnp.float32) + frow(f"b1_{l}", F)
            h1 = jax.nn.gelu(h1, approximate=True)   # tanh approx (erf risky in-kernel)
            h2 = jnp.dot(h1.astype(jnp.bfloat16), bmat(f"w2_{l}", F, H),
                         preferred_element_type=jnp.float32) + frow(f"b2_{l}", H)
            x = _layernorm(h2 + x, frow(f"ln2_g_{l}", H), frow(f"ln2_b_{l}", H))

        # ---- LSTM over each folded batch block; gate columns are (i,f,o,g) ----
        # Input projection hoisted out of the recurrence: one (BS, H) @ (H, 4HH).
        gates_x = jnp.dot(x.astype(jnp.bfloat16), bmat("w_ih", H, 4 * HH),
                          preferred_element_type=jnp.float32) + frow("lstm_b", 4 * HH)
        w_hh = bmat("w_hh", HH, 4 * HH)              # bf16, loaded once
        h_t = jnp.zeros((batch, HH), jnp.float32)
        c_t = jnp.zeros((batch, HH), jnp.float32)
        for t in range(seq):                         # fully unrolled serial chain
            # gather row t of each batch block (static slices)
            gx_t = jnp.concatenate(
                [gates_x[b * seq + t: b * seq + t + 1, :] for b in range(batch)],
                axis=0)                              # (batch, 4HH)
            # recurrent matmul kept on the MXU (data-dependent through the
            # nonlinearity; a VPU MAC chain needs 16 lane extracts/step at B=2).
            g = gx_t + jnp.dot(h_t.astype(jnp.bfloat16), w_hh,
                               preferred_element_type=jnp.float32)
            sig = jax.nn.sigmoid(g[:, :3 * HH])      # one EUP push for i,f,o
            i_g = sig[:, 0 * HH:1 * HH]
            f_g = sig[:, 1 * HH:2 * HH]
            o_g = sig[:, 2 * HH:3 * HH]
            g_g = jnp.tanh(g[:, 3 * HH:4 * HH])
            c_t = f_g * c_t + i_g * g_g
            h_t = o_g * jnp.tanh(c_t)

        # ---- classifier head; lane-dense (batch, 128) store ----
        logits = jnp.dot(h_t.astype(jnp.bfloat16), bmat("cls_w", HH, LANES),
                         preferred_element_type=jnp.float32) + frow("cls_b", LANES)
        out_ref[...] = logits

    return kernel


# --------------------------------------------------------------------------
# Wrapper: embedding gather + mask build are XLA glue; one pallas_call, no grid.
# --------------------------------------------------------------------------
def bert_lstm_classifier(prep, input_ids, attention_mask):
    batch, seq = input_ids.shape
    assert seq <= MAX_POS, "sequence length exceeds position-embedding table"
    bs = batch * seq

    word = jnp.take(prep["word_emb"], input_ids.reshape(-1), axis=0)     # (BS, H)
    pos = jnp.tile(prep["pos_emb"][:seq], (batch, 1))                    # (BS, H)
    emb = word + pos + prep["type_emb"][0][None, :]

    # Block-diagonal additive mask: padding mask + no cross-batch attention.
    key_valid = attention_mask.reshape(1, bs) > 0
    same_batch = (jnp.arange(bs)[:, None] // seq) == (jnp.arange(bs)[None, :] // seq)
    add_mask = jnp.where(same_batch & key_valid, 0.0, -1e9).astype(jnp.float32)

    vmem = pltpu.MemorySpace.VMEM
    out = pl.pallas_call(
        _make_kernel(batch, seq),
        out_shape=jax.ShapeDtypeStruct((batch, LANES), jnp.float32),
        in_specs=[pl.BlockSpec(memory_space=vmem)] * 4,   # emb, mask, bf16 slab, f32 slab
        out_specs=pl.BlockSpec(memory_space=vmem),
    )(emb, add_mask, prep["w_bf16"], prep["w_f32"])
    return out[:, :NUM_LABELS]


# --------------------------------------------------------------------------
# Parameter init (PyTorch conventions) + one-time repacking into the two slabs.
# --------------------------------------------------------------------------
def init_params(key):
    # TODO(synk): BertModel.from_pretrained checkpoint load has no in-script
    # equivalent; deterministic synthetic weights with the same structure.
    def rnd(k, shape, scale=0.02):
        return scale * jax.random.normal(k, shape, dtype=jnp.float32)

    keys = iter(jax.random.split(key, 128))
    layers = []
    for _ in range(NUM_LAYERS):
        layers.append({
            "wq": rnd(next(keys), (HIDDEN, HIDDEN)), "bq": jnp.zeros((HIDDEN,)),
            "wk": rnd(next(keys), (HIDDEN, HIDDEN)), "bk": jnp.zeros((HIDDEN,)),
            "wv": rnd(next(keys), (HIDDEN, HIDDEN)), "bv": jnp.zeros((HIDDEN,)),
            "wo": rnd(next(keys), (HIDDEN, HIDDEN)), "bo": jnp.zeros((HIDDEN,)),
            "ln1_g": jnp.ones((HIDDEN,)), "ln1_b": jnp.zeros((HIDDEN,)),
            "w1": rnd(next(keys), (FFN, HIDDEN)), "b1": jnp.zeros((FFN,)),
            "w2": rnd(next(keys), (HIDDEN, FFN)), "b2": jnp.zeros((HIDDEN,)),
            "ln2_g": jnp.ones((HIDDEN,)), "ln2_b": jnp.zeros((HIDDEN,)),
        })
    return {
        "word_emb": rnd(next(keys), (VOCAB, HIDDEN)),
        "pos_emb": rnd(next(keys), (MAX_POS, HIDDEN)),
        "type_emb": rnd(next(keys), (2, HIDDEN)),
        "emb_ln_g": jnp.ones((HIDDEN,)), "emb_ln_b": jnp.zeros((HIDDEN,)),
        "layers": layers,
        # PyTorch LSTM layout: (4*hh, in), gate blocks (i, f, g, o)
        "lstm_w_ih": rnd(next(keys), (4 * LSTM_HIDDEN, HIDDEN), 0.1),
        "lstm_w_hh": rnd(next(keys), (4 * LSTM_HIDDEN, LSTM_HIDDEN), 0.1),
        "lstm_b_ih": jnp.zeros((4 * LSTM_HIDDEN,)),
        "lstm_b_hh": jnp.zeros((4 * LSTM_HIDDEN,)),
        "cls_w": rnd(next(keys), (NUM_LABELS, LSTM_HIDDEN), 0.1),
        "cls_b": jnp.zeros((NUM_LABELS,)),
    }


def prepare_params(params):
    """One-time repack of PyTorch-convention params into the two kernel slabs."""
    scale = 1.0 / math.sqrt(HEAD_DIM)
    wb, wf = {}, {}

    wf["emb_ln_g"] = params["emb_ln_g"]
    wf["emb_ln_b"] = params["emb_ln_b"]

    for l, lp in enumerate(params["layers"]):
        wq = lp["wq"].T * scale                  # (in, out); score scale folded in
        wk = lp["wk"].T
        wv = lp["wv"].T
        bq = lp["bq"] * scale
        for h in range(NUM_HEADS):
            c = slice(h * HEAD_DIM, (h + 1) * HEAD_DIM)
            wb[f"wq_{l}_{h}"] = wq[:, c]
            wb[f"wk_{l}_{h}"] = wk[:, c]
            wb[f"wv_{l}_{h}"] = wv[:, c]
            wf[f"bq_{l}_{h}"] = bq[c]
            wf[f"bk_{l}_{h}"] = lp["bk"][c]
            wf[f"bv_{l}_{h}"] = lp["bv"][c]
        wf[f"wo_{l}"] = lp["wo"].T
        wf[f"bo_{l}"] = lp["bo"]
        wf[f"ln1_g_{l}"] = lp["ln1_g"]
        wf[f"ln1_b_{l}"] = lp["ln1_b"]
        wb[f"w1_{l}"] = lp["w1"].T
        wf[f"b1_{l}"] = lp["b1"]
        wb[f"w2_{l}"] = lp["w2"].T
        wf[f"b2_{l}"] = lp["b2"]
        wf[f"ln2_g_{l}"] = lp["ln2_g"]
        wf[f"ln2_b_{l}"] = lp["ln2_b"]

    def reorder_ifgo_to_ifog(w):                 # gate blocks along axis 0
        hh = LSTM_HIDDEN
        return jnp.concatenate(
            [w[0 * hh:1 * hh], w[1 * hh:2 * hh], w[3 * hh:4 * hh], w[2 * hh:3 * hh]],
            axis=0)

    wb["w_ih"] = reorder_ifgo_to_ifog(params["lstm_w_ih"]).T   # (H, 4hh), (i,f,o,g)
    wb["w_hh"] = reorder_ifgo_to_ifog(params["lstm_w_hh"]).T   # (hh, 4hh)
    wf["lstm_b"] = reorder_ifgo_to_ifog(params["lstm_b_ih"] + params["lstm_b_hh"])

    wb["cls_w"] = jnp.zeros((LSTM_HIDDEN, LANES), jnp.float32
                            ).at[:, :NUM_LABELS].set(params["cls_w"].T)
    wf["cls_b"] = jnp.zeros((LANES,), jnp.float32).at[:NUM_LABELS].set(params["cls_b"])

    return {
        "word_emb": params["word_emb"],
        "pos_emb": params["pos_emb"],
        "type_emb": params["type_emb"],
        "w_bf16": _pack(_BF16_LAYOUT, _BF16_OFF, _BF16_ROWS, wb, jnp.bfloat16),
        "w_f32": _pack(_F32_LAYOUT, _F32_OFF, _F32_ROWS, wf, jnp.float32),
    }


if __name__ == "__main__":
    key = jax.random.PRNGKey(0)
    pkey, ikey = jax.random.split(key)
    params = init_params(pkey)
    prep = prepare_params(params)

    batch, seq = 2, 8
    input_ids = jax.random.randint(ikey, (batch, seq), 0, VOCAB, dtype=jnp.int32)
    attention_mask = jnp.ones((batch, seq), dtype=jnp.int32)

    logits = jax.jit(bert_lstm_classifier)(prep, input_ids, attention_mask)
    jax.block_until_ready(logits)
    assert logits.shape == (batch, NUM_LABELS)
    assert bool(jnp.all(jnp.isfinite(logits)))
    print("KERNEL_OK")
</pallas_src>

<mosaic_0001>
module attributes {stable_mosaic.version = 11 : i64} {
  func.func @kernel(%arg0: memref<16x32xf32, #tpu.memory_space<vmem>>, %arg1: memref<16x16xf32, #tpu.memory_space<vmem>>, %arg2: memref<1024x128xbf16, #tpu.memory_space<vmem>>, %arg3: memref<112x128xf32, #tpu.memory_space<vmem>>, %arg4: memref<2x128xf32, #tpu.memory_space<vmem>>) attributes {dimension_semantics = [], scalar_prefetch = 0 : i64, scratch_operands = 0 : i64, tpu.core_type = #tpu.core_type<tc>} {
    %c0 = arith.constant 0 : index
    %c0_0 = arith.constant 0 : index
    %0 = vector.load %arg0[%c0, %c0_0] : memref<16x32xf32, #tpu.memory_space<vmem>>, vector<16x32xf32>
    %c64 = arith.constant 64 : index
    %c0_1 = arith.constant 0 : index
    %1 = vector.load %arg3[%c64, %c0_1] : memref<112x128xf32, #tpu.memory_space<vmem>>, vector<1x32xf32>
    %c65 = arith.constant 65 : index
    %c0_2 = arith.constant 0 : index
    %2 = vector.load %arg3[%c65, %c0_2] : memref<112x128xf32, #tpu.memory_space<vmem>>, vector<1x32xf32>
    %cst = arith.constant dense<0.000000e+00> : vector<16xf32>
    %3 = vector.multi_reduction <add>, %0, %cst [1] : vector<16x32xf32> to vector<16xf32>
    %4 = vector.shape_cast %3 : vector<16xf32> to vector<16x1xf32>
    %cst_3 = arith.constant 3.200000e+01 : f32
    %5 = vector.broadcast %cst_3 : f32 to vector<16x1xf32>
    %6 = arith.divf %4, %5 : vector<16x1xf32>
    %7 = vector.broadcast %6 : vector<16x1xf32> to vector<16x32xf32>
    %8 = arith.subf %0, %7 : vector<16x32xf32>
    %9 = arith.mulf %8, %8 : vector<16x32xf32>
    %cst_4 = arith.constant dense<0.000000e+00> : vector<16xf32>
    %10 = vector.multi_reduction <add>, %9, %cst_4 [1] : vector<16x32xf32> to vector<16xf32>
    %11 = vector.shape_cast %10 : vector<16xf32> to vector<16x1xf32>
    %cst_5 = arith.constant 3.200000e+01 : f32
    %12 = vector.broadcast %cst_5 : f32 to vector<16x1xf32>
    %13 = arith.divf %11, %12 : vector<16x1xf32>
    %14 = vector.broadcast %6 : vector<16x1xf32> to vector<16x32xf32>
    %15 = arith.subf %0, %14 : vector<16x32xf32>
    %cst_6 = arith.constant 9.99999996E-13 : f32
    %16 = vector.broadcast %cst_6 : f32 to vector<16x1xf32>
    %17 = arith.addf %13, %16 : vector<16x1xf32>
    %18 = math.rsqrt %17 : vector<16x1xf32>
    %19 = vector.broadcast %18 : vector<16x1xf32> to vector<16x32xf32>
    %20 = arith.mulf %15, %19 : vector<16x32xf32>
    %21 = vector.broadcast %1 : vector<1x32xf32> to vector<16x32xf32>
    %22 = arith.mulf %20, %21 : vector<16x32xf32>
    %23 = vector.broadcast %2 : vector<1x32xf32> to vector<16x32xf32>
    %24 = arith.addf %22, %23 : vector<16x32xf32>
    %c0_7 = arith.constant 0 : index
    %c0_8 = arith.constant 0 : index
    %25 = vector.load %arg1[%c0_7, %c0_8] : memref<16x16xf32, #tpu.memory_space<vmem>>, vector<16x16xf32>
    %26 = arith.truncf %24 : vector<16x32xf32> to vector<16x32xbf16>
    %c0_9 = arith.constant 0 : index
    %c0_10 = arith.constant 0 : index
    %27 = vector.load %arg3[%c0_9, %c0_10] : memref<112x128xf32, #tpu.memory_space<vmem>>, vector<32x32xf32>
    %cst_11 = arith.constant 0.000000e+00 : f32
    %28 = vector.broadcast %cst_11 : f32 to vector<16x32xf32>
    %c0_12 = arith.constant 0 : index
    %c0_13 = arith.constant 0 : index
    %29 = vector.load %arg2[%c0_12, %c0_13] : memref<1024x128xbf16, #tpu.memory_space<vmem>>, vector<32x8xbf16>
    %cst_14 = arith.constant dense<0.000000e+00> : vector<16x8xf32>
    %30 = tpu.matmul %26, %29, %cst_14 {dimension_numbers = #tpu.dot_dimension_numbers<[1], [0], [0], [1], [0, 0, 1, 1], [], []>} : vector<16x32xbf16>, vector<32x8xbf16>, vector<16x8xf32> -> vector<16x8xf32>
    %c66 = arith.constant 66 : index
    %c0_15 = arith.constant 0 : index
    %31 = vector.load %arg3[%c66, %c0_15] : memref<112x128xf32, #tpu.memory_space<vmem>>, vector<1x8xf32>
    %32 = vector.broadcast %31 : vector<1x8xf32> to vector<16x8xf32>
    %33 = arith.addf %30, %32 : vector<16x8xf32>
    %c32 = arith.constant 32 : index
    %c0_16 = arith.constant 0 : index
    %34 = vector.load %arg2[%c32, %c0_16] : memref<1024x128xbf16, #tpu.memory_space<vmem>>, vector<32x8xbf16>
    %cst_17 = arith.constant dense<0.000000e+00> : vector<16x8xf32>
    %35 = tpu.matmul %26, %34, %cst_17 {dimension_numbers = #tpu.dot_dimension_numbers<[1], [0], [0], [1], [0, 0, 1, 1], [], []>} : vector<16x32xbf16>, vector<32x8xbf16>, vector<16x8xf32> -> vector<16x8xf32>
    %c67 = arith.constant 67 : index
    %c0_18 = arith.constant 0 : index
    %36 = vector.load %arg3[%c67, %c0_18] : memref<112x128xf32, #tpu.memory_space<vmem>>, vector<1x8xf32>
    %37 = vector.broadcast %36 : vector<1x8xf32> to vector<16x8xf32>
    %38 = arith.addf %35, %37 : vector<16x8xf32>
    %c64_19 = arith.constant 64 : index
    %c0_20 = arith.constant 0 : index
    %39 = vector.load %arg2[%c64_19, %c0_20] : memref<1024x128xbf16, #tpu.memory_space<vmem>>, vector<32x8xbf16>
    %cst_21 = arith.constant dense<0.000000e+00> : vector<16x8xf32>
    %40 = tpu.matmul %26, %39, %cst_21 {dimension_numbers = #tpu.dot_dimension_numbers<[1], [0], [0], [1], [0, 0, 1, 1], [], []>} : vector<16x32xbf16>, vector<32x8xbf16>, vector<16x8xf32> -> vector<16x8xf32>
    %c68 = arith.constant 68 : index
    %c0_22 = arith.constant 0 : index
    %41 = vector.load %arg3[%c68, %c0_22] : memref<112x128xf32, #tpu.memory_space<vmem>>, vector<1x8xf32>
    %42 = vector.broadcast %41 : vector<1x8xf32> to vector<16x8xf32>
    %43 = arith.addf %40, %42 : vector<16x8xf32>
    %44 = arith.truncf %33 : vector<16x8xf32> to vector<16x8xbf16>
    %45 = arith.truncf %38 : vector<16x8xf32> to vector<16x8xbf16>
    %cst_23 = arith.constant dense<0.000000e+00> : vector<16x16xf32>
    %46 = tpu.matmul %44, %45, %cst_23 {dimension_numbers = #tpu.dot_dimension_numbers<[1], [1], [0], [0], [0, 0, 1, 0], [], []>} : vector<16x8xbf16>, vector<16x8xbf16>, vector<16x16xf32> -> vector<16x16xf32>
    %47 = arith.addf %46, %25 : vector<16x16xf32>
    %cst_24 = arith.constant dense<0xFF800000> : vector<16xf32>
    %48 = vector.multi_reduction <maximumf>, %47, %cst_24 [1] : vector<16x16xf32> to vector<16xf32>
    %49 = vector.shape_cast %48 : vector<16xf32> to vector<16x1xf32>
    %50 = vector.broadcast %49 : vector<16x1xf32> to vector<16x16xf32>
    %51 = arith.subf %47, %50 : vector<16x16xf32>
    %52 = math.exp %51 : vector<16x16xf32>
    %cst_25 = arith.constant dense<0.000000e+00> : vector<16xf32>
    %53 = vector.multi_reduction <add>, %52, %cst_25 [1] : vector<16x16xf32> to vector<16xf32>
    %54 = vector.shape_cast %53 : vector<16xf32> to vector<16x1xf32>
    %55 = tpu.reciprocal %54 {approx = true} : vector<16x1xf32> -> vector<16x1xf32>
    %56 = vector.broadcast %55 : vector<16x1xf32> to vector<16x16xf32>
    %57 = arith.mulf %52, %56 : vector<16x16xf32>
    %58 = arith.truncf %57 : vector<16x16xf32> to vector<16x16xbf16>
    %59 = arith.truncf %43 : vector<16x8xf32> to vector<16x8xbf16>
    %cst_26 = arith.constant dense<0.000000e+00> : vector<16x8xf32>
    %60 = tpu.matmul %58, %59, %cst_26 {dimension_numbers = #tpu.dot_dimension_numbers<[1], [0], [0], [1], [0, 0, 1, 1], [], []>} : vector<16x16xbf16>, vector<16x8xbf16>, vector<16x8xf32> -> vector<16x8xf32>
    %61 = vector.extract_strided_slice %27 {offsets = [0, 0], sizes = [8, 32], strides = [1, 1]} : vector<32x32xf32> to vector<8x32xf32>
    %62 = arith.truncf %61 : vector<8x32xf32> to vector<8x32xbf16>
    %63 = arith.truncf %60 : vector<16x8xf32> to vector<16x8xbf16>
    %cst_27 = arith.constant dense<0.000000e+00> : vector<16x32xf32>
    %64 = tpu.matmul %63, %62, %cst_27 {dimension_numbers = #tpu.dot_dimension_numbers<[1], [0], [0], [1], [0, 0, 1, 1], [], []>} : vector<16x8xbf16>, vector<8x32xbf16>, vector<16x32xf32> -> vector<16x32xf32>
    %65 = arith.addf %28, %64 : vector<16x32xf32>
    %c96 = arith.constant 96 : index
    %c0_28 = arith.constant 0 : index
    %66 = vector.load %arg2[%c96, %c0_28] : memref<1024x128xbf16, #tpu.memory_space<vmem>>, vector<32x8xbf16>
    %cst_29 = arith.constant dense<0.000000e+00> : vector<16x8xf32>
    %67 = tpu.matmul %26, %66, %cst_29 {dimension_numbers = #tpu.dot_dimension_numbers<[1], [0], [0], [1], [0, 0, 1, 1], [], []>} : vector<16x32xbf16>, vector<32x8xbf16>, vector<16x8xf32> -> vector<16x8xf32>
    %c69 = arith.constant 69 : index
    %c0_30 = arith.constant 0 : index
    %68 = vector.load %arg3[%c69, %c0_30] : memref<112x128xf32, #tpu.memory_space<vmem>>, vector<1x8xf32>
    %69 = vector.broadcast %68 : vector<1x8xf32> to vector<16x8xf32>
    %70 = arith.addf %67, %69 : vector<16x8xf32>
    %c128 = arith.constant 128 : index
    %c0_31 = arith.constant 0 : index
    %71 = vector.load %arg2[%c128, %c0_31] : memref<1024x128xbf16, #tpu.memory_space<vmem>>, vector<32x8xbf16>
    %cst_32 = arith.constant dense<0.000000e+00> : vector<16x8xf32>
    %72 = tpu.matmul %26, %71, %cst_32 {dimension_numbers = #tpu.dot_dimension_numbers<[1], [0], [0], [1], [0, 0, 1, 1], [], []>} : vector<16x32xbf16>, vector<32x8xbf16>, vector<16x8xf32> -> vector<16x8xf32>
    %c70 = arith.constant 70 : index
    %c0_33 = arith.constant 0 : index
    %73 = vector.load %arg3[%c70, %c0_33] : memref<112x128xf32, #tpu.memory_space<vmem>>, vector<1x8xf32>
    %74 = vector.broadcast %73 : vector<1x8xf32> to vector<16x8xf32>
    %75 = arith.addf %72, %74 : vector<16x8xf32>
    %c160 = arith.constant 160 : index
    %c0_34 = arith.constant 0 : index
    %76 = vector.load %arg2[%c160, %c0_34] : memref<1024x128xbf16, #tpu.memory_space<vmem>>, vector<32x8xbf16>
    %cst_35 = arith.constant dense<0.000000e+00> : vector<16x8xf32>
    %77 = tpu.matmul %26, %76, %cst_35 {dimension_numbers = #tpu.dot_dimension_numbers<[1], [0], [0], [1], [0, 0, 1, 1], [], []>} : vector<16x32xbf16>, vector<32x8xbf16>, vector<16x8xf32> -> vector<16x8xf32>
    %c71 = arith.constant 71 : index
    %c0_36 = arith.constant 0 : index
    %78 = vector.load %arg3[%c71, %c0_36] : memref<112x128xf32, #tpu.memory_space<vmem>>, vector<1x8xf32>
    %79 = vector.broadcast %78 : vector<1x8xf32> to vector<16x8xf32>
    %80 = arith.addf %77, %79 : vector<16x8xf32>
    %81 = arith.truncf %70 : vector<16x8xf32> to vector<16x8xbf16>
    %82 = arith.truncf %75 : vector<16x8xf32> to vector<16x8xbf16>
    %cst_37 = arith.constant dense<0.000000e+00> : vector<16x16xf32>
    %83 = tpu.matmul %81, %82, %cst_37 {dimension_numbers = #tpu.dot_dimension_numbers<[1], [1], [0], [0], [0, 0, 1, 0], [], []>} : vector<16x8xbf16>, vector<16x8xbf16>, vector<16x16xf32> -> vector<16x16xf32>
    %84 = arith.addf %83, %25 : vector<16x16xf32>
    %cst_38 = arith.constant dense<0xFF800000> : vector<16xf32>
    %85 = vector.multi_reduction <maximumf>, %84, %cst_38 [1] : vector<16x16xf32> to vector<16xf32>
    %86 = vector.shape_cast %85 : vector<16xf32> to vector<16x1xf32>
    %87 = vector.broadcast %86 : vector<16x1xf32> to vector<16x16xf32>
    %88 = arith.subf %84, %87 : vector<16x16xf32>
    %89 = math.exp %88 : vector<16x16xf32>
    %cst_39 = arith.constant dense<0.000000e+00> : vector<16xf32>
    %90 = vector.multi_reduction <add>, %89, %cst_39 [1] : vector<16x16xf32> to vector<16xf32>
    %91 = vector.shape_cast %90 : vector<16xf32> to vector<16x1xf32>
    %92 = tpu.reciprocal %91 {approx = true} : vector<16x1xf32> -> vector<16x1xf32>
    %93 = vector.broadcast %92 : vector<16x1xf32> to vector<16x16xf32>
    %94 = arith.mulf %89, %93 : vector<16x16xf32>
    %95 = arith.truncf %94 : vector<16x16xf32> to vector<16x16xbf16>
    %96 = arith.truncf %80 : vector<16x8xf32> to vector<16x8xbf16>
    %cst_40 = arith.constant dense<0.000000e+00> : vector<16x8xf32>
    %97 = tpu.matmul %95, %96, %cst_40 {dimension_numbers = #tpu.dot_dimension_numbers<[1], [0], [0], [1], [0, 0, 1, 1], [], []>} : vector<16x16xbf16>, vector<16x8xbf16>, vector<16x8xf32> -> vector<16x8xf32>
    %98 = vector.extract_strided_slice %27 {offsets = [8, 0], sizes = [8, 32], strides = [1, 1]} : vector<32x32xf32> to vector<8x32xf32>
    %99 = arith.truncf %98 : vector<8x32xf32> to vector<8x32xbf16>
    %100 = arith.truncf %97 : vector<16x8xf32> to vector<16x8xbf16>
    %cst_41 = arith.constant dense<0.000000e+00> : vector<16x32xf32>
    %101 = tpu.matmul %100, %99, %cst_41 {dimension_numbers = #tpu.dot_dimension_numbers<[1], [0], [0], [1], [0, 0, 1, 1], [], []>} : vector<16x8xbf16>, vector<8x32xbf16>, vector<16x32xf32> -> vector<16x32xf32>
    %102 = arith.addf %65, %101 : vector<16x32xf32>
    %c192 = arith.constant 192 : index
    %c0_42 = arith.constant 0 : index
    %103 = vector.load %arg2[%c192, %c0_42] : memref<1024x128xbf16, #tpu.memory_space<vmem>>, vector<32x8xbf16>
    %cst_43 = arith.constant dense<0.000000e+00> : vector<16x8xf32>
    %104 = tpu.matmul %26, %103, %cst_43 {dimension_numbers = #tpu.dot_dimension_numbers<[1], [0], [0], [1], [0, 0, 1, 1], [], []>} : vector<16x32xbf16>, vector<32x8xbf16>, vector<16x8xf32> -> vector<16x8xf32>
    %c72 = arith.constant 72 : index
    %c0_44 = arith.constant 0 : index
    %105 = vector.load %arg3[%c72, %c0_44] : memref<112x128xf32, #tpu.memory_space<vmem>>, vector<1x8xf32>
    %106 = vector.broadcast %105 : vector<1x8xf32> to vector<16x8xf32>
    %107 = arith.addf %104, %106 : vector<16x8xf32>
    %c224 = arith.constant 224 : index
    %c0_45 = arith.constant 0 : index
    %108 = vector.load %arg2[%c224, %c0_45] : memref<1024x128xbf16, #tpu.memory_space<vmem>>, vector<32x8xbf16>
    %cst_46 = arith.constant dense<0.000000e+00> : vector<16x8xf32>
    %109 = tpu.matmul %26, %108, %cst_46 {dimension_numbers = #tpu.dot_dimension_numbers<[1], [0], [0], [1], [0, 0, 1, 1], [], []>} : vector<16x32xbf16>, vector<32x8xbf16>, vector<16x8xf32> -> vector<16x8xf32>
    %c73 = arith.constant 73 : index
    %c0_47 = arith.constant 0 : index
    %110 = vector.load %arg3[%c73, %c0_47] : memref<112x128xf32, #tpu.memory_space<vmem>>, vector<1x8xf32>
    %111 = vector.broadcast %110 : vector<1x8xf32> to vector<16x8xf32>
    %112 = arith.addf %109, %111 : vector<16x8xf32>
    %c256 = arith.constant 256 : index
    %c0_48 = arith.constant 0 : index
    %113 = vector.load %arg2[%c256, %c0_48] : memref<1024x128xbf16, #tpu.memory_space<vmem>>, vector<32x8xbf16>
    %cst_49 = arith.constant dense<0.000000e+00> : vector<16x8xf32>
    %114 = tpu.matmul %26, %113, %cst_49 {dimension_numbers = #tpu.dot_dimension_numbers<[1], [0], [0], [1], [0, 0, 1, 1], [], []>} : vector<16x32xbf16>, vector<32x8xbf16>, vector<16x8xf32> -> vector<16x8xf32>
    %c74 = arith.constant 74 : index
    %c0_50 = arith.constant 0 : index
    %115 = vector.load %arg3[%c74, %c0_50] : memref<112x128xf32, #tpu.memory_space<vmem>>, vector<1x8xf32>
    %116 = vector.broadcast %115 : vector<1x8xf32> to vector<16x8xf32>
    %117 = arith.addf %114, %116 : vector<16x8xf32>
    %118 = arith.truncf %107 : vector<16x8xf32> to vector<16x8xbf16>
    %119 = arith.truncf %112 : vector<16x8xf32> to vector<16x8xbf16>
    %cst_51 = arith.constant dense<0.000000e+00> : vector<16x16xf32>
    %120 = tpu.matmul %118, %119, %cst_51 {dimension_numbers = #tpu.dot_dimension_numbers<[1], [1], [0], [0], [0, 0, 1, 0], [], []>} : vector<16x8xbf16>, vector<16x8xbf16>, vector<16x16xf32> -> vector<16x16xf32>
    %121 = arith.addf %120, %25 : vector<16x16xf32>
    %cst_52 = arith.constant dense<0xFF800000> : vector<16xf32>
    %122 = vector.multi_reduction <maximumf>, %121, %cst_52 [1] : vector<16x16xf32> to vector<16xf32>
    %123 = vector.shape_cast %122 : vector<16xf32> to vector<16x1xf32>
    %124 = vector.broadcast %123 : vector<16x1xf32> to vector<16x16xf32>
    %125 = arith.subf %121, %124 : vector<16x16xf32>
    %126 = math.exp %125 : vector<16x16xf32>
    %cst_53 = arith.constant dense<0.000000e+00> : vector<16xf32>
    %127 = vector.multi_reduction <add>, %126, %cst_53 [1] : vector<16x16xf32> to vector<16xf32>
    %128 = vector.shape_cast %127 : vector<16xf32> to vector<16x1xf32>
    %129 = tpu.reciprocal %128 {approx = true} : vector<16x1xf32> -> vector<16x1xf32>
    %130 = vector.broadcast %129 : vector<16x1xf32> to vector<16x16xf32>
    %131 = arith.mulf %126, %130 : vector<16x16xf32>
    %132 = arith.truncf %131 : vector<16x16xf32> to vector<16x16xbf16>
    %133 = arith.truncf %117 : vector<16x8xf32> to vector<16x8xbf16>
    %cst_54 = arith.constant dense<0.000000e+00> : vector<16x8xf32>
    %134 = tpu.matmul %132, %133, %cst_54 {dimension_numbers = #tpu.dot_dimension_numbers<[1], [0], [0], [1], [0, 0, 1, 1], [], []>} : vector<16x16xbf16>, vector<16x8xbf16>, vector<16x8xf32> -> vector<16x8xf32>
    %135 = vector.extract_strided_slice %27 {offsets = [16, 0], sizes = [8, 32], strides = [1, 1]} : vector<32x32xf32> to vector<8x32xf32>
    %136 = arith.truncf %135 : vector<8x32xf32> to vector<8x32xbf16>
    %137 = arith.truncf %134 : vector<16x8xf32> to vector<16x8xbf16>
    %cst_55 = arith.constant dense<0.000000e+00> : vector<16x32xf32>
    %138 = tpu.matmul %137, %136, %cst_55 {dimension_numbers = #tpu.dot_dimension_numbers<[1], [0], [0], [1], [0, 0, 1, 1], [], []>} : vector<16x8xbf16>, vector<8x32xbf16>, vector<16x32xf32> -> vector<16x32xf32>
    %139 = arith.addf %102, %138 : vector<16x32xf32>
    %c288 = arith.constant 288 : index
    %c0_56 = arith.constant 0 : index
    %140 = vector.load %arg2[%c288, %c0_56] : memref<1024x128xbf16, #tpu.memory_space<vmem>>, vector<32x8xbf16>
    %cst_57 = arith.constant dense<0.000000e+00> : vector<16x8xf32>
    %141 = tpu.matmul %26, %140, %cst_57 {dimension_numbers = #tpu.dot_dimension_numbers<[1], [0], [0], [1], [0, 0, 1, 1], [], []>} : vector<16x32xbf16>, vector<32x8xbf16>, vector<16x8xf32> -> vector<16x8xf32>
    %c75 = arith.constant 75 : index
    %c0_58 = arith.constant 0 : index
    %142 = vector.load %arg3[%c75, %c0_58] : memref<112x128xf32, #tpu.memory_space<vmem>>, vector<1x8xf32>
    %143 = vector.broadcast %142 : vector<1x8xf32> to vector<16x8xf32>
    %144 = arith.addf %141, %143 : vector<16x8xf32>
    %c320 = arith.constant 320 : index
    %c0_59 = arith.constant 0 : index
    %145 = vector.load %arg2[%c320, %c0_59] : memref<1024x128xbf16, #tpu.memory_space<vmem>>, vector<32x8xbf16>
    %cst_60 = arith.constant dense<0.000000e+00> : vector<16x8xf32>
    %146 = tpu.matmul %26, %145, %cst_60 {dimension_numbers = #tpu.dot_dimension_numbers<[1], [0], [0], [1], [0, 0, 1, 1], [], []>} : vector<16x32xbf16>, vector<32x8xbf16>, vector<16x8xf32> -> vector<16x8xf32>
    %c76 = arith.constant 76 : index
    %c0_61 = arith.constant 0 : index
    %147 = vector.load %arg3[%c76, %c0_61] : memref<112x128xf32, #tpu.memory_space<vmem>>, vector<1x8xf32>
    %148 = vector.broadcast %147 : vector<1x8xf32> to vector<16x8xf32>
    %149 = arith.addf %146, %148 : vector<16x8xf32>
    %c352 = arith.constant 352 : index
    %c0_62 = arith.constant 0 : index
    %150 = vector.load %arg2[%c352, %c0_62] : memref<1024x128xbf16, #tpu.memory_space<vmem>>, vector<32x8xbf16>
    %cst_63 = arith.constant dense<0.000000e+00> : vector<16x8xf32>
    %151 = tpu.matmul %26, %150, %cst_63 {dimension_numbers = #tpu.dot_dimension_numbers<[1], [0], [0], [1], [0, 0, 1, 1], [], []>} : vector<16x32xbf16>, vector<32x8xbf16>, vector<16x8xf32> -> vector<16x8xf32>
    %c77 = arith.constant 77 : index
    %c0_64 = arith.constant 0 : index
    %152 = vector.load %arg3[%c77, %c0_64] : memref<112x128xf32, #tpu.memory_space<vmem>>, vector<1x8xf32>
    %153 = vector.broadcast %152 : vector<1x8xf32> to vector<16x8xf32>
    %154 = arith.addf %151, %153 : vector<16x8xf32>
    %155 = arith.truncf %144 : vector<16x8xf32> to vector<16x8xbf16>
    %156 = arith.truncf %149 : vector<16x8xf32> to vector<16x8xbf16>
    %cst_65 = arith.constant dense<0.000000e+00> : vector<16x16xf32>
    %157 = tpu.matmul %155, %156, %cst_65 {dimension_numbers = #tpu.dot_dimension_numbers<[1], [1], [0], [0], [0, 0, 1, 0], [], []>} : vector<16x8xbf16>, vector<16x8xbf16>, vector<16x16xf32> -> vector<16x16xf32>
    %158 = arith.addf %157, %25 : vector<16x16xf32>
    %cst_66 = arith.constant dense<0xFF800000> : vector<16xf32>
    %159 = vector.multi_reduction <maximumf>, %158, %cst_66 [1] : vector<16x16xf32> to vector<16xf32>
    %160 = vector.shape_cast %159 : vector<16xf32> to vector<16x1xf32>
    %161 = vector.broadcast %160 : vector<16x1xf32> to vector<16x16xf32>
    %162 = arith.subf %158, %161 : vector<16x16xf32>
    %163 = math.exp %162 : vector<16x16xf32>
    %cst_67 = arith.constant dense<0.000000e+00> : vector<16xf32>
    %164 = vector.multi_reduction <add>, %163, %cst_67 [1] : vector<16x16xf32> to vector<16xf32>
    %165 = vector.shape_cast %164 : vector<16xf32> to vector<16x1xf32>
    %166 = tpu.reciprocal %165 {approx = true} : vector<16x1xf32> -> vector<16x1xf32>
    %167 = vector.broadcast %166 : vector<16x1xf32> to vector<16x16xf32>
    %168 = arith.mulf %163, %167 : vector<16x16xf32>
    %169 = arith.truncf %168 : vector<16x16xf32> to vector<16x16xbf16>
    %170 = arith.truncf %154 : vector<16x8xf32> to vector<16x8xbf16>
    %cst_68 = arith.constant dense<0.000000e+00> : vector<16x8xf32>
    %171 = tpu.matmul %169, %170, %cst_68 {dimension_numbers = #tpu.dot_dimension_numbers<[1], [0], [0], [1], [0, 0, 1, 1], [], []>} : vector<16x16xbf16>, vector<16x8xbf16>, vector<16x8xf32> -> vector<16x8xf32>
    %172 = vector.extract_strided_slice %27 {offsets = [24, 0], sizes = [8, 32], strides = [1, 1]} : vector<32x32xf32> to vector<8x32xf32>
    %173 = arith.truncf %172 : vector<8x32xf32> to vector<8x32xbf16>
    %174 = arith.truncf %171 : vector<16x8xf32> to vector<16x8xbf16>
    %cst_69 = arith.constant dense<0.000000e+00> : vector<16x32xf32>
    %175 = tpu.matmul %174, %173, %cst_69 {dimension_numbers = #tpu.dot_dimension_numbers<[1], [0], [0], [1], [0, 0, 1, 1], [], []>} : vector<16x8xbf16>, vector<8x32xbf16>, vector<16x32xf32> -> vector<16x32xf32>
    %176 = arith.addf %139, %175 : vector<16x32xf32>
    %c78 = arith.constant 78 : index
    %c0_70 = arith.constant 0 : index
    %177 = vector.load %arg3[%c78, %c0_70] : memref<112x128xf32, #tpu.memory_space<vmem>>, vector<1x32xf32>
    %178 = vector.broadcast %177 : vector<1x32xf32> to vector<16x32xf32>
    %179 = arith.addf %176, %178 : vector<16x32xf32>
    %180 = arith.addf %179, %24 : vector<16x32xf32>
    %c79 = arith.constant 79 : index
    %c0_71 = arith.constant 0 : index
    %181 = vector.load %arg3[%c79, %c0_71] : memref<112x128xf32, #tpu.memory_space<vmem>>, vector<1x32xf32>
    %c80 = arith.constant 80 : index
    %c0_72 = arith.constant 0 : index
    %182 = vector.load %arg3[%c80, %c0_72] : memref<112x128xf32, #tpu.memory_space<vmem>>, vector<1x32xf32>
    %cst_73 = arith.constant dense<0.000000e+00> : vector<16xf32>
    %183 = vector.multi_reduction <add>, %180, %cst_73 [1] : vector<16x32xf32> to vector<16xf32>
    %184 = vector.shape_cast %183 : vector<16xf32> to vector<16x1xf32>
    %cst_74 = arith.constant 3.200000e+01 : f32
    %185 = vector.broadcast %cst_74 : f32 to vector<16x1xf32>
    %186 = arith.divf %184, %185 : vector<16x1xf32>
    %187 = vector.broadcast %186 : vector<16x1xf32> to vector<16x32xf32>
    %188 = arith.subf %180, %187 : vector<16x32xf32>
    %189 = arith.mulf %188, %188 : vector<16x32xf32>
    %cst_75 = arith.constant dense<0.000000e+00> : vector<16xf32>
    %190 = vector.multi_reduction <add>, %189, %cst_75 [1] : vector<16x32xf32> to vector<16xf32>
    %191 = vector.shape_cast %190 : vector<16xf32> to vector<16x1xf32>
    %cst_76 = arith.constant 3.200000e+01 : f32
    %192 = vector.broadcast %cst_76 : f32 to vector<16x1xf32>
    %193 = arith.divf %191, %192 : vector<16x1xf32>
    %194 = vector.broadcast %186 : vector<16x1xf32> to vector<16x32xf32>
    %195 = arith.subf %180, %194 : vector<16x32xf32>
    %cst_77 = arith.constant 9.99999996E-13 : f32
    %196 = vector.broadcast %cst_77 : f32 to vector<16x1xf32>
    %197 = arith.addf %193, %196 : vector<16x1xf32>
    %198 = math.rsqrt %197 : vector<16x1xf32>
    %199 = vector.broadcast %198 : vector<16x1xf32> to vector<16x32xf32>
    %200 = arith.mulf %195, %199 : vector<16x32xf32>
    %201 = vector.broadcast %181 : vector<1x32xf32> to vector<16x32xf32>
    %202 = arith.mulf %200, %201 : vector<16x32xf32>
    %203 = vector.broadcast %182 : vector<1x32xf32> to vector<16x32xf32>
    %204 = arith.addf %202, %203 : vector<16x32xf32>
    %205 = arith.truncf %204 : vector<16x32xf32> to vector<16x32xbf16>
    %c384 = arith.constant 384 : index
    %c0_78 = arith.constant 0 : index
    %206 = vector.load %arg2[%c384, %c0_78] : memref<1024x128xbf16, #tpu.memory_space<vmem>>, vector<32x64xbf16>
    %cst_79 = arith.constant dense<0.000000e+00> : vector<16x64xf32>
    %207 = tpu.matmul %205, %206, %cst_79 {dimension_numbers = #tpu.dot_dimension_numbers<[1], [0], [0], [1], [0, 0, 1, 1], [], []>} : vector<16x32xbf16>, vector<32x64xbf16>, vector<16x64xf32> -> vector<16x64xf32>
    %c81 = arith.constant 81 : index
    %c0_80 = arith.constant 0 : index
    %208 = vector.load %arg3[%c81, %c0_80] : memref<112x128xf32, #tpu.memory_space<vmem>>, vector<1x64xf32>
    %209 = vector.broadcast %208 : vector<1x64xf32> to vector<16x64xf32>
    %210 = arith.addf %207, %209 : vector<16x64xf32>
    %211 = arith.mulf %210, %210 : vector<16x64xf32>
    %212 = arith.mulf %210, %211 : vector<16x64xf32>
    %cst_81 = arith.constant 4.471500e-02 : f32
    %213 = vector.broadcast %cst_81 : f32 to vector<16x64xf32>
    %214 = arith.mulf %213, %212 : vector<16x64xf32>
    %215 = arith.addf %210, %214 : vector<16x64xf32>
    %cst_82 = arith.constant 0.797884583 : f32
    %216 = vector.broadcast %cst_82 : f32 to vector<16x64xf32>
    %217 = arith.mulf %216, %215 : vector<16x64xf32>
    %218 = math.tanh %217 : vector<16x64xf32>
    %cst_83 = arith.constant 1.000000e+00 : f32
    %219 = vector.broadcast %cst_83 : f32 to vector<16x64xf32>
    %220 = arith.addf %219, %218 : vector<16x64xf32>
    %cst_84 = arith.constant 5.000000e-01 : f32
    %221 = vector.broadcast %cst_84 : f32 to vector<16x64xf32>
    %222 = arith.mulf %221, %220 : vector<16x64xf32>
    %223 = arith.mulf %210, %222 : vector<16x64xf32>
    %224 = arith.truncf %223 : vector<16x64xf32> to vector<16x64xbf16>
    %c416 = arith.constant 416 : index
    %c0_85 = arith.constant 0 : index
    %225 = vector.load %arg2[%c416, %c0_85] : memref<1024x128xbf16, #tpu.memory_space<vmem>>, vector<64x32xbf16>
    %cst_86 = arith.constant dense<0.000000e+00> : vector<16x32xf32>
    %226 = tpu.matmul %224, %225, %cst_86 {dimension_numbers = #tpu.dot_dimension_numbers<[1], [0], [0], [1], [0, 0, 1, 1], [], []>} : vector<16x64xbf16>, vector<64x32xbf16>, vector<16x32xf32> -> vector<16x32xf32>
    %c82 = arith.constant 82 : index
    %c0_87 = arith.constant 0 : index
    %227 = vector.load %arg3[%c82, %c0_87] : memref<112x128xf32, #tpu.memory_space<vmem>>, vector<1x32xf32>
    %228 = vector.broadcast %227 : vector<1x32xf32> to vector<16x32xf32>
    %229 = arith.addf %226, %228 : vector<16x32xf32>
    %230 = arith.addf %229, %204 : vector<16x32xf32>
    %c83 = arith.constant 83 : index
    %c0_88 = arith.constant 0 : index
    %231 = vector.load %arg3[%c83, %c0_88] : memref<112x128xf32, #tpu.memory_space<vmem>>, vector<1x32xf32>
    %c84 = arith.constant 84 : index
    %c0_89 = arith.constant 0 : index
    %232 = vector.load %arg3[%c84, %c0_89] : memref<112x128xf32, #tpu.memory_space<vmem>>, vector<1x32xf32>
    %cst_90 = arith.constant dense<0.000000e+00> : vector<16xf32>
    %233 = vector.multi_reduction <add>, %230, %cst_90 [1] : vector<16x32xf32> to vector<16xf32>
    %234 = vector.shape_cast %233 : vector<16xf32> to vector<16x1xf32>
    %cst_91 = arith.constant 3.200000e+01 : f32
    %235 = vector.broadcast %cst_91 : f32 to vector<16x1xf32>
    %236 = arith.divf %234, %235 : vector<16x1xf32>
    %237 = vector.broadcast %236 : vector<16x1xf32> to vector<16x32xf32>
    %238 = arith.subf %230, %237 : vector<16x32xf32>
    %239 = arith.mulf %238, %238 : vector<16x32xf32>
    %cst_92 = arith.constant dense<0.000000e+00> : vector<16xf32>
    %240 = vector.multi_reduction <add>, %239, %cst_92 [1] : vector<16x32xf32> to vector<16xf32>
    %241 = vector.shape_cast %240 : vector<16xf32> to vector<16x1xf32>
    %cst_93 = arith.constant 3.200000e+01 : f32
    %242 = vector.broadcast %cst_93 : f32 to vector<16x1xf32>
    %243 = arith.divf %241, %242 : vector<16x1xf32>
    %244 = vector.broadcast %236 : vector<16x1xf32> to vector<16x32xf32>
    %245 = arith.subf %230, %244 : vector<16x32xf32>
    %cst_94 = arith.constant 9.99999996E-13 : f32
    %246 = vector.broadcast %cst_94 : f32 to vector<16x1xf32>
    %247 = arith.addf %243, %246 : vector<16x1xf32>
    %248 = math.rsqrt %247 : vector<16x1xf32>
    %249 = vector.broadcast %248 : vector<16x1xf32> to vector<16x32xf32>
    %250 = arith.mulf %245, %249 : vector<16x32xf32>
    %251 = vector.broadcast %231 : vector<1x32xf32> to vector<16x32xf32>
    %252 = arith.mulf %250, %251 : vector<16x32xf32>
    %253 = vector.broadcast %232 : vector<1x32xf32> to vector<16x32xf32>
    %254 = arith.addf %252, %253 : vector<16x32xf32>
    %255 = arith.truncf %254 : vector<16x32xf32> to vector<16x32xbf16>
    %c32_95 = arith.constant 32 : index
    %c0_96 = arith.constant 0 : index
    %256 = vector.load %arg3[%c32_95, %c0_96] : memref<112x128xf32, #tpu.memory_space<vmem>>, vector<32x32xf32>
    %cst_97 = arith.constant 0.000000e+00 : f32
    %257 = vector.broadcast %cst_97 : f32 to vector<16x32xf32>
    %c480 = arith.constant 480 : index
    %c0_98 = arith.constant 0 : index
    %258 = vector.load %arg2[%c480, %c0_98] : memref<1024x128xbf16, #tpu.memory_space<vmem>>, vector<32x8xbf16>
    %cst_99 = arith.constant dense<0.000000e+00> : vector<16x8xf32>
    %259 = tpu.matmul %255, %258, %cst_99 {dimension_numbers = #tpu.dot_dimension_numbers<[1], [0], [0], [1], [0, 0, 1, 1], [], []>} : vector<16x32xbf16>, vector<32x8xbf16>, vector<16x8xf32> -> vector<16x8xf32>
    %c85 = arith.constant 85 : index
    %c0_100 = arith.constant 0 : index
    %260 = vector.load %arg3[%c85, %c0_100] : memref<112x128xf32, #tpu.memory_space<vmem>>, vector<1x8xf32>
    %261 = vector.broadcast %260 : vector<1x8xf32> to vector<16x8xf32>
    %262 = arith.addf %259, %261 : vector<16x8xf32>
    %c512 = arith.constant 512 : index
    %c0_101 = arith.constant 0 : index
    %263 = vector.load %arg2[%c512, %c0_101] : memref<1024x128xbf16, #tpu.memory_space<vmem>>, vector<32x8xbf16>
    %cst_102 = arith.constant dense<0.000000e+00> : vector<16x8xf32>
    %264 = tpu.matmul %255, %263, %cst_102 {dimension_numbers = #tpu.dot_dimension_numbers<[1], [0], [0], [1], [0, 0, 1, 1], [], []>} : vector<16x32xbf16>, vector<32x8xbf16>, vector<16x8xf32> -> vector<16x8xf32>
    %c86 = arith.constant 86 : index
    %c0_103 = arith.constant 0 : index
    %265 = vector.load %arg3[%c86, %c0_103] : memref<112x128xf32, #tpu.memory_space<vmem>>, vector<1x8xf32>
    %266 = vector.broadcast %265 : vector<1x8xf32> to vector<16x8xf32>
    %267 = arith.addf %264, %266 : vector<16x8xf32>
    %c544 = arith.constant 544 : index
    %c0_104 = arith.constant 0 : index
    %268 = vector.load %arg2[%c544, %c0_104] : memref<1024x128xbf16, #tpu.memory_space<vmem>>, vector<32x8xbf16>
    %cst_105 = arith.constant dense<0.000000e+00> : vector<16x8xf32>
    %269 = tpu.matmul %255, %268, %cst_105 {dimension_numbers = #tpu.dot_dimension_numbers<[1], [0], [0], [1], [0, 0, 1, 1], [], []>} : vector<16x32xbf16>, vector<32x8xbf16>, vector<16x8xf32> -> vector<16x8xf32>
    %c87 = arith.constant 87 : index
    %c0_106 = arith.constant 0 : index
    %270 = vector.load %arg3[%c87, %c0_106] : memref<112x128xf32, #tpu.memory_space<vmem>>, vector<1x8xf32>
    %271 = vector.broadcast %270 : vector<1x8xf32> to vector<16x8xf32>
    %272 = arith.addf %269, %271 : vector<16x8xf32>
    %273 = arith.truncf %262 : vector<16x8xf32> to vector<16x8xbf16>
    %274 = arith.truncf %267 : vector<16x8xf32> to vector<16x8xbf16>
    %cst_107 = arith.constant dense<0.000000e+00> : vector<16x16xf32>
    %275 = tpu.matmul %273, %274, %cst_107 {dimension_numbers = #tpu.dot_dimension_numbers<[1], [1], [0], [0], [0, 0, 1, 0], [], []>} : vector<16x8xbf16>, vector<16x8xbf16>, vector<16x16xf32> -> vector<16x16xf32>
    %276 = arith.addf %275, %25 : vector<16x16xf32>
    %cst_108 = arith.constant dense<0xFF800000> : vector<16xf32>
    %277 = vector.multi_reduction <maximumf>, %276, %cst_108 [1] : vector<16x16xf32> to vector<16xf32>
    %278 = vector.shape_cast %277 : vector<16xf32> to vector<16x1xf32>
    %279 = vector.broadcast %278 : vector<16x1xf32> to vector<16x16xf32>
    %280 = arith.subf %276, %279 : vector<16x16xf32>
    %281 = math.exp %280 : vector<16x16xf32>
    %cst_109 = arith.constant dense<0.000000e+00> : vector<16xf32>
    %282 = vector.multi_reduction <add>, %281, %cst_109 [1] : vector<16x16xf32> to vector<16xf32>
    %283 = vector.shape_cast %282 : vector<16xf32> to vector<16x1xf32>
    %284 = tpu.reciprocal %283 {approx = true} : vector<16x1xf32> -> vector<16x1xf32>
    %285 = vector.broadcast %284 : vector<16x1xf32> to vector<16x16xf32>
    %286 = arith.mulf %281, %285 : vector<16x16xf32>
    %287 = arith.truncf %286 : vector<16x16xf32> to vector<16x16xbf16>
    %288 = arith.truncf %272 : vector<16x8xf32> to vector<16x8xbf16>
    %cst_110 = arith.constant dense<0.000000e+00> : vector<16x8xf32>
    %289 = tpu.matmul %287, %288, %cst_110 {dimension_numbers = #tpu.dot_dimension_numbers<[1], [0], [0], [1], [0, 0, 1, 1], [], []>} : vector<16x16xbf16>, vector<16x8xbf16>, vector<16x8xf32> -> vector<16x8xf32>
    %290 = vector.extract_strided_slice %256 {offsets = [0, 0], sizes = [8, 32], strides = [1, 1]} : vector<32x32xf32> to vector<8x32xf32>
    %291 = arith.truncf %290 : vector<8x32xf32> to vector<8x32xbf16>
    %292 = arith.truncf %289 : vector<16x8xf32> to vector<16x8xbf16>
    %cst_111 = arith.constant dense<0.000000e+00> : vector<16x32xf32>
    %293 = tpu.matmul %292, %291, %cst_111 {dimension_numbers = #tpu.dot_dimension_numbers<[1], [0], [0], [1], [0, 0, 1, 1], [], []>} : vector<16x8xbf16>, vector<8x32xbf16>, vector<16x32xf32> -> vector<16x32xf32>
    %294 = arith.addf %257, %293 : vector<16x32xf32>
    %c576 = arith.constant 576 : index
    %c0_112 = arith.constant 0 : index
    %295 = vector.load %arg2[%c576, %c0_112] : memref<1024x128xbf16, #tpu.memory_space<vmem>>, vector<32x8xbf16>
    %cst_113 = arith.constant dense<0.000000e+00> : vector<16x8xf32>
    %296 = tpu.matmul %255, %295, %cst_113 {dimension_numbers = #tpu.dot_dimension_numbers<[1], [0], [0], [1], [0, 0, 1, 1], [], []>} : vector<16x32xbf16>, vector<32x8xbf16>, vector<16x8xf32> -> vector<16x8xf32>
    %c88 = arith.constant 88 : index
    %c0_114 = arith.constant 0 : index
    %297 = vector.load %arg3[%c88, %c0_114] : memref<112x128xf32, #tpu.memory_space<vmem>>, vector<1x8xf32>
    %298 = vector.broadcast %297 : vector<1x8xf32> to vector<16x8xf32>
    %299 = arith.addf %296, %298 : vector<16x8xf32>
    %c608 = arith.constant 608 : index
    %c0_115 = arith.constant 0 : index
    %300 = vector.load %arg2[%c608, %c0_115] : memref<1024x128xbf16, #tpu.memory_space<vmem>>, vector<32x8xbf16>
    %cst_116 = arith.constant dense<0.000000e+00> : vector<16x8xf32>
    %301 = tpu.matmul %255, %300, %cst_116 {dimension_numbers = #tpu.dot_dimension_numbers<[1], [0], [0], [1], [0, 0, 1, 1], [], []>} : vector<16x32xbf16>, vector<32x8xbf16>, vector<16x8xf32> -> vector<16x8xf32>
    %c89 = arith.constant 89 : index
    %c0_117 = arith.constant 0 : index
    %302 = vector.load %arg3[%c89, %c0_117] : memref<112x128xf32, #tpu.memory_space<vmem>>, vector<1x8xf32>
    %303 = vector.broadcast %302 : vector<1x8xf32> to vector<16x8xf32>
    %304 = arith.addf %301, %303 : vector<16x8xf32>
    %c640 = arith.constant 640 : index
    %c0_118 = arith.constant 0 : index
    %305 = vector.load %arg2[%c640, %c0_118] : memref<1024x128xbf16, #tpu.memory_space<vmem>>, vector<32x8xbf16>
    %cst_119 = arith.constant dense<0.000000e+00> : vector<16x8xf32>
    %306 = tpu.matmul %255, %305, %cst_119 {dimension_numbers = #tpu.dot_dimension_numbers<[1], [0], [0], [1], [0, 0, 1, 1], [], []>} : vector<16x32xbf16>, vector<32x8xbf16>, vector<16x8xf32> -> vector<16x8xf32>
    %c90 = arith.constant 90 : index
    %c0_120 = arith.constant 0 : index
    %307 = vector.load %arg3[%c90, %c0_120] : memref<112x128xf32, #tpu.memory_space<vmem>>, vector<1x8xf32>
    %308 = vector.broadcast %307 : vector<1x8xf32> to vector<16x8xf32>
    %309 = arith.addf %306, %308 : vector<16x8xf32>
    %310 = arith.truncf %299 : vector<16x8xf32> to vector<16x8xbf16>
    %311 = arith.truncf %304 : vector<16x8xf32> to vector<16x8xbf16>
    %cst_121 = arith.constant dense<0.000000e+00> : vector<16x16xf32>
    %312 = tpu.matmul %310, %311, %cst_121 {dimension_numbers = #tpu.dot_dimension_numbers<[1], [1], [0], [0], [0, 0, 1, 0], [], []>} : vector<16x8xbf16>, vector<16x8xbf16>, vector<16x16xf32> -> vector<16x16xf32>
    %313 = arith.addf %312, %25 : vector<16x16xf32>
    %cst_122 = arith.constant dense<0xFF800000> : vector<16xf32>
    %314 = vector.multi_reduction <maximumf>, %313, %cst_122 [1] : vector<16x16xf32> to vector<16xf32>
    %315 = vector.shape_cast %314 : vector<16xf32> to vector<16x1xf32>
    %316 = vector.broadcast %315 : vector<16x1xf32> to vector<16x16xf32>
    %317 = arith.subf %313, %316 : vector<16x16xf32>
    %318 = math.exp %317 : vector<16x16xf32>
    %cst_123 = arith.constant dense<0.000000e+00> : vector<16xf32>
    %319 = vector.multi_reduction <add>, %318, %cst_123 [1] : vector<16x16xf32> to vector<16xf32>
    %320 = vector.shape_cast %319 : vector<16xf32> to vector<16x1xf32>
    %321 = tpu.reciprocal %320 {approx = true} : vector<16x1xf32> -> vector<16x1xf32>
    %322 = vector.broadcast %321 : vector<16x1xf32> to vector<16x16xf32>
    %323 = arith.mulf %318, %322 : vector<16x16xf32>
    %324 = arith.truncf %323 : vector<16x16xf32> to vector<16x16xbf16>
    %325 = arith.truncf %309 : vector<16x8xf32> to vector<16x8xbf16>
    %cst_124 = arith.constant dense<0.000000e+00> : vector<16x8xf32>
    %326 = tpu.matmul %324, %325, %cst_124 {dimension_numbers = #tpu.dot_dimension_numbers<[1], [0], [0], [1], [0, 0, 1, 1], [], []>} : vector<16x16xbf16>, vector<16x8xbf16>, vector<16x8xf32> -> vector<16x8xf32>
    %327 = vector.extract_strided_slice %256 {offsets = [8, 0], sizes = [8, 32], strides = [1, 1]} : vector<32x32xf32> to vector<8x32xf32>
    %328 = arith.truncf %327 : vector<8x32xf32> to vector<8x32xbf16>
    %329 = arith.truncf %326 : vector<16x8xf32> to vector<16x8xbf16>
    %cst_125 = arith.constant dense<0.000000e+00> : vector<16x32xf32>
    %330 = tpu.matmul %329, %328, %cst_125 {dimension_numbers = #tpu.dot_dimension_numbers<[1], [0], [0], [1], [0, 0, 1, 1], [], []>} : vector<16x8xbf16>, vector<8x32xbf16>, vector<16x32xf32> -> vector<16x32xf32>
    %331 = arith.addf %294, %330 : vector<16x32xf32>
    %c672 = arith.constant 672 : index
    %c0_126 = arith.constant 0 : index
    %332 = vector.load %arg2[%c672, %c0_126] : memref<1024x128xbf16, #tpu.memory_space<vmem>>, vector<32x8xbf16>
    %cst_127 = arith.constant dense<0.000000e+00> : vector<16x8xf32>
    %333 = tpu.matmul %255, %332, %cst_127 {dimension_numbers = #tpu.dot_dimension_numbers<[1], [0], [0], [1], [0, 0, 1, 1], [], []>} : vector<16x32xbf16>, vector<32x8xbf16>, vector<16x8xf32> -> vector<16x8xf32>
    %c91 = arith.constant 91 : index
    %c0_128 = arith.constant 0 : index
    %334 = vector.load %arg3[%c91, %c0_128] : memref<112x128xf32, #tpu.memory_space<vmem>>, vector<1x8xf32>
    %335 = vector.broadcast %334 : vector<1x8xf32> to vector<16x8xf32>
    %336 = arith.addf %333, %335 : vector<16x8xf32>
    %c704 = arith.constant 704 : index
    %c0_129 = arith.constant 0 : index
    %337 = vector.load %arg2[%c704, %c0_129] : memref<1024x128xbf16, #tpu.memory_space<vmem>>, vector<32x8xbf16>
    %cst_130 = arith.constant dense<0.000000e+00> : vector<16x8xf32>
    %338 = tpu.matmul %255, %337, %cst_130 {dimension_numbers = #tpu.dot_dimension_numbers<[1], [0], [0], [1], [0, 0, 1, 1], [], []>} : vector<16x32xbf16>, vector<32x8xbf16>, vector<16x8xf32> -> vector<16x8xf32>
    %c92 = arith.constant 92 : index
    %c0_131 = arith.constant 0 : index
    %339 = vector.load %arg3[%c92, %c0_131] : memref<112x128xf32, #tpu.memory_space<vmem>>, vector<1x8xf32>
    %340 = vector.broadcast %339 : vector<1x8xf32> to vector<16x8xf32>
    %341 = arith.addf %338, %340 : vector<16x8xf32>
    %c736 = arith.constant 736 : index
    %c0_132 = arith.constant 0 : index
    %342 = vector.load %arg2[%c736, %c0_132] : memref<1024x128xbf16, #tpu.memory_space<vmem>>, vector<32x8xbf16>
    %cst_133 = arith.constant dense<0.000000e+00> : vector<16x8xf32>
    %343 = tpu.matmul %255, %342, %cst_133 {dimension_numbers = #tpu.dot_dimension_numbers<[1], [0], [0], [1], [0, 0, 1, 1], [], []>} : vector<16x32xbf16>, vector<32x8xbf16>, vector<16x8xf32> -> vector<16x8xf32>
    %c93 = arith.constant 93 : index
    %c0_134 = arith.constant 0 : index
    %344 = vector.load %arg3[%c93, %c0_134] : memref<112x128xf32, #tpu.memory_space<vmem>>, vector<1x8xf32>
    %345 = vector.broadcast %344 : vector<1x8xf32> to vector<16x8xf32>
    %346 = arith.addf %343, %345 : vector<16x8xf32>
    %347 = arith.truncf %336 : vector<16x8xf32> to vector<16x8xbf16>
    %348 = arith.truncf %341 : vector<16x8xf32> to vector<16x8xbf16>
    %cst_135 = arith.constant dense<0.000000e+00> : vector<16x16xf32>
    %349 = tpu.matmul %347, %348, %cst_135 {dimension_numbers = #tpu.dot_dimension_numbers<[1], [1], [0], [0], [0, 0, 1, 0], [], []>} : vector<16x8xbf16>, vector<16x8xbf16>, vector<16x16xf32> -> vector<16x16xf32>
    %350 = arith.addf %349, %25 : vector<16x16xf32>
    %cst_136 = arith.constant dense<0xFF800000> : vector<16xf32>
    %351 = vector.multi_reduction <maximumf>, %350, %cst_136 [1] : vector<16x16xf32> to vector<16xf32>
    %352 = vector.shape_cast %351 : vector<16xf32> to vector<16x1xf32>
    %353 = vector.broadcast %352 : vector<16x1xf32> to vector<16x16xf32>
    %354 = arith.subf %350, %353 : vector<16x16xf32>
    %355 = math.exp %354 : vector<16x16xf32>
    %cst_137 = arith.constant dense<0.000000e+00> : vector<16xf32>
    %356 = vector.multi_reduction <add>, %355, %cst_137 [1] : vector<16x16xf32> to vector<16xf32>
    %357 = vector.shape_cast %356 : vector<16xf32> to vector<16x1xf32>
    %358 = tpu.reciprocal %357 {approx = true} : vector<16x1xf32> -> vector<16x1xf32>
    %359 = vector.broadcast %358 : vector<16x1xf32> to vector<16x16xf32>
    %360 = arith.mulf %355, %359 : vector<16x16xf32>
    %361 = arith.truncf %360 : vector<16x16xf32> to vector<16x16xbf16>
    %362 = arith.truncf %346 : vector<16x8xf32> to vector<16x8xbf16>
    %cst_138 = arith.constant dense<0.000000e+00> : vector<16x8xf32>
    %363 = tpu.matmul %361, %362, %cst_138 {dimension_numbers = #tpu.dot_dimension_numbers<[1], [0], [0], [1], [0, 0, 1, 1], [], []>} : vector<16x16xbf16>, vector<16x8xbf16>, vector<16x8xf32> -> vector<16x8xf32>
    %364 = vector.extract_strided_slice %256 {offsets = [16, 0], sizes = [8, 32], strides = [1, 1]} : vector<32x32xf32> to vector<8x32xf32>
    %365 = arith.truncf %364 : vector<8x32xf32> to vector<8x32xbf16>
    %366 = arith.truncf %363 : vector<16x8xf32> to vector<16x8xbf16>
    %cst_139 = arith.constant dense<0.000000e+00> : vector<16x32xf32>
    %367 = tpu.matmul %366, %365, %cst_139 {dimension_numbers = #tpu.dot_dimension_numbers<[1], [0], [0], [1], [0, 0, 1, 1], [], []>} : vector<16x8xbf16>, vector<8x32xbf16>, vector<16x32xf32> -> vector<16x32xf32>
    %368 = arith.addf %331, %367 : vector<16x32xf32>
    %c768 = arith.constant 768 : index
    %c0_140 = arith.constant 0 : index
    %369 = vector.load %arg2[%c768, %c0_140] : memref<1024x128xbf16, #tpu.memory_space<vmem>>, vector<32x8xbf16>
    %cst_141 = arith.constant dense<0.000000e+00> : vector<16x8xf32>
    %370 = tpu.matmul %255, %369, %cst_141 {dimension_numbers = #tpu.dot_dimension_numbers<[1], [0], [0], [1], [0, 0, 1, 1], [], []>} : vector<16x32xbf16>, vector<32x8xbf16>, vector<16x8xf32> -> vector<16x8xf32>
    %c94 = arith.constant 94 : index
    %c0_142 = arith.constant 0 : index
    %371 = vector.load %arg3[%c94, %c0_142] : memref<112x128xf32, #tpu.memory_space<vmem>>, vector<1x8xf32>
    %372 = vector.broadcast %371 : vector<1x8xf32> to vector<16x8xf32>
    %373 = arith.addf %370, %372 : vector<16x8xf32>
    %c800 = arith.constant 800 : index
    %c0_143 = arith.constant 0 : index
    %374 = vector.load %arg2[%c800, %c0_143] : memref<1024x128xbf16, #tpu.memory_space<vmem>>, vector<32x8xbf16>
    %cst_144 = arith.constant dense<0.000000e+00> : vector<16x8xf32>
    %375 = tpu.matmul %255, %374, %cst_144 {dimension_numbers = #tpu.dot_dimension_numbers<[1], [0], [0], [1], [0, 0, 1, 1], [], []>} : vector<16x32xbf16>, vector<32x8xbf16>, vector<16x8xf32> -> vector<16x8xf32>
    %c95 = arith.constant 95 : index
    %c0_145 = arith.constant 0 : index
    %376 = vector.load %arg3[%c95, %c0_145] : memref<112x128xf32, #tpu.memory_space<vmem>>, vector<1x8xf32>
    %377 = vector.broadcast %376 : vector<1x8xf32> to vector<16x8xf32>
    %378 = arith.addf %375, %377 : vector<16x8xf32>
    %c832 = arith.constant 832 : index
    %c0_146 = arith.constant 0 : index
    %379 = vector.load %arg2[%c832, %c0_146] : memref<1024x128xbf16, #tpu.memory_space<vmem>>, vector<32x8xbf16>
    %cst_147 = arith.constant dense<0.000000e+00> : vector<16x8xf32>
    %380 = tpu.matmul %255, %379, %cst_147 {dimension_numbers = #tpu.dot_dimension_numbers<[1], [0], [0], [1], [0, 0, 1, 1], [], []>} : vector<16x32xbf16>, vector<32x8xbf16>, vector<16x8xf32> -> vector<16x8xf32>
    %c96_148 = arith.constant 96 : index
    %c0_149 = arith.constant 0 : index
    %381 = vector.load %arg3[%c96_148, %c0_149] : memref<112x128xf32, #tpu.memory_space<vmem>>, vector<1x8xf32>
    %382 = vector.broadcast %381 : vector<1x8xf32> to vector<16x8xf32>
    %383 = arith.addf %380, %382 : vector<16x8xf32>
    %384 = arith.truncf %373 : vector<16x8xf32> to vector<16x8xbf16>
    %385 = arith.truncf %378 : vector<16x8xf32> to vector<16x8xbf16>
    %cst_150 = arith.constant dense<0.000000e+00> : vector<16x16xf32>
    %386 = tpu.matmul %384, %385, %cst_150 {dimension_numbers = #tpu.dot_dimension_numbers<[1], [1], [0], [0], [0, 0, 1, 0], [], []>} : vector<16x8xbf16>, vector<16x8xbf16>, vector<16x16xf32> -> vector<16x16xf32>
    %387 = arith.addf %386, %25 : vector<16x16xf32>
    %cst_151 = arith.constant dense<0xFF800000> : vector<16xf32>
    %388 = vector.multi_reduction <maximumf>, %387, %cst_151 [1] : vector<16x16xf32> to vector<16xf32>
    %389 = vector.shape_cast %388 : vector<16xf32> to vector<16x1xf32>
    %390 = vector.broadcast %389 : vector<16x1xf32> to vector<16x16xf32>
    %391 = arith.subf %387, %390 : vector<16x16xf32>
    %392 = math.exp %391 : vector<16x16xf32>
    %cst_152 = arith.constant dense<0.000000e+00> : vector<16xf32>
    %393 = vector.multi_reduction <add>, %392, %cst_152 [1] : vector<16x16xf32> to vector<16xf32>
    %394 = vector.shape_cast %393 : vector<16xf32> to vector<16x1xf32>
    %395 = tpu.reciprocal %394 {approx = true} : vector<16x1xf32> -> vector<16x1xf32>
    %396 = vector.broadcast %395 : vector<16x1xf32> to vector<16x16xf32>
    %397 = arith.mulf %392, %396 : vector<16x16xf32>
    %398 = arith.truncf %397 : vector<16x16xf32> to vector<16x16xbf16>
    %399 = arith.truncf %383 : vector<16x8xf32> to vector<16x8xbf16>
    %cst_153 = arith.constant dense<0.000000e+00> : vector<16x8xf32>
    %400 = tpu.matmul %398, %399, %cst_153 {dimension_numbers = #tpu.dot_dimension_numbers<[1], [0], [0], [1], [0, 0, 1, 1], [], []>} : vector<16x16xbf16>, vector<16x8xbf16>, vector<16x8xf32> -> vector<16x8xf32>
    %401 = vector.extract_strided_slice %256 {offsets = [24, 0], sizes = [8, 32], strides = [1, 1]} : vector<32x32xf32> to vector<8x32xf32>
    %402 = arith.truncf %401 : vector<8x32xf32> to vector<8x32xbf16>
    %403 = arith.truncf %400 : vector<16x8xf32> to vector<16x8xbf16>
    %cst_154 = arith.constant dense<0.000000e+00> : vector<16x32xf32>
    %404 = tpu.matmul %403, %402, %cst_154 {dimension_numbers = #tpu.dot_dimension_numbers<[1], [0], [0], [1], [0, 0, 1, 1], [], []>} : vector<16x8xbf16>, vector<8x32xbf16>, vector<16x32xf32> -> vector<16x32xf32>
    %405 = arith.addf %368, %404 : vector<16x32xf32>
    %c97 = arith.constant 97 : index
    %c0_155 = arith.constant 0 : index
    %406 = vector.load %arg3[%c97, %c0_155] : memref<112x128xf32, #tpu.memory_space<vmem>>, vector<1x32xf32>
    %407 = vector.broadcast %406 : vector<1x32xf32> to vector<16x32xf32>
    %408 = arith.addf %405, %407 : vector<16x32xf32>
    %409 = arith.addf %408, %254 : vector<16x32xf32>
    %c98 = arith.constant 98 : index
    %c0_156 = arith.constant 0 : index
    %410 = vector.load %arg3[%c98, %c0_156] : memref<112x128xf32, #tpu.memory_space<vmem>>, vector<1x32xf32>
    %c99 = arith.constant 99 : index
    %c0_157 = arith.constant 0 : index
    %411 = vector.load %arg3[%c99, %c0_157] : memref<112x128xf32, #tpu.memory_space<vmem>>, vector<1x32xf32>
    %cst_158 = arith.constant dense<0.000000e+00> : vector<16xf32>
    %412 = vector.multi_reduction <add>, %409, %cst_158 [1] : vector<16x32xf32> to vector<16xf32>
    %413 = vector.shape_cast %412 : vector<16xf32> to vector<16x1xf32>
    %cst_159 = arith.constant 3.200000e+01 : f32
    %414 = vector.broadcast %cst_159 : f32 to vector<16x1xf32>
    %415 = arith.divf %413, %414 : vector<16x1xf32>
    %416 = vector.broadcast %415 : vector<16x1xf32> to vector<16x32xf32>
    %417 = arith.subf %409, %416 : vector<16x32xf32>
    %418 = arith.mulf %417, %417 : vector<16x32xf32>
    %cst_160 = arith.constant dense<0.000000e+00> : vector<16xf32>
    %419 = vector.multi_reduction <add>, %418, %cst_160 [1] : vector<16x32xf32> to vector<16xf32>
    %420 = vector.shape_cast %419 : vector<16xf32> to vector<16x1xf32>
    %cst_161 = arith.constant 3.200000e+01 : f32
    %421 = vector.broadcast %cst_161 : f32 to vector<16x1xf32>
    %422 = arith.divf %420, %421 : vector<16x1xf32>
    %423 = vector.broadcast %415 : vector<16x1xf32> to vector<16x32xf32>
    %424 = arith.subf %409, %423 : vector<16x32xf32>
    %cst_162 = arith.constant 9.99999996E-13 : f32
    %425 = vector.broadcast %cst_162 : f32 to vector<16x1xf32>
    %426 = arith.addf %422, %425 : vector<16x1xf32>
    %427 = math.rsqrt %426 : vector<16x1xf32>
    %428 = vector.broadcast %427 : vector<16x1xf32> to vector<16x32xf32>
    %429 = arith.mulf %424, %428 : vector<16x32xf32>
    %430 = vector.broadcast %410 : vector<1x32xf32> to vector<16x32xf32>
    %431 = arith.mulf %429, %430 : vector<16x32xf32>
    %432 = vector.broadcast %411 : vector<1x32xf32> to vector<16x32xf32>
    %433 = arith.addf %431, %432 : vector<16x32xf32>
    %434 = arith.truncf %433 : vector<16x32xf32> to vector<16x32xbf16>
    %c864 = arith.constant 864 : index
    %c0_163 = arith.constant 0 : index
    %435 = vector.load %arg2[%c864, %c0_163] : memref<1024x128xbf16, #tpu.memory_space<vmem>>, vector<32x64xbf16>
    %cst_164 = arith.constant dense<0.000000e+00> : vector<16x64xf32>
    %436 = tpu.matmul %434, %435, %cst_164 {dimension_numbers = #tpu.dot_dimension_numbers<[1], [0], [0], [1], [0, 0, 1, 1], [], []>} : vector<16x32xbf16>, vector<32x64xbf16>, vector<16x64xf32> -> vector<16x64xf32>
    %c100 = arith.constant 100 : index
    %c0_165 = arith.constant 0 : index
    %437 = vector.load %arg3[%c100, %c0_165] : memref<112x128xf32, #tpu.memory_space<vmem>>, vector<1x64xf32>
    %438 = vector.broadcast %437 : vector<1x64xf32> to vector<16x64xf32>
    %439 = arith.addf %436, %438 : vector<16x64xf32>
    %440 = arith.mulf %439, %439 : vector<16x64xf32>
    %441 = arith.mulf %439, %440 : vector<16x64xf32>
    %cst_166 = arith.constant 4.471500e-02 : f32
    %442 = vector.broadcast %cst_166 : f32 to vector<16x64xf32>
    %443 = arith.mulf %442, %441 : vector<16x64xf32>
    %444 = arith.addf %439, %443 : vector<16x64xf32>
    %cst_167 = arith.constant 0.797884583 : f32
    %445 = vector.broadcast %cst_167 : f32 to vector<16x64xf32>
    %446 = arith.mulf %445, %444 : vector<16x64xf32>
    %447 = math.tanh %446 : vector<16x64xf32>
    %cst_168 = arith.constant 1.000000e+00 : f32
    %448 = vector.broadcast %cst_168 : f32 to vector<16x64xf32>
    %449 = arith.addf %448, %447 : vector<16x64xf32>
    %cst_169 = arith.constant 5.000000e-01 : f32
    %450 = vector.broadcast %cst_169 : f32 to vector<16x64xf32>
    %451 = arith.mulf %450, %449 : vector<16x64xf32>
    %452 = arith.mulf %439, %451 : vector<16x64xf32>
    %453 = arith.truncf %452 : vector<16x64xf32> to vector<16x64xbf16>
    %c896 = arith.constant 896 : index
    %c0_170 = arith.constant 0 : index
    %454 = vector.load %arg2[%c896, %c0_170] : memref<1024x128xbf16, #tpu.memory_space<vmem>>, vector<64x32xbf16>
    %cst_171 = arith.constant dense<0.000000e+00> : vector<16x32xf32>
    %455 = tpu.matmul %453, %454, %cst_171 {dimension_numbers = #tpu.dot_dimension_numbers<[1], [0], [0], [1], [0, 0, 1, 1], [], []>} : vector<16x64xbf16>, vector<64x32xbf16>, vector<16x32xf32> -> vector<16x32xf32>
    %c101 = arith.constant 101 : index
    %c0_172 = arith.constant 0 : index
    %456 = vector.load %arg3[%c101, %c0_172] : memref<112x128xf32, #tpu.memory_space<vmem>>, vector<1x32xf32>
    %457 = vector.broadcast %456 : vector<1x32xf32> to vector<16x32xf32>
    %458 = arith.addf %455, %457 : vector<16x32xf32>
    %459 = arith.addf %458, %433 : vector<16x32xf32>
    %c102 = arith.constant 102 : index
    %c0_173 = arith.constant 0 : index
    %460 = vector.load %arg3[%c102, %c0_173] : memref<112x128xf32, #tpu.memory_space<vmem>>, vector<1x32xf32>
    %c103 = arith.constant 103 : index
    %c0_174 = arith.constant 0 : index
    %461 = vector.load %arg3[%c103, %c0_174] : memref<112x128xf32, #tpu.memory_space<vmem>>, vector<1x32xf32>
    %cst_175 = arith.constant dense<0.000000e+00> : vector<16xf32>
    %462 = vector.multi_reduction <add>, %459, %cst_175 [1] : vector<16x32xf32> to vector<16xf32>
    %463 = vector.shape_cast %462 : vector<16xf32> to vector<16x1xf32>
    %cst_176 = arith.constant 3.200000e+01 : f32
    %464 = vector.broadcast %cst_176 : f32 to vector<16x1xf32>
    %465 = arith.divf %463, %464 : vector<16x1xf32>
    %466 = vector.broadcast %465 : vector<16x1xf32> to vector<16x32xf32>
    %467 = arith.subf %459, %466 : vector<16x32xf32>
    %468 = arith.mulf %467, %467 : vector<16x32xf32>
    %cst_177 = arith.constant dense<0.000000e+00> : vector<16xf32>
    %469 = vector.multi_reduction <add>, %468, %cst_177 [1] : vector<16x32xf32> to vector<16xf32>
    %470 = vector.shape_cast %469 : vector<16xf32> to vector<16x1xf32>
    %cst_178 = arith.constant 3.200000e+01 : f32
    %471 = vector.broadcast %cst_178 : f32 to vector<16x1xf32>
    %472 = arith.divf %470, %471 : vector<16x1xf32>
    %473 = vector.broadcast %465 : vector<16x1xf32> to vector<16x32xf32>
    %474 = arith.subf %459, %473 : vector<16x32xf32>
    %cst_179 = arith.constant 9.99999996E-13 : f32
    %475 = vector.broadcast %cst_179 : f32 to vector<16x1xf32>
    %476 = arith.addf %472, %475 : vector<16x1xf32>
    %477 = math.rsqrt %476 : vector<16x1xf32>
    %478 = vector.broadcast %477 : vector<16x1xf32> to vector<16x32xf32>
    %479 = arith.mulf %474, %478 : vector<16x32xf32>
    %480 = vector.broadcast %460 : vector<1x32xf32> to vector<16x32xf32>
    %481 = arith.mulf %479, %480 : vector<16x32xf32>
    %482 = vector.broadcast %461 : vector<1x32xf32> to vector<16x32xf32>
    %483 = arith.addf %481, %482 : vector<16x32xf32>
    %484 = arith.truncf %483 : vector<16x32xf32> to vector<16x32xbf16>
    %c960 = arith.constant 960 : index
    %c0_180 = arith.constant 0 : index
    %485 = vector.load %arg2[%c960, %c0_180] : memref<1024x128xbf16, #tpu.memory_space<vmem>>, vector<32x64xbf16>
    %cst_181 = arith.constant dense<0.000000e+00> : vector<16x64xf32>
    %486 = tpu.matmul %484, %485, %cst_181 {dimension_numbers = #tpu.dot_dimension_numbers<[1], [0], [0], [1], [0, 0, 1, 1], [], []>} : vector<16x32xbf16>, vector<32x64xbf16>, vector<16x64xf32> -> vector<16x64xf32>
    %c104 = arith.constant 104 : index
    %c0_182 = arith.constant 0 : index
    %487 = vector.load %arg3[%c104, %c0_182] : memref<112x128xf32, #tpu.memory_space<vmem>>, vector<1x64xf32>
    %488 = vector.broadcast %487 : vector<1x64xf32> to vector<16x64xf32>
    %489 = arith.addf %486, %488 : vector<16x64xf32>
    %c992 = arith.constant 992 : index
    %c0_183 = arith.constant 0 : index
    %490 = vector.load %arg2[%c992, %c0_183] : memref<1024x128xbf16, #tpu.memory_space<vmem>>, vector<16x64xbf16>
    %cst_184 = arith.constant 0.000000e+00 : f32
    %491 = vector.broadcast %cst_184 : f32 to vector<2x16xf32>
    %cst_185 = arith.constant 0.000000e+00 : f32
    %492 = vector.broadcast %cst_185 : f32 to vector<2x16xf32>
    %493 = vector.extract_strided_slice %489 {offsets = [0, 0], sizes = [1, 64], strides = [1, 1]} : vector<16x64xf32> to vector<1x64xf32>
    %494 = vector.extract_strided_slice %489 {offsets = [8, 0], sizes = [1, 64], strides = [1, 1]} : vector<16x64xf32> to vector<1x64xf32>
    %495 = tpu.concatenate %493, %494 in 0 : vector<1x64xf32>, vector<1x64xf32> -> vector<2x64xf32>
    %496 = arith.truncf %491 : vector<2x16xf32> to vector<2x16xbf16>
    %cst_186 = arith.constant dense<0.000000e+00> : vector<2x64xf32>
    %497 = tpu.matmul %496, %490, %cst_186 {dimension_numbers = #tpu.dot_dimension_numbers<[1], [0], [0], [1], [0, 0, 1, 1], [], []>} : vector<2x16xbf16>, vector<16x64xbf16>, vector<2x64xf32> -> vector<2x64xf32>
    %498 = arith.addf %495, %497 : vector<2x64xf32>
    %499 = vector.extract_strided_slice %498 {offsets = [0, 0], sizes = [2, 48], strides = [1, 1]} : vector<2x64xf32> to vector<2x48xf32>
    %500 = arith.negf %499 : vector<2x48xf32>
    %501 = math.exp %500 : vector<2x48xf32>
    %cst_187 = arith.constant 1.000000e+00 : f32
    %502 = vector.broadcast %cst_187 : f32 to vector<2x48xf32>
    %503 = arith.addf %502, %501 : vector<2x48xf32>
    %504 = arith.divf %502, %503 : vector<2x48xf32>
    %505 = vector.extract_strided_slice %504 {offsets = [0, 0], sizes = [2, 16], strides = [1, 1]} : vector<2x48xf32> to vector<2x16xf32>
    %506 = vector.extract_strided_slice %504 {offsets = [0, 16], sizes = [2, 16], strides = [1, 1]} : vector<2x48xf32> to vector<2x16xf32>
    %507 = vector.extract_strided_slice %504 {offsets = [0, 32], sizes = [2, 16], strides = [1, 1]} : vector<2x48xf32> to vector<2x16xf32>
    %508 = vector.extract_strided_slice %498 {offsets = [0, 48], sizes = [2, 16], strides = [1, 1]} : vector<2x64xf32> to vector<2x16xf32>
    %509 = math.tanh %508 : vector<2x16xf32>
    %510 = arith.mulf %506, %492 : vector<2x16xf32>
    %511 = arith.mulf %505, %509 : vector<2x16xf32>
    %512 = arith.addf %510, %511 : vector<2x16xf32>
    %513 = math.tanh %512 : vector<2x16xf32>
    %514 = arith.mulf %507, %513 : vector<2x16xf32>
    %515 = vector.extract_strided_slice %489 {offsets = [1, 0], sizes = [1, 64], strides = [1, 1]} : vector<16x64xf32> to vector<1x64xf32>
    %516 = vector.extract_strided_slice %489 {offsets = [9, 0], sizes = [1, 64], strides = [1, 1]} : vector<16x64xf32> to vector<1x64xf32>
    %517 = tpu.concatenate %515, %516 in 0 : vector<1x64xf32>, vector<1x64xf32> -> vector<2x64xf32>
    %518 = arith.truncf %514 : vector<2x16xf32> to vector<2x16xbf16>
    %cst_188 = arith.constant dense<0.000000e+00> : vector<2x64xf32>
    %519 = tpu.matmul %518, %490, %cst_188 {dimension_numbers = #tpu.dot_dimension_numbers<[1], [0], [0], [1], [0, 0, 1, 1], [], []>} : vector<2x16xbf16>, vector<16x64xbf16>, vector<2x64xf32> -> vector<2x64xf32>
    %520 = arith.addf %517, %519 : vector<2x64xf32>
    %521 = vector.extract_strided_slice %520 {offsets = [0, 0], sizes = [2, 48], strides = [1, 1]} : vector<2x64xf32> to vector<2x48xf32>
    %522 = arith.negf %521 : vector<2x48xf32>
    %523 = math.exp %522 : vector<2x48xf32>
    %cst_189 = arith.constant 1.000000e+00 : f32
    %524 = vector.broadcast %cst_189 : f32 to vector<2x48xf32>
    %525 = arith.addf %524, %523 : vector<2x48xf32>
    %526 = arith.divf %524, %525 : vector<2x48xf32>
    %527 = vector.extract_strided_slice %526 {offsets = [0, 0], sizes = [2, 16], strides = [1, 1]} : vector<2x48xf32> to vector<2x16xf32>
    %528 = vector.extract_strided_slice %526 {offsets = [0, 16], sizes = [2, 16], strides = [1, 1]} : vector<2x48xf32> to vector<2x16xf32>
    %529 = vector.extract_strided_slice %526 {offsets = [0, 32], sizes = [2, 16], strides = [1, 1]} : vector<2x48xf32> to vector<2x16xf32>
    %530 = vector.extract_strided_slice %520 {offsets = [0, 48], sizes = [2, 16], strides = [1, 1]} : vector<2x64xf32> to vector<2x16xf32>
    %531 = math.tanh %530 : vector<2x16xf32>
    %532 = arith.mulf %528, %512 : vector<2x16xf32>
    %533 = arith.mulf %527, %531 : vector<2x16xf32>
    %534 = arith.addf %532, %533 : vector<2x16xf32>
    %535 = math.tanh %534 : vector<2x16xf32>
    %536 = arith.mulf %529, %535 : vector<2x16xf32>
    %537 = vector.extract_strided_slice %489 {offsets = [2, 0], sizes = [1, 64], strides = [1, 1]} : vector<16x64xf32> to vector<1x64xf32>
    %538 = vector.extract_strided_slice %489 {offsets = [10, 0], sizes = [1, 64], strides = [1, 1]} : vector<16x64xf32> to vector<1x64xf32>
    %539 = tpu.concatenate %537, %538 in 0 : vector<1x64xf32>, vector<1x64xf32> -> vector<2x64xf32>
    %540 = arith.truncf %536 : vector<2x16xf32> to vector<2x16xbf16>
    %cst_190 = arith.constant dense<0.000000e+00> : vector<2x64xf32>
    %541 = tpu.matmul %540, %490, %cst_190 {dimension_numbers = #tpu.dot_dimension_numbers<[1], [0], [0], [1], [0, 0, 1, 1], [], []>} : vector<2x16xbf16>, vector<16x64xbf16>, vector<2x64xf32> -> vector<2x64xf32>
    %542 = arith.addf %539, %541 : vector<2x64xf32>
    %543 = vector.extract_strided_slice %542 {offsets = [0, 0], sizes = [2, 48], strides = [1, 1]} : vector<2x64xf32> to vector<2x48xf32>
    %544 = arith.negf %543 : vector<2x48xf32>
    %545 = math.exp %544 : vector<2x48xf32>
    %cst_191 = arith.constant 1.000000e+00 : f32
    %546 = vector.broadcast %cst_191 : f32 to vector<2x48xf32>
    %547 = arith.addf %546, %545 : vector<2x48xf32>
    %548 = arith.divf %546, %547 : vector<2x48xf32>
    %549 = vector.extract_strided_slice %548 {offsets = [0, 0], sizes = [2, 16], strides = [1, 1]} : vector<2x48xf32> to vector<2x16xf32>
    %550 = vector.extract_strided_slice %548 {offsets = [0, 16], sizes = [2, 16], strides = [1, 1]} : vector<2x48xf32> to vector<2x16xf32>
    %551 = vector.extract_strided_slice %548 {offsets = [0, 32], sizes = [2, 16], strides = [1, 1]} : vector<2x48xf32> to vector<2x16xf32>
    %552 = vector.extract_strided_slice %542 {offsets = [0, 48], sizes = [2, 16], strides = [1, 1]} : vector<2x64xf32> to vector<2x16xf32>
    %553 = math.tanh %552 : vector<2x16xf32>
    %554 = arith.mulf %550, %534 : vector<2x16xf32>
    %555 = arith.mulf %549, %553 : vector<2x16xf32>
    %556 = arith.addf %554, %555 : vector<2x16xf32>
    %557 = math.tanh %556 : vector<2x16xf32>
    %558 = arith.mulf %551, %557 : vector<2x16xf32>
    %559 = vector.extract_strided_slice %489 {offsets = [3, 0], sizes = [1, 64], strides = [1, 1]} : vector<16x64xf32> to vector<1x64xf32>
    %560 = vector.extract_strided_slice %489 {offsets = [11, 0], sizes = [1, 64], strides = [1, 1]} : vector<16x64xf32> to vector<1x64xf32>
    %561 = tpu.concatenate %559, %560 in 0 : vector<1x64xf32>, vector<1x64xf32> -> vector<2x64xf32>
    %562 = arith.truncf %558 : vector<2x16xf32> to vector<2x16xbf16>
    %cst_192 = arith.constant dense<0.000000e+00> : vector<2x64xf32>
    %563 = tpu.matmul %562, %490, %cst_192 {dimension_numbers = #tpu.dot_dimension_numbers<[1], [0], [0], [1], [0, 0, 1, 1], [], []>} : vector<2x16xbf16>, vector<16x64xbf16>, vector<2x64xf32> -> vector<2x64xf32>
    %564 = arith.addf %561, %563 : vector<2x64xf32>
    %565 = vector.extract_strided_slice %564 {offsets = [0, 0], sizes = [2, 48], strides = [1, 1]} : vector<2x64xf32> to vector<2x48xf32>
    %566 = arith.negf %565 : vector<2x48xf32>
    %567 = math.exp %566 : vector<2x48xf32>
    %cst_193 = arith.constant 1.000000e+00 : f32
    %568 = vector.broadcast %cst_193 : f32 to vector<2x48xf32>
    %569 = arith.addf %568, %567 : vector<2x48xf32>
    %570 = arith.divf %568, %569 : vector<2x48xf32>
    %571 = vector.extract_strided_slice %570 {offsets = [0, 0], sizes = [2, 16], strides = [1, 1]} : vector<2x48xf32> to vector<2x16xf32>
    %572 = vector.extract_strided_slice %570 {offsets = [0, 16], sizes = [2, 16], strides = [1, 1]} : vector<2x48xf32> to vector<2x16xf32>
    %573 = vector.extract_strided_slice %570 {offsets = [0, 32], sizes = [2, 16], strides = [1, 1]} : vector<2x48xf32> to vector<2x16xf32>
    %574 = vector.extract_strided_slice %564 {offsets = [0, 48], sizes = [2, 16], strides = [1, 1]} : vector<2x64xf32> to vector<2x16xf32>
    %575 = math.tanh %574 : vector<2x16xf32>
    %576 = arith.mulf %572, %556 : vector<2x16xf32>
    %577 = arith.mulf %571, %575 : vector<2x16xf32>
    %578 = arith.addf %576, %577 : vector<2x16xf32>
    %579 = math.tanh %578 : vector<2x16xf32>
    %580 = arith.mulf %573, %579 : vector<2x16xf32>
    %581 = vector.extract_strided_slice %489 {offsets = [4, 0], sizes = [1, 64], strides = [1, 1]} : vector<16x64xf32> to vector<1x64xf32>
    %582 = vector.extract_strided_slice %489 {offsets = [12, 0], sizes = [1, 64], strides = [1, 1]} : vector<16x64xf32> to vector<1x64xf32>
    %583 = tpu.concatenate %581, %582 in 0 : vector<1x64xf32>, vector<1x64xf32> -> vector<2x64xf32>
    %584 = arith.truncf %580 : vector<2x16xf32> to vector<2x16xbf16>
    %cst_194 = arith.constant dense<0.000000e+00> : vector<2x64xf32>
    %585 = tpu.matmul %584, %490, %cst_194 {dimension_numbers = #tpu.dot_dimension_numbers<[1], [0], [0], [1], [0, 0, 1, 1], [], []>} : vector<2x16xbf16>, vector<16x64xbf16>, vector<2x64xf32> -> vector<2x64xf32>
    %586 = arith.addf %583, %585 : vector<2x64xf32>
    %587 = vector.extract_strided_slice %586 {offsets = [0, 0], sizes = [2, 48], strides = [1, 1]} : vector<2x64xf32> to vector<2x48xf32>
    %588 = arith.negf %587 : vector<2x48xf32>
    %589 = math.exp %588 : vector<2x48xf32>
    %cst_195 = arith.constant 1.000000e+00 : f32
    %590 = vector.broadcast %cst_195 : f32 to vector<2x48xf32>
    %591 = arith.addf %590, %589 : vector<2x48xf32>
    %592 = arith.divf %590, %591 : vector<2x48xf32>
    %593 = vector.extract_strided_slice %592 {offsets = [0, 0], sizes = [2, 16], strides = [1, 1]} : vector<2x48xf32> to vector<2x16xf32>
    %594 = vector.extract_strided_slice %592 {offsets = [0, 16], sizes = [2, 16], strides = [1, 1]} : vector<2x48xf32> to vector<2x16xf32>
    %595 = vector.extract_strided_slice %592 {offsets = [0, 32], sizes = [2, 16], strides = [1, 1]} : vector<2x48xf32> to vector<2x16xf32>
    %596 = vector.extract_strided_slice %586 {offsets = [0, 48], sizes = [2, 16], strides = [1, 1]} : vector<2x64xf32> to vector<2x16xf32>
    %597 = math.tanh %596 : vector<2x16xf32>
    %598 = arith.mulf %594, %578 : vector<2x16xf32>
    %599 = arith.mulf %593, %597 : vector<2x16xf32>
    %600 = arith.addf %598, %599 : vector<2x16xf32>
    %601 = math.tanh %600 : vector<2x16xf32>
    %602 = arith.mulf %595, %601 : vector<2x16xf32>
    %603 = vector.extract_strided_slice %489 {offsets = [5, 0], sizes = [1, 64], strides = [1, 1]} : vector<16x64xf32> to vector<1x64xf32>
    %604 = vector.extract_strided_slice %489 {offsets = [13, 0], sizes = [1, 64], strides = [1, 1]} : vector<16x64xf32> to vector<1x64xf32>
    %605 = tpu.concatenate %603, %604 in 0 : vector<1x64xf32>, vector<1x64xf32> -> vector<2x64xf32>
    %606 = arith.truncf %602 : vector<2x16xf32> to vector<2x16xbf16>
    %cst_196 = arith.constant dense<0.000000e+00> : vector<2x64xf32>
    %607 = tpu.matmul %606, %490, %cst_196 {dimension_numbers = #tpu.dot_dimension_numbers<[1], [0], [0], [1], [0, 0, 1, 1], [], []>} : vector<2x16xbf16>, vector<16x64xbf16>, vector<2x64xf32> -> vector<2x64xf32>
    %608 = arith.addf %605, %607 : vector<2x64xf32>
    %609 = vector.extract_strided_slice %608 {offsets = [0, 0], sizes = [2, 48], strides = [1, 1]} : vector<2x64xf32> to vector<2x48xf32>
    %610 = arith.negf %609 : vector<2x48xf32>
    %611 = math.exp %610 : vector<2x48xf32>
    %cst_197 = arith.constant 1.000000e+00 : f32
    %612 = vector.broadcast %cst_197 : f32 to vector<2x48xf32>
    %613 = arith.addf %612, %611 : vector<2x48xf32>
    %614 = arith.divf %612, %613 : vector<2x48xf32>
    %615 = vector.extract_strided_slice %614 {offsets = [0, 0], sizes = [2, 16], strides = [1, 1]} : vector<2x48xf32> to vector<2x16xf32>
    %616 = vector.extract_strided_slice %614 {offsets = [0, 16], sizes = [2, 16], strides = [1, 1]} : vector<2x48xf32> to vector<2x16xf32>
    %617 = vector.extract_strided_slice %614 {offsets = [0, 32], sizes = [2, 16], strides = [1, 1]} : vector<2x48xf32> to vector<2x16xf32>
    %618 = vector.extract_strided_slice %608 {offsets = [0, 48], sizes = [2, 16], strides = [1, 1]} : vector<2x64xf32> to vector<2x16xf32>
    %619 = math.tanh %618 : vector<2x16xf32>
    %620 = arith.mulf %616, %600 : vector<2x16xf32>
    %621 = arith.mulf %615, %619 : vector<2x16xf32>
    %622 = arith.addf %620, %621 : vector<2x16xf32>
    %623 = math.tanh %622 : vector<2x16xf32>
    %624 = arith.mulf %617, %623 : vector<2x16xf32>
    %625 = vector.extract_strided_slice %489 {offsets = [6, 0], sizes = [1, 64], strides = [1, 1]} : vector<16x64xf32> to vector<1x64xf32>
    %626 = vector.extract_strided_slice %489 {offsets = [14, 0], sizes = [1, 64], strides = [1, 1]} : vector<16x64xf32> to vector<1x64xf32>
    %627 = tpu.concatenate %625, %626 in 0 : vector<1x64xf32>, vector<1x64xf32> -> vector<2x64xf32>
    %628 = arith.truncf %624 : vector<2x16xf32> to vector<2x16xbf16>
    %cst_198 = arith.constant dense<0.000000e+00> : vector<2x64xf32>
    %629 = tpu.matmul %628, %490, %cst_198 {dimension_numbers = #tpu.dot_dimension_numbers<[1], [0], [0], [1], [0, 0, 1, 1], [], []>} : vector<2x16xbf16>, vector<16x64xbf16>, vector<2x64xf32> -> vector<2x64xf32>
    %630 = arith.addf %627, %629 : vector<2x64xf32>
    %631 = vector.extract_strided_slice %630 {offsets = [0, 0], sizes = [2, 48], strides = [1, 1]} : vector<2x64xf32> to vector<2x48xf32>
    %632 = arith.negf %631 : vector<2x48xf32>
    %633 = math.exp %632 : vector<2x48xf32>
    %cst_199 = arith.constant 1.000000e+00 : f32
    %634 = vector.broadcast %cst_199 : f32 to vector<2x48xf32>
    %635 = arith.addf %634, %633 : vector<2x48xf32>
    %636 = arith.divf %634, %635 : vector<2x48xf32>
    %637 = vector.extract_strided_slice %636 {offsets = [0, 0], sizes = [2, 16], strides = [1, 1]} : vector<2x48xf32> to vector<2x16xf32>
    %638 = vector.extract_strided_slice %636 {offsets = [0, 16], sizes = [2, 16], strides = [1, 1]} : vector<2x48xf32> to vector<2x16xf32>
    %639 = vector.extract_strided_slice %636 {offsets = [0, 32], sizes = [2, 16], strides = [1, 1]} : vector<2x48xf32> to vector<2x16xf32>
    %640 = vector.extract_strided_slice %630 {offsets = [0, 48], sizes = [2, 16], strides = [1, 1]} : vector<2x64xf32> to vector<2x16xf32>
    %641 = math.tanh %640 : vector<2x16xf32>
    %642 = arith.mulf %638, %622 : vector<2x16xf32>
    %643 = arith.mulf %637, %641 : vector<2x16xf32>
    %644 = arith.addf %642, %643 : vector<2x16xf32>
    %645 = math.tanh %644 : vector<2x16xf32>
    %646 = arith.mulf %639, %645 : vector<2x16xf32>
    %647 = vector.extract_strided_slice %489 {offsets = [7, 0], sizes = [1, 64], strides = [1, 1]} : vector<16x64xf32> to vector<1x64xf32>
    %648 = vector.extract_strided_slice %489 {offsets = [15, 0], sizes = [1, 64], strides = [1, 1]} : vector<16x64xf32> to vector<1x64xf32>
    %649 = tpu.concatenate %647, %648 in 0 : vector<1x64xf32>, vector<1x64xf32> -> vector<2x64xf32>
    %650 = arith.truncf %646 : vector<2x16xf32> to vector<2x16xbf16>
    %cst_200 = arith.constant dense<0.000000e+00> : vector<2x64xf32>
    %651 = tpu.matmul %650, %490, %cst_200 {dimension_numbers = #tpu.dot_dimension_numbers<[1], [0], [0], [1], [0, 0, 1, 1], [], []>} : vector<2x16xbf16>, vector<16x64xbf16>, vector<2x64xf32> -> vector<2x64xf32>
    %652 = arith.addf %649, %651 : vector<2x64xf32>
    %653 = vector.extract_strided_slice %652 {offsets = [0, 0], sizes = [2, 48], strides = [1, 1]} : vector<2x64xf32> to vector<2x48xf32>
    %654 = arith.negf %653 : vector<2x48xf32>
    %655 = math.exp %654 : vector<2x48xf32>
    %cst_201 = arith.constant 1.000000e+00 : f32
    %656 = vector.broadcast %cst_201 : f32 to vector<2x48xf32>
    %657 = arith.addf %656, %655 : vector<2x48xf32>
    %658 = arith.divf %656, %657 : vector<2x48xf32>
    %659 = vector.extract_strided_slice %658 {offsets = [0, 0], sizes = [2, 16], strides = [1, 1]} : vector<2x48xf32> to vector<2x16xf32>
    %660 = vector.extract_strided_slice %658 {offsets = [0, 16], sizes = [2, 16], strides = [1, 1]} : vector<2x48xf32> to vector<2x16xf32>
    %661 = vector.extract_strided_slice %658 {offsets = [0, 32], sizes = [2, 16], strides = [1, 1]} : vector<2x48xf32> to vector<2x16xf32>
    %662 = vector.extract_strided_slice %652 {offsets = [0, 48], sizes = [2, 16], strides = [1, 1]} : vector<2x64xf32> to vector<2x16xf32>
    %663 = math.tanh %662 : vector<2x16xf32>
    %664 = arith.mulf %660, %644 : vector<2x16xf32>
    %665 = arith.mulf %659, %663 : vector<2x16xf32>
    %666 = arith.addf %664, %665 : vector<2x16xf32>
    %667 = math.tanh %666 : vector<2x16xf32>
    %668 = arith.mulf %661, %667 : vector<2x16xf32>
    %669 = arith.truncf %668 : vector<2x16xf32> to vector<2x16xbf16>
    %c1008 = arith.constant 1008 : index
    %c0_202 = arith.constant 0 : index
    %670 = vector.load %arg2[%c1008, %c0_202] : memref<1024x128xbf16, #tpu.memory_space<vmem>>, vector<16x128xbf16>
    %cst_203 = arith.constant dense<0.000000e+00> : vector<2x128xf32>
    %671 = tpu.matmul %669, %670, %cst_203 {dimension_numbers = #tpu.dot_dimension_numbers<[1], [0], [0], [1], [0, 0, 1, 1], [], []>} : vector<2x16xbf16>, vector<16x128xbf16>, vector<2x128xf32> -> vector<2x128xf32>
    %c105 = arith.constant 105 : index
    %c0_204 = arith.constant 0 : index
    %672 = vector.load %arg3[%c105, %c0_204] : memref<112x128xf32, #tpu.memory_space<vmem>>, vector<1x128xf32>
    %673 = vector.broadcast %672 : vector<1x128xf32> to vector<2x128xf32>
    %674 = arith.addf %671, %673 : vector<2x128xf32>
    %c0_205 = arith.constant 0 : index
    %c0_206 = arith.constant 0 : index
    %675 = vector.load %arg4[%c0_205, %c0_206] : memref<2x128xf32, #tpu.memory_space<vmem>>, vector<2x128xf32>
    tpu.vector_store %arg4[%c0_205, %c0_206], %674 {strides = array<i32>} : memref<2x128xf32, #tpu.memory_space<vmem>>, vector<2x128xf32>,
    return
  }
}

</mosaic_0001>

<llo_original>
// kernel: bert_lstm_classifier.1
$region0: #{bert_lstm_classifier.1}
  #allocation0 [shape = 'u32[]', space=smem, size = 0x4, offset = 0x4, fixed_abs, tag = 'smem constant byte address 0x4 - core index']
  #allocation1 [shape = 'u32[144,128]{1,0:T(1,128)}', space=vmem, size = 0x12000, scoped, tag = 'internal scratch']
  %s0 = inlined_call_operand.vmem [shape: f32[16,32], index: 0, kind: input, shape index: {}]
  %s1 = inlined_call_operand.vmem [shape: f32[16,16], index: 1, kind: input, shape index: {}]
  %s2 = inlined_call_operand.hbm [shape: bf16[1024,128], index: 2, kind: input, shape index: {}]
  %s3 = inlined_call_operand.vmem [shape: f32[112,128], index: 3, kind: input, shape index: {}]
  %s4 = inlined_call_operand.hbm [shape: f32[2,128], index: 4, kind: output, shape index: {}]
  %s5 = sld [smem:[#allocation0]]
  $region30: #{bert_lstm_classifier.1} parent=0
    _
  %s7 = ssub.s32 1, %s5
  %s8 = scalar_select 0, %s7, %s5
  $region1: #{bert_lstm_classifier.1} parent=0
    #allocation2 [shape = 'u8[262144]{0}', space=vmem, size = 0x40000, scoped, tag = 'input window, operand 2, single buffered']
    #allocation3 [shape = 's32[1]{0}', space=sflag, size = 0x4, scoped, tag = 'scoped memory for bert_lstm_classifier.1']
    #allocation4 [shape = 's32[1]{0}', space=sflag, size = 0x4, scoped, tag = 'scoped memory for bert_lstm_classifier.1']
    #allocation5 [shape = 'u8[1024]{0}', space=vmem, size = 0x400, scoped, tag = 'output window, operand 0, single buffered']
    %9 = vsyncpa [#allocation3], 0
    %10 = vsyncpa [#allocation4], 0
    // Predicated region
    $region2: #{bert_lstm_classifier.1} parent=1 // pred_check
      _
    $region3: #{bert_lstm_classifier.1} parent=1 // pred_check_branch
      %12 = sbr.rel (0) target = $region5
    $region4: #{bert_lstm_classifier.1} parent=1 // pred_region
      _
    $region5: #{bert_lstm_classifier.1} parent=1 // pred_fallthru
      _
    // Predicated region
    $region6: #{bert_lstm_classifier.1} parent=1 // pred_check
      _
    $region7: #{bert_lstm_classifier.1} parent=1 // pred_check_branch
      %14 = sbr.rel (0) target = $region9
    $region8: #{bert_lstm_classifier.1} parent=1 // pred_region
      _
    $region9: #{bert_lstm_classifier.1} parent=1 // pred_fallthru
      _
    // Predicated region
    $region10: #{bert_lstm_classifier.1} parent=1 // pred_check
      _
    $region11: #{bert_lstm_classifier.1} parent=1 // pred_check_branch
      %16 = sbr.rel (0) target = $region13
    $region12: #{bert_lstm_classifier.1} parent=1 // pred_region
      %s18 = ssub.s32 8192, 8192
      %19 = vsyncadd [#allocation3], %s18
      %s20 = sshll.u32 [#allocation2], 4
      %s21 = int_to_ptr.vmem [resolvable:$true] %s20
      %26 = dma.hbm_to_vmem [thread:$0]  %s2, 8192, %s21, [#allocation3], 64, 64, 4
    $region13: #{bert_lstm_classifier.1} parent=1 // pred_fallthru
      _
    // Predicated region
    $region14: #{bert_lstm_classifier.1} parent=1 // pred_check
      _
    $region15: #{bert_lstm_classifier.1} parent=1 // pred_check_branch
      %28 = sbr.rel (0) target = $region17
    $region16: #{bert_lstm_classifier.1} parent=1 // pred_region
      _
    $region17: #{bert_lstm_classifier.1} parent=1 // pred_fallthru
      _
    // Predicated region
    $region18: #{bert_lstm_classifier.1} parent=1 // pred_check
      _
    $region19: #{bert_lstm_classifier.1} parent=1 // pred_check_branch
      %30 = sbr.rel (0) target = $region21
    $region20: #{bert_lstm_classifier.1} parent=1 // pred_region
      %31 = dma.done [#allocation3], 8192
    $region21: #{bert_lstm_classifier.1} parent=1 // pred_fallthru
      _
    %v33 = vld [vmem:[%s0] sm:$0xff]
    %v34 = vld [vmem:[%s0 + $0x8] sm:$0xff]
    %v35 = vld [vmem:[%s3 + $0x40] sm:$0x1]
    %v36 = vld [vmem:[%s3 + $0x41] sm:$0x1]
    %vm37 = vcmask 261120
    %v38 = vsel %vm37, %v33, 0.0
    %39 = vadd.xlane.f32.xlu0 %v38
    %v40 = vpop.xlane.xlu0 %39
    %v41 = vsel %vm37, %v34, 0.0
    %42 = vadd.xlane.f32.xlu0 %v41
    %v43 = vpop.xlane.xlu0 %42
    %v44 = vrcp.pop 32.0
    %v45 = vmul.f32 %v40, %v44
    %v46 = vmul.f32 %v43, %v44
    %v47 = vsub.f32 %v33, %v45
    %v48 = vsub.f32 %v34, %v46
    %v49 = vmul.f32 %v47, %v47
    %v50 = vmul.f32 %v48, %v48
    %v51 = vsel %vm37, %v49, 0.0
    %52 = vadd.xlane.f32.xlu0 %v51
    %v53 = vpop.xlane.xlu0 %52
    %v54 = vsel %vm37, %v50, 0.0
    %55 = vadd.xlane.f32.xlu0 %v54
    %v56 = vpop.xlane.xlu0 %55
    %v57 = vmul.f32 %v53, %v44
    %v58 = vmul.f32 %v56, %v44
    %v59 = vadd.f32 %v57, 1e-12
    %v60 = vadd.f32 %v58, 1e-12
    %v61 = vrsqrt.pop %v59
    %v62 = vrsqrt.pop %v60
    %v63 = vmul.f32 %v47, %v61
    %v64 = vmul.f32 %v48, %v62
    %v65 = vlaneseq
    %v66 = vshrl.u32 %v65, 7
    %v67 = vsub.s32 0, %v66
    %v68 = vrot.slane %v35, %v67
    %v69 = vmul.f32 %v63, %v68
    %v70 = vmul.f32 %v64, %v68
    %v71 = vlaneseq
    %v72 = vshrl.u32 %v71, 7
    %v73 = vsub.s32 0, %v72
    %v74 = vrot.slane %v36, %v73
    %v75 = vadd.f32 %v69, %v74
    %v76 = vadd.f32 %v70, %v74
    %v77 = vld [vmem:[%s1] sm:$0xff]
    %v78 = vld [vmem:[%s1 + $0x8] sm:$0xff]
    %v79 = vpack.c.bf16 %v76, %v75
    %v80 = vld [vmem:[%s3] sm:$0xff]
    %v81 = vld [vmem:[%s3 + $0x8] sm:$0xff]
    %v82 = vld [vmem:[%s3 + $0x10] sm:$0xff]
    %v83 = vld [vmem:[%s3 + $0x18] sm:$0xff]
    %v84 = vld [vmem:[#allocation2] sm:$0xf]
    %v85 = vld [vmem:[#allocation2 + $0x4] sm:$0xf]
    %v86 = vld [vmem:[#allocation2 + $0x8] sm:$0xf]
    %v87 = vld [vmem:[#allocation2 + $0xc] sm:$0xf]
    %v88 = vld [vmem:[%s3 + $0x42] sm:$0x1]
    %v89 = vlaneseq
    %v90 = vshrl.u32 %v89, 7
    %v91 = vsub.s32 0, %v90
    %v92 = vrot.slane %v88, %v91
    %v97 = vunpack.c.l.b16 %v84
    %v98 = vunpack.c.l.b16 %v85
    %v99 = vunpack.c.l.b16 %v86
    %v100 = vunpack.c.l.b16 %v87
    %v101 = vpack.c.b16 %v98, %v97
    %v102 = vpack.c.b16 %v100, %v99
    %v106 = vsel %vm37, %v79, 0
    %108 = vmatprep.subr.bf16.mxu0 0
    %109 = vmatpush1.bf16.msra.mxu0 0
    %110 = vmatprep.subr.bf16.mxu0 0
    %111 = vmatpush1.bf16.msra.mxu0 0
    %112 = vmatprep.subr.bf16.mxu0 0
    %113 = vmatpush1.bf16.msra.mxu0 0
    %114 = vmatprep.subr.bf16.mxu0 0
    %115 = vmatpush1.bf16.msra.mxu0 0
    %116 = vmatprep.subr.bf16.mxu0 0
    %117 = vmatpush1.bf16.msra.mxu0 0
    %118 = vmatprep.subr.bf16.mxu0 0
    %119 = vmatpush1.bf16.msra.mxu0 0
    %120 = vmatprep.subr.bf16.mxu0 0
    %121 = vmatpush1.bf16.msra.mxu0 %v102
    %122 = vmatprep.subr.bf16.mxu0 0
    %123 = vmatpush1.bf16.msra.mxu0 %v101
    %124 = vmatprep.subr.bf16.mxu0 0
    %125 = vmatpush2.bf16.msra.mxu0 0
    %126 = vmatprep.subr.bf16.mxu0 0
    %127 = vmatpush2.bf16.msra.mxu0 0
    %128 = vmatprep.subr.bf16.mxu0 0
    %129 = vmatpush2.bf16.msra.mxu0 0
    %130 = vmatprep.subr.bf16.mxu0 0
    %131 = vmatpush2.bf16.msra.mxu0 0
    %132 = vmatprep.subr.bf16.mxu0 0
    %133 = vmatpush2.bf16.msra.mxu0 0
    %134 = vmatprep.subr.bf16.mxu0 0
    %135 = vmatpush2.bf16.msra.mxu0 0
    %136 = vmatprep.subr.bf16.mxu0 0
    %137 = vmatpush2.bf16.msra.mxu0 0
    %138 = vmatprep.subr.bf16.mxu0 0
    %139 = vmatpush2.bf16.msra.mxu0 0
    %140 = vmatprep.mubr.bf16.mxu0 0
    %141 = vmatmul.mubr.bf16.gmra.mxu0 %v106
    %v142 = vpop.f32.mrf.mxu0
    %v143 = vadd.f32 %v92, %v142
    %v144 = vpop.f32.mrf.mxu0
    %v145 = vpop.f32.mrf.mxu0
    %v146 = vadd.f32 %v92, %v145
    %v147 = vpop.f32.mrf.mxu0
    %148 = vdwg.mxu0
    %v149 = vld [vmem:[#allocation2 + $0x10] sm:$0xf]
    %v150 = vld [vmem:[#allocation2 + $0x14] sm:$0xf]
    %v151 = vld [vmem:[#allocation2 + $0x18] sm:$0xf]
    %v152 = vld [vmem:[#allocation2 + $0x1c] sm:$0xf]
    %v153 = vld [vmem:[%s3 + $0x43] sm:$0x1]
    %v154 = vlaneseq
    %v155 = vshrl.u32 %v154, 7
    %v156 = vsub.s32 0, %v155
    %v157 = vrot.slane %v153, %v156
    %v162 = vunpack.c.l.b16 %v149
    %v163 = vunpack.c.l.b16 %v150
    %v164 = vunpack.c.l.b16 %v151
    %v165 = vunpack.c.l.b16 %v152
    %v166 = vpack.c.b16 %v163, %v162
    %v167 = vpack.c.b16 %v165, %v164
    %170 = vmatprep.subr.bf16.mxu0 0
    %171 = vmatpush1.bf16.msra.mxu0 0
    %172 = vmatprep.subr.bf16.mxu0 0
    %173 = vmatpush1.bf16.msra.mxu0 0
    %174 = vmatprep.subr.bf16.mxu0 0
    %175 = vmatpush1.bf16.msra.mxu0 0
    %176 = vmatprep.subr.bf16.mxu0 0
    %177 = vmatpush1.bf16.msra.mxu0 0
    %178 = vmatprep.subr.bf16.mxu0 0
    %179 = vmatpush1.bf16.msra.mxu0 0
    %180 = vmatprep.subr.bf16.mxu0 0
    %181 = vmatpush1.bf16.msra.mxu0 0
    %182 = vmatprep.subr.bf16.mxu0 0
    %183 = vmatpush1.bf16.msra.mxu0 %v167
    %184 = vmatprep.subr.bf16.mxu0 0
    %185 = vmatpush1.bf16.msra.mxu0 %v166
    %186 = vmatprep.subr.bf16.mxu0 0
    %187 = vmatpush2.bf16.msra.mxu0 0
    %188 = vmatprep.subr.bf16.mxu0 0
    %189 = vmatpush2.bf16.msra.mxu0 0
    %190 = vmatprep.subr.bf16.mxu0 0
    %191 = vmatpush2.bf16.msra.mxu0 0
    %192 = vmatprep.subr.bf16.mxu0 0
    %193 = vmatpush2.bf16.msra.mxu0 0
    %194 = vmatprep.subr.bf16.mxu0 0
    %195 = vmatpush2.bf16.msra.mxu0 0
    %196 = vmatprep.subr.bf16.mxu0 0
    %197 = vmatpush2.bf16.msra.mxu0 0
    %198 = vmatprep.subr.bf16.mxu0 0
    %199 = vmatpush2.bf16.msra.mxu0 0
    %200 = vmatprep.subr.bf16.mxu0 0
    %201 = vmatpush2.bf16.msra.mxu0 0
    %202 = vmatprep.mubr.bf16.mxu0 0
    %203 = vmatmul.mubr.bf16.gmra.mxu0 %v106
    %v204 = vpop.f32.mrf.mxu0
    %v205 = vadd.f32 %v157, %v204
    %v206 = vpop.f32.mrf.mxu0
    %v207 = vpop.f32.mrf.mxu0
    %v208 = vadd.f32 %v157, %v207
    %v209 = vpop.f32.mrf.mxu0
    %210 = vdwg.mxu0
    %v211 = vld [vmem:[#allocation2 + $0x20] sm:$0xf]
    %v212 = vld [vmem:[#allocation2 + $0x24] sm:$0xf]
    %v213 = vld [vmem:[#allocation2 + $0x28] sm:$0xf]
    %v214 = vld [vmem:[#allocation2 + $0x2c] sm:$0xf]
    %v215 = vld [vmem:[%s3 + $0x44] sm:$0x1]
    %v216 = vlaneseq
    %v217 = vshrl.u32 %v216, 7
    %v218 = vsub.s32 0, %v217
    %v219 = vrot.slane %v215, %v218
    %v224 = vunpack.c.l.b16 %v211
    %v225 = vunpack.c.l.b16 %v212
    %v226 = vunpack.c.l.b16 %v213
    %v227 = vunpack.c.l.b16 %v214
    %v228 = vpack.c.b16 %v225, %v224
    %v229 = vpack.c.b16 %v227, %v226
    %232 = vmatprep.subr.bf16.mxu0 0
    %233 = vmatpush1.bf16.msra.mxu0 0
    %234 = vmatprep.subr.bf16.mxu0 0
    %235 = vmatpush1.bf16.msra.mxu0 0
    %236 = vmatprep.subr.bf16.mxu0 0
    %237 = vmatpush1.bf16.msra.mxu0 0
    %238 = vmatprep.subr.bf16.mxu0 0
    %239 = vmatpush1.bf16.msra.mxu0 0
    %240 = vmatprep.subr.bf16.mxu0 0
    %241 = vmatpush1.bf16.msra.mxu0 0
    %242 = vmatprep.subr.bf16.mxu0 0
    %243 = vmatpush1.bf16.msra.mxu0 0
    %244 = vmatprep.subr.bf16.mxu0 0
    %245 = vmatpush1.bf16.msra.mxu0 %v229
    %246 = vmatprep.subr.bf16.mxu0 0
    %247 = vmatpush1.bf16.msra.mxu0 %v228
    %248 = vmatprep.subr.bf16.mxu0 0
    %249 = vmatpush2.bf16.msra.mxu0 0
    %250 = vmatprep.subr.bf16.mxu0 0
    %251 = vmatpush2.bf16.msra.mxu0 0
    %252 = vmatprep.subr.bf16.mxu0 0
    %253 = vmatpush2.bf16.msra.mxu0 0
    %254 = vmatprep.subr.bf16.mxu0 0
    %255 = vmatpush2.bf16.msra.mxu0 0
    %256 = vmatprep.subr.bf16.mxu0 0
    %257 = vmatpush2.bf16.msra.mxu0 0
    %258 = vmatprep.subr.bf16.mxu0 0
    %259 = vmatpush2.bf16.msra.mxu0 0
    %260 = vmatprep.subr.bf16.mxu0 0
    %261 = vmatpush2.bf16.msra.mxu0 0
    %262 = vmatprep.subr.bf16.mxu0 0
    %263 = vmatpush2.bf16.msra.mxu0 0
    %264 = vmatprep.mubr.bf16.mxu0 0
    %265 = vmatmul.mubr.bf16.gmra.mxu0 %v106
    %v266 = vpop.f32.mrf.mxu0
    %v267 = vadd.f32 %v219, %v266
    %v268 = vpop.f32.mrf.mxu0
    %v269 = vpop.f32.mrf.mxu0
    %v270 = vadd.f32 %v219, %v269
    %v271 = vpop.f32.mrf.mxu0
    %272 = vdwg.mxu0
    %v273 = vpack.c.bf16 %v146, %v143
    %v274 = vpack.c.bf16 %v208, %v205
    %vm275 = vcmask 64512
    %v277 = vsel %vm275, %v273, 0
    %v280 = vsel %vm275, %v274, 0
    %282 = vmatprep.subr.bf16.mxu0 0
    %283 = vmatpush1.bf16.xpose.msra.mxu0 0
    %284 = vmatprep.subr.bf16.mxu0 0
    %285 = vmatpush1.bf16.xpose.msra.mxu0 0
    %286 = vmatprep.subr.bf16.mxu0 0
    %287 = vmatpush1.bf16.xpose.msra.mxu0 0
    %288 = vmatprep.subr.bf16.mxu0 0
    %289 = vmatpush1.bf16.xpose.msra.mxu0 0
    %290 = vmatprep.subr.bf16.mxu0 0
    %291 = vmatpush1.bf16.xpose.msra.mxu0 0
    %292 = vmatprep.subr.bf16.mxu0 0
    %293 = vmatpush1.bf16.xpose.msra.mxu0 0
    %294 = vmatprep.subr.bf16.mxu0 0
    %295 = vmatpush1.bf16.xpose.msra.mxu0 0
    %296 = vmatprep.subr.bf16.mxu0 0
    %297 = vmatpush1.bf16.xpose.msra.mxu0 %v280
    %298 = vmatprep.subr.bf16.mxu0 0
    %299 = vmatpush2.bf16.xpose.msra.mxu0 0
    %300 = vmatprep.subr.bf16.mxu0 0
    %301 = vmatpush2.bf16.xpose.msra.mxu0 0
    %302 = vmatprep.subr.bf16.mxu0 0
    %303 = vmatpush2.bf16.xpose.msra.mxu0 0
    %304 = vmatprep.subr.bf16.mxu0 0
    %305 = vmatpush2.bf16.xpose.msra.mxu0 0
    %306 = vmatprep.subr.bf16.mxu0 0
    %307 = vmatpush2.bf16.xpose.msra.mxu0 0
    %308 = vmatprep.subr.bf16.mxu0 0
    %309 = vmatpush2.bf16.xpose.msra.mxu0 0
    %310 = vmatprep.subr.bf16.mxu0 0
    %311 = vmatpush2.bf16.xpose.msra.mxu0 0
    %312 = vmatprep.subr.bf16.mxu0 0
    %313 = vmatpush2.bf16.xpose.msra.mxu0 0
    %314 = vmatprep.mubr.bf16.mxu0 0
    %315 = vmatmul.mubr.bf16.gmra.mxu0 %v277
    %v316 = vpop.f32.mrf.mxu0
    %v317 = vadd.f32 %v77, %v316
    %v318 = vpop.f32.mrf.mxu0
    %v319 = vpop.f32.mrf.mxu0
    %v320 = vadd.f32 %v78, %v319
    %v321 = vpop.f32.mrf.mxu0
    %322 = vdwg.mxu0
    %vm323 = vcmask 130048
    %v324 = vsel %vm323, %v317, -inf
    %325 = vmax.xlane.f32.xlu0 %v324
    %v326 = vpop.xlane.xlu0 %325
    %v327 = vsel %vm323, %v320, -inf
    %328 = vmax.xlane.f32.xlu0 %v327
    %v329 = vpop.xlane.xlu0 %328
    %v330 = vsub.f32 %v317, %v326
    %v331 = vsub.f32 %v320, %v329
    %v332 = vmul.f32 %v330, 1.442695
    %v333 = vpow.pop %v332
    %v334 = vmul.f32 %v331, 1.442695
    %v335 = vpow.pop %v334
    %v336 = vsel %vm323, %v333, 0.0
    %337 = vadd.xlane.f32.xlu0 %v336
    %v338 = vpop.xlane.xlu0 %337
    %v339 = vsel %vm323, %v335, 0.0
    %340 = vadd.xlane.f32.xlu0 %v339
    %v341 = vpop.xlane.xlu0 %340
    %v342 = vrcp.pop %v338
    %v343 = vrcp.pop %v341
    %v344 = vmul.f32 %v333, %v342
    %v345 = vmul.f32 %v335, %v343
    %v346 = vpack.c.bf16 %v345, %v344
    %v347 = vpack.c.bf16 %v270, %v267
    %v349 = vsel %vm323, %v346, 0
    %351 = vmatprep.subr.bf16.mxu0 0
    %352 = vmatpush1.bf16.msra.mxu0 0
    %353 = vmatprep.subr.bf16.mxu0 0
    %354 = vmatpush1.bf16.msra.mxu0 0
    %355 = vmatprep.subr.bf16.mxu0 0
    %356 = vmatpush1.bf16.msra.mxu0 0
    %357 = vmatprep.subr.bf16.mxu0 0
    %358 = vmatpush1.bf16.msra.mxu0 0
    %359 = vmatprep.subr.bf16.mxu0 0
    %360 = vmatpush1.bf16.msra.mxu0 0
    %361 = vmatprep.subr.bf16.mxu0 0
    %362 = vmatpush1.bf16.msra.mxu0 0
    %363 = vmatprep.subr.bf16.mxu0 0
    %364 = vmatpush1.bf16.msra.mxu0 0
    %365 = vmatprep.subr.bf16.mxu0 0
    %366 = vmatpush1.bf16.msra.mxu0 %v347
    %367 = vmatprep.subr.bf16.mxu0 0
    %368 = vmatpush2.bf16.msra.mxu0 0
    %369 = vmatprep.subr.bf16.mxu0 0
    %370 = vmatpush2.bf16.msra.mxu0 0
    %371 = vmatprep.subr.bf16.mxu0 0
    %372 = vmatpush2.bf16.msra.mxu0 0
    %373 = vmatprep.subr.bf16.mxu0 0
    %374 = vmatpush2.bf16.msra.mxu0 0
    %375 = vmatprep.subr.bf16.mxu0 0
    %376 = vmatpush2.bf16.msra.mxu0 0
    %377 = vmatprep.subr.bf16.mxu0 0
    %378 = vmatpush2.bf16.msra.mxu0 0
    %379 = vmatprep.subr.bf16.mxu0 0
    %380 = vmatpush2.bf16.msra.mxu0 0
    %381 = vmatprep.subr.bf16.mxu0 0
    %382 = vmatpush2.bf16.msra.mxu0 0
    %383 = vmatprep.mubr.bf16.mxu0 0
    %384 = vmatmul.mubr.bf16.gmra.mxu0 %v349
    %v385 = vpop.f32.mrf.mxu0
    %v386 = vadd.f32 0.0, %v385
    %v387 = vpop.f32.mrf.mxu0
    %v388 = vpop.f32.mrf.mxu0
    %v389 = vadd.f32 0.0, %v388
    %v390 = vpop.f32.mrf.mxu0
    %391 = vdwg.mxu0
    %v392 = vpack.c.bf16 %v80, %v80
    %v393 = vpack.c.bf16 %v389, %v386
    %v394 = vld [vmem:[#allocation2 + $0x30] sm:$0xf]
    %v395 = vld [vmem:[#allocation2 + $0x34] sm:$0xf]
    %v396 = vld [vmem:[#allocation2 + $0x38] sm:$0xf]
    %v397 = vld [vmem:[#allocation2 + $0x3c] sm:$0xf]
    %v398 = vld [vmem:[%s3 + $0x45] sm:$0x1]
    %v399 = vlaneseq
    %v400 = vshrl.u32 %v399, 7
    %v401 = vsub.s32 0, %v400
    %v402 = vrot.slane %v398, %v401
    %v407 = vunpack.c.l.b16 %v394
    %v408 = vunpack.c.l.b16 %v395
    %v409 = vunpack.c.l.b16 %v396
    %v410 = vunpack.c.l.b16 %v397
    %v411 = vpack.c.b16 %v408, %v407
    %v412 = vpack.c.b16 %v410, %v409
    %415 = vmatprep.subr.bf16.mxu0 0
    %416 = vmatpush1.bf16.msra.mxu0 0
    %417 = vmatprep.subr.bf16.mxu0 0
    %418 = vmatpush1.bf16.msra.mxu0 0
    %419 = vmatprep.subr.bf16.mxu0 0
    %420 = vmatpush1.bf16.msra.mxu0 0
    %421 = vmatprep.subr.bf16.mxu0 0
    %422 = vmatpush1.bf16.msra.mxu0 0
    %423 = vmatprep.subr.bf16.mxu0 0
    %424 = vmatpush1.bf16.msra.mxu0 0
    %425 = vmatprep.subr.bf16.mxu0 0
    %426 = vmatpush1.bf16.msra.mxu0 0
    %427 = vmatprep.subr.bf16.mxu0 0
    %428 = vmatpush1.bf16.msra.mxu0 %v412
    %429 = vmatprep.subr.bf16.mxu0 0
    %430 = vmatpush1.bf16.msra.mxu0 %v411
    %431 = vmatprep.subr.bf16.mxu0 0
    %432 = vmatpush2.bf16.msra.mxu0 0
    %433 = vmatprep.subr.bf16.mxu0 0
    %434 = vmatpush2.bf16.msra.mxu0 0
    %435 = vmatprep.subr.bf16.mxu0 0
    %436 = vmatpush2.bf16.msra.mxu0 0
    %437 = vmatprep.subr.bf16.mxu0 0
    %438 = vmatpush2.bf16.msra.mxu0 0
    %439 = vmatprep.subr.bf16.mxu0 0
    %440 = vmatpush2.bf16.msra.mxu0 0
    %441 = vmatprep.subr.bf16.mxu0 0
    %442 = vmatpush2.bf16.msra.mxu0 0
    %443 = vmatprep.subr.bf16.mxu0 0
    %444 = vmatpush2.bf16.msra.mxu0 0
    %445 = vmatprep.subr.bf16.mxu0 0
    %446 = vmatpush2.bf16.msra.mxu0 0
    %447 = vmatprep.mubr.bf16.mxu0 0
    %448 = vmatmul.mubr.bf16.gmra.mxu0 %v106
    %v449 = vpop.f32.mrf.mxu0
    %v450 = vadd.f32 %v402, %v449
    %v451 = vpop.f32.mrf.mxu0
    %v452 = vpop.f32.mrf.mxu0
    %v453 = vadd.f32 %v402, %v452
    %v454 = vpop.f32.mrf.mxu0
    %455 = vdwg.mxu0
    %v456 = vld [vmem:[#allocation2 + $0x40] sm:$0xf]
    %v457 = vld [vmem:[#allocation2 + $0x44] sm:$0xf]
    %v458 = vld [vmem:[#allocation2 + $0x48] sm:$0xf]
    %v459 = vld [vmem:[#allocation2 + $0x4c] sm:$0xf]
    %v460 = vld [vmem:[%s3 + $0x46] sm:$0x1]
    %v461 = vlaneseq
    %v462 = vshrl.u32 %v461, 7
    %v463 = vsub.s32 0, %v462
    %v464 = vrot.slane %v460, %v463
    %v469 = vunpack.c.l.b16 %v456
    %v470 = vunpack.c.l.b16 %v457
    %v471 = vunpack.c.l.b16 %v458
    %v472 = vunpack.c.l.b16 %v459
    %v473 = vpack.c.b16 %v470, %v469
    %v474 = vpack.c.b16 %v472, %v471
    %477 = vmatprep.subr.bf16.mxu0 0
    %478 = vmatpush1.bf16.msra.mxu0 0
    %479 = vmatprep.subr.bf16.mxu0 0
    %480 = vmatpush1.bf16.msra.mxu0 0
    %481 = vmatprep.subr.bf16.mxu0 0
    %482 = vmatpush1.bf16.msra.mxu0 0
    %483 = vmatprep.subr.bf16.mxu0 0
    %484 = vmatpush1.bf16.msra.mxu0 0
    %485 = vmatprep.subr.bf16.mxu0 0
    %486 = vmatpush1.bf16.msra.mxu0 0
    %487 = vmatprep.subr.bf16.mxu0 0
    %488 = vmatpush1.bf16.msra.mxu0 0
    %489 = vmatprep.subr.bf16.mxu0 0
    %490 = vmatpush1.bf16.msra.mxu0 %v474
    %491 = vmatprep.subr.bf16.mxu0 0
    %492 = vmatpush1.bf16.msra.mxu0 %v473
    %493 = vmatprep.subr.bf16.mxu0 0
    %494 = vmatpush2.bf16.msra.mxu0 0
    %495 = vmatprep.subr.bf16.mxu0 0
    %496 = vmatpush2.bf16.msra.mxu0 0
    %497 = vmatprep.subr.bf16.mxu0 0
    %498 = vmatpush2.bf16.msra.mxu0 0
    %499 = vmatprep.subr.bf16.mxu0 0
    %500 = vmatpush2.bf16.msra.mxu0 0
    %501 = vmatprep.subr.bf16.mxu0 0
    %502 = vmatpush2.bf16.msra.mxu0 0
    %503 = vmatprep.subr.bf16.mxu0 0
    %504 = vmatpush2.bf16.msra.mxu0 0
    %505 = vmatprep.subr.bf16.mxu0 0
    %506 = vmatpush2.bf16.msra.mxu0 0
    %507 = vmatprep.subr.bf16.mxu0 0
    %508 = vmatpush2.bf16.msra.mxu0 0
    %509 = vmatprep.mubr.bf16.mxu0 0
    %510 = vmatmul.mubr.bf16.gmra.mxu0 %v106
    %v511 = vpop.f32.mrf.mxu0
    %v512 = vadd.f32 %v464, %v511
    %v513 = vpop.f32.mrf.mxu0
    %v514 = vpop.f32.mrf.mxu0
    %v515 = vadd.f32 %v464, %v514
    %v516 = vpop.f32.mrf.mxu0
    %517 = vdwg.mxu0
    %v518 = vld [vmem:[#allocation2 + $0x50] sm:$0xf]
    %v519 = vld [vmem:[#allocation2 + $0x54] sm:$0xf]
    %v520 = vld [vmem:[#allocation2 + $0x58] sm:$0xf]
    %v521 = vld [vmem:[#allocation2 + $0x5c] sm:$0xf]
    %v522 = vld [vmem:[%s3 + $0x47] sm:$0x1]
    %v523 = vlaneseq
    %v524 = vshrl.u32 %v523, 7
    %v525 = vsub.s32 0, %v524
    %v526 = vrot.slane %v522, %v525
    %v531 = vunpack.c.l.b16 %v518
    %v532 = vunpack.c.l.b16 %v519
    %v533 = vunpack.c.l.b16 %v520
    %v534 = vunpack.c.l.b16 %v521
    %v535 = vpack.c.b16 %v532, %v531
    %v536 = vpack.c.b16 %v534, %v533
    %539 = vmatprep.subr.bf16.mxu0 0
    %540 = vmatpush1.bf16.msra.mxu0 0
    %541 = vmatprep.subr.bf16.mxu0 0
    %542 = vmatpush1.bf16.msra.mxu0 0
    %543 = vmatprep.subr.bf16.mxu0 0
    %544 = vmatpush1.bf16.msra.mxu0 0
    %545 = vmatprep.subr.bf16.mxu0 0
    %546 = vmatpush1.bf16.msra.mxu0 0
    %547 = vmatprep.subr.bf16.mxu0 0
    %548 = vmatpush1.bf16.msra.mxu0 0
    %549 = vmatprep.subr.bf16.mxu0 0
    %550 = vmatpush1.bf16.msra.mxu0 0
    %551 = vmatprep.subr.bf16.mxu0 0
    %552 = vmatpush1.bf16.msra.mxu0 %v536
    %553 = vmatprep.subr.bf16.mxu0 0
    %554 = vmatpush1.bf16.msra.mxu0 %v535
    %555 = vmatprep.subr.bf16.mxu0 0
    %556 = vmatpush2.bf16.msra.mxu0 0
    %557 = vmatprep.subr.bf16.mxu0 0
    %558 = vmatpush2.bf16.msra.mxu0 0
    %559 = vmatprep.subr.bf16.mxu0 0
    %560 = vmatpush2.bf16.msra.mxu0 0
    %561 = vmatprep.subr.bf16.mxu0 0
    %562 = vmatpush2.bf16.msra.mxu0 0
    %563 = vmatprep.subr.bf16.mxu0 0
    %564 = vmatpush2.bf16.msra.mxu0 0
    %565 = vmatprep.subr.bf16.mxu0 0
    %566 = vmatpush2.bf16.msra.mxu0 0
    %567 = vmatprep.subr.bf16.mxu0 0
    %568 = vmatpush2.bf16.msra.mxu0 0
    %569 = vmatprep.subr.bf16.mxu0 0
    %570 = vmatpush2.bf16.msra.mxu0 0
    %571 = vmatprep.mubr.bf16.mxu0 0
    %572 = vmatmul.mubr.bf16.gmra.mxu0 %v106
    %v573 = vpop.f32.mrf.mxu0
    %v574 = vadd.f32 %v526, %v573
    %v575 = vpop.f32.mrf.mxu0
    %v576 = vpop.f32.mrf.mxu0
    %v577 = vadd.f32 %v526, %v576
    %v578 = vpop.f32.mrf.mxu0
    %579 = vdwg.mxu0
    %v580 = vpack.c.bf16 %v453, %v450
    %v581 = vpack.c.bf16 %v515, %v512
    %v583 = vsel %vm275, %v580, 0
    %v586 = vsel %vm275, %v581, 0
    %588 = vmatprep.subr.bf16.mxu0 0
    %589 = vmatpush1.bf16.xpose.msra.mxu0 0
    %590 = vmatprep.subr.bf16.mxu0 0
    %591 = vmatpush1.bf16.xpose.msra.mxu0 0
    %592 = vmatprep.subr.bf16.mxu0 0
    %593 = vmatpush1.bf16.xpose.msra.mxu0 0
    %594 = vmatprep.subr.bf16.mxu0 0
    %595 = vmatpush1.bf16.xpose.msra.mxu0 0
    %596 = vmatprep.subr.bf16.mxu0 0
    %597 = vmatpush1.bf16.xpose.msra.mxu0 0
    %598 = vmatprep.subr.bf16.mxu0 0
    %599 = vmatpush1.bf16.xpose.msra.mxu0 0
    %600 = vmatprep.subr.bf16.mxu0 0
    %601 = vmatpush1.bf16.xpose.msra.mxu0 0
    %602 = vmatprep.subr.bf16.mxu0 0
    %603 = vmatpush1.bf16.xpose.msra.mxu0 %v586
    %604 = vmatprep.subr.bf16.mxu0 0
    %605 = vmatpush2.bf16.xpose.msra.mxu0 0
    %606 = vmatprep.subr.bf16.mxu0 0
    %607 = vmatpush2.bf16.xpose.msra.mxu0 0
    %608 = vmatprep.subr.bf16.mxu0 0
    %609 = vmatpush2.bf16.xpose.msra.mxu0 0
    %610 = vmatprep.subr.bf16.mxu0 0
    %611 = vmatpush2.bf16.xpose.msra.mxu0 0
    %612 = vmatprep.subr.bf16.mxu0 0
    %613 = vmatpush2.bf16.xpose.msra.mxu0 0
    %614 = vmatprep.subr.bf16.mxu0 0
    %615 = vmatpush2.bf16.xpose.msra.mxu0 0
    %616 = vmatprep.subr.bf16.mxu0 0
    %617 = vmatpush2.bf16.xpose.msra.mxu0 0
    %618 = vmatprep.subr.bf16.mxu0 0
    %619 = vmatpush2.bf16.xpose.msra.mxu0 0
    %620 = vmatprep.mubr.bf16.mxu0 0
    %621 = vmatmul.mubr.bf16.gmra.mxu0 %v583
    %v622 = vpop.f32.mrf.mxu0
    %v623 = vadd.f32 %v77, %v622
    %v624 = vpop.f32.mrf.mxu0
    %v625 = vpop.f32.mrf.mxu0
    %v626 = vadd.f32 %v78, %v625
    %v627 = vpop.f32.mrf.mxu0
    %628 = vdwg.mxu0
    %v629 = vsel %vm323, %v623, -inf
    %630 = vmax.xlane.f32.xlu0 %v629
    %v631 = vpop.xlane.xlu0 %630
    %v632 = vsel %vm323, %v626, -inf
    %633 = vmax.xlane.f32.xlu0 %v632
    %v634 = vpop.xlane.xlu0 %633
    %v635 = vsub.f32 %v623, %v631
    %v636 = vsub.f32 %v626, %v634
    %v637 = vmul.f32 %v635, 1.442695
    %v638 = vpow.pop %v637
    %v639 = vmul.f32 %v636, 1.442695
    %v640 = vpow.pop %v639
    %v641 = vsel %vm323, %v638, 0.0
    %642 = vadd.xlane.f32.xlu0 %v641
    %v643 = vpop.xlane.xlu0 %642
    %v644 = vsel %vm323, %v640, 0.0
    %645 = vadd.xlane.f32.xlu0 %v644
    %v646 = vpop.xlane.xlu0 %645
    %v647 = vrcp.pop %v643
    %v648 = vrcp.pop %v646
    %v649 = vmul.f32 %v638, %v647
    %v650 = vmul.f32 %v640, %v648
    %v651 = vpack.c.bf16 %v650, %v649
    %v652 = vpack.c.bf16 %v577, %v574
    %v654 = vsel %vm323, %v651, 0
    %656 = vmatprep.subr.bf16.mxu0 0
    %657 = vmatpush1.bf16.msra.mxu0 0
    %658 = vmatprep.subr.bf16.mxu0 0
    %659 = vmatpush1.bf16.msra.mxu0 0
    %660 = vmatprep.subr.bf16.mxu0 0
    %661 = vmatpush1.bf16.msra.mxu0 0
    %662 = vmatprep.subr.bf16.mxu0 0
    %663 = vmatpush1.bf16.msra.mxu0 0
    %664 = vmatprep.subr.bf16.mxu0 0
    %665 = vmatpush1.bf16.msra.mxu0 0
    %666 = vmatprep.subr.bf16.mxu0 0
    %667 = vmatpush1.bf16.msra.mxu0 0
    %668 = vmatprep.subr.bf16.mxu0 0
    %669 = vmatpush1.bf16.msra.mxu0 0
    %670 = vmatprep.subr.bf16.mxu0 0
    %671 = vmatpush1.bf16.msra.mxu0 %v652
    %672 = vmatprep.subr.bf16.mxu0 0
    %673 = vmatpush2.bf16.msra.mxu0 0
    %674 = vmatprep.subr.bf16.mxu0 0
    %675 = vmatpush2.bf16.msra.mxu0 0
    %676 = vmatprep.subr.bf16.mxu0 0
    %677 = vmatpush2.bf16.msra.mxu0 0
    %678 = vmatprep.subr.bf16.mxu0 0
    %679 = vmatpush2.bf16.msra.mxu0 0
    %680 = vmatprep.subr.bf16.mxu0 0
    %681 = vmatpush2.bf16.msra.mxu0 0
    %682 = vmatprep.subr.bf16.mxu0 0
    %683 = vmatpush2.bf16.msra.mxu0 0
    %684 = vmatprep.subr.bf16.mxu0 0
    %685 = vmatpush2.bf16.msra.mxu0 0
    %686 = vmatprep.subr.bf16.mxu0 0
    %687 = vmatpush2.bf16.msra.mxu0 0
    %688 = vmatprep.mubr.bf16.mxu0 0
    %689 = vmatmul.mubr.bf16.gmra.mxu0 %v654
    %v690 = vpop.f32.mrf.mxu0
    %v691 = vadd.f32 0.0, %v690
    %v692 = vpop.f32.mrf.mxu0
    %v693 = vpop.f32.mrf.mxu0
    %v694 = vadd.f32 0.0, %v693
    %v695 = vpop.f32.mrf.mxu0
    %696 = vdwg.mxu0
    %v697 = vpack.c.bf16 %v81, %v81
    %v698 = vpack.c.bf16 %v694, %v691
    %v700 = vsel %vm275, %v698, 0
    %vm702 = vcmask 1043456
    %v704 = vsel %vm702, %v697, 0
    %706 = vmatprep.subr.bf16.mxu0 0
    %707 = vmatpush1.bf16.msra.mxu0 0
    %708 = vmatprep.subr.bf16.mxu0 0
    %709 = vmatpush1.bf16.msra.mxu0 0
    %710 = vmatprep.subr.bf16.mxu0 0
    %711 = vmatpush1.bf16.msra.mxu0 0
    %712 = vmatprep.subr.bf16.mxu0 0
    %713 = vmatpush1.bf16.msra.mxu0 0
    %714 = vmatprep.subr.bf16.mxu0 0
    %715 = vmatpush1.bf16.msra.mxu0 0
    %716 = vmatprep.subr.bf16.mxu0 0
    %717 = vmatpush1.bf16.msra.mxu0 0
    %718 = vmatprep.subr.bf16.mxu0 0
    %719 = vmatpush1.bf16.msra.mxu0 0
    %720 = vmatprep.subr.bf16.mxu0 0
    %721 = vmatpush1.bf16.msra.mxu0 %v704
    %722 = vmatprep.subr.bf16.mxu0 0
    %723 = vmatpush2.bf16.msra.mxu0 0
    %724 = vmatprep.subr.bf16.mxu0 0
    %725 = vmatpush2.bf16.msra.mxu0 0
    %726 = vmatprep.subr.bf16.mxu0 0
    %727 = vmatpush2.bf16.msra.mxu0 0
    %728 = vmatprep.subr.bf16.mxu0 0
    %729 = vmatpush2.bf16.msra.mxu0 0
    %730 = vmatprep.subr.bf16.mxu0 0
    %731 = vmatpush2.bf16.msra.mxu0 0
    %732 = vmatprep.subr.bf16.mxu0 0
    %733 = vmatpush2.bf16.msra.mxu0 0
    %734 = vmatprep.subr.bf16.mxu0 0
    %735 = vmatpush2.bf16.msra.mxu0 0
    %736 = vmatprep.subr.bf16.mxu0 0
    %737 = vmatpush2.bf16.msra.mxu0 0
    %738 = vmatprep.mubr.bf16.mxu0 0
    %739 = vmatmul.mubr.bf16.gmra.mxu0 %v700
    %v740 = vpop.f32.mrf.mxu0
    %v741 = vadd.f32 0.0, %v740
    %v742 = vpop.f32.mrf.mxu0
    %v743 = vpop.f32.mrf.mxu0
    %v744 = vadd.f32 0.0, %v743
    %v745 = vpop.f32.mrf.mxu0
    %746 = vdwg.mxu0
    %v748 = vsel %vm275, %v393, 0
    %v751 = vsel %vm702, %v392, 0
    %753 = vmatprep.subr.bf16.mxu0 0
    %754 = vmatpush1.bf16.msra.mxu0 0
    %755 = vmatprep.subr.bf16.mxu0 0
    %756 = vmatpush1.bf16.msra.mxu0 0
    %757 = vmatprep.subr.bf16.mxu0 0
    %758 = vmatpush1.bf16.msra.mxu0 0
    %759 = vmatprep.subr.bf16.mxu0 0
    %760 = vmatpush1.bf16.msra.mxu0 0
    %761 = vmatprep.subr.bf16.mxu0 0
    %762 = vmatpush1.bf16.msra.mxu0 0
    %763 = vmatprep.subr.bf16.mxu0 0
    %764 = vmatpush1.bf16.msra.mxu0 0
    %765 = vmatprep.subr.bf16.mxu0 0
    %766 = vmatpush1.bf16.msra.mxu0 0
    %767 = vmatprep.subr.bf16.mxu0 0
    %768 = vmatpush1.bf16.msra.mxu0 %v751
    %769 = vmatprep.subr.bf16.mxu0 0
    %770 = vmatpush2.bf16.msra.mxu0 0
    %771 = vmatprep.subr.bf16.mxu0 0
    %772 = vmatpush2.bf16.msra.mxu0 0
    %773 = vmatprep.subr.bf16.mxu0 0
    %774 = vmatpush2.bf16.msra.mxu0 0
    %775 = vmatprep.subr.bf16.mxu0 0
    %776 = vmatpush2.bf16.msra.mxu0 0
    %777 = vmatprep.subr.bf16.mxu0 0
    %778 = vmatpush2.bf16.msra.mxu0 0
    %779 = vmatprep.subr.bf16.mxu0 0
    %780 = vmatpush2.bf16.msra.mxu0 0
    %781 = vmatprep.subr.bf16.mxu0 0
    %782 = vmatpush2.bf16.msra.mxu0 0
    %783 = vmatprep.subr.bf16.mxu0 0
    %784 = vmatpush2.bf16.msra.mxu0 0
    %785 = vmatprep.mubr.bf16.mxu0 0
    %786 = vmatmul.mubr.bf16.gmra.mxu0 %v748
    %v787 = vpop.f32.mrf.mxu0
    %v788 = vadd.f32 %v741, %v787
    %v789 = vpop.f32.mrf.mxu0
    %v790 = vpop.f32.mrf.mxu0
    %v791 = vadd.f32 %v744, %v790
    %v792 = vpop.f32.mrf.mxu0
    %793 = vdwg.mxu0
    %v794 = vld [vmem:[#allocation2 + $0x60] sm:$0xf]
    %v795 = vld [vmem:[#allocation2 + $0x64] sm:$0xf]
    %v796 = vld [vmem:[#allocation2 + $0x68] sm:$0xf]
    %v797 = vld [vmem:[#allocation2 + $0x6c] sm:$0xf]
    %v798 = vld [vmem:[%s3 + $0x48] sm:$0x1]
    %v799 = vlaneseq
    %v800 = vshrl.u32 %v799, 7
    %v801 = vsub.s32 0, %v800
    %v802 = vrot.slane %v798, %v801
    %v807 = vunpack.c.l.b16 %v794
    %v808 = vunpack.c.l.b16 %v795
    %v809 = vunpack.c.l.b16 %v796
    %v810 = vunpack.c.l.b16 %v797
    %v811 = vpack.c.b16 %v808, %v807
    %v812 = vpack.c.b16 %v810, %v809
    %815 = vmatprep.subr.bf16.mxu0 0
    %816 = vmatpush1.bf16.msra.mxu0 0
    %817 = vmatprep.subr.bf16.mxu0 0
    %818 = vmatpush1.bf16.msra.mxu0 0
    %819 = vmatprep.subr.bf16.mxu0 0
    %820 = vmatpush1.bf16.msra.mxu0 0
    %821 = vmatprep.subr.bf16.mxu0 0
    %822 = vmatpush1.bf16.msra.mxu0 0
    %823 = vmatprep.subr.bf16.mxu0 0
    %824 = vmatpush1.bf16.msra.mxu0 0
    %825 = vmatprep.subr.bf16.mxu0 0
    %826 = vmatpush1.bf16.msra.mxu0 0
    %827 = vmatprep.subr.bf16.mxu0 0
    %828 = vmatpush1.bf16.msra.mxu0 %v812
    %829 = vmatprep.subr.bf16.mxu0 0
    %830 = vmatpush1.bf16.msra.mxu0 %v811
    %831 = vmatprep.subr.bf16.mxu0 0
    %832 = vmatpush2.bf16.msra.mxu0 0
    %833 = vmatprep.subr.bf16.mxu0 0
    %834 = vmatpush2.bf16.msra.mxu0 0
    %835 = vmatprep.subr.bf16.mxu0 0
    %836 = vmatpush2.bf16.msra.mxu0 0
    %837 = vmatprep.subr.bf16.mxu0 0
    %838 = vmatpush2.bf16.msra.mxu0 0
    %839 = vmatprep.subr.bf16.mxu0 0
    %840 = vmatpush2.bf16.msra.mxu0 0
    %841 = vmatprep.subr.bf16.mxu0 0
    %842 = vmatpush2.bf16.msra.mxu0 0
    %843 = vmatprep.subr.bf16.mxu0 0
    %844 = vmatpush2.bf16.msra.mxu0 0
    %845 = vmatprep.subr.bf16.mxu0 0
    %846 = vmatpush2.bf16.msra.mxu0 0
    %847 = vmatprep.mubr.bf16.mxu0 0
    %848 = vmatmul.mubr.bf16.gmra.mxu0 %v106
    %v849 = vpop.f32.mrf.mxu0
    %v850 = vadd.f32 %v802, %v849
    %v851 = vpop.f32.mrf.mxu0
    %v852 = vpop.f32.mrf.mxu0
    %v853 = vadd.f32 %v802, %v852
    %v854 = vpop.f32.mrf.mxu0
    %855 = vdwg.mxu0
    %v856 = vld [vmem:[#allocation2 + $0x70] sm:$0xf]
    %v857 = vld [vmem:[#allocation2 + $0x74] sm:$0xf]
    %v858 = vld [vmem:[#allocation2 + $0x78] sm:$0xf]
    %v859 = vld [vmem:[#allocation2 + $0x7c] sm:$0xf]
    %v860 = vld [vmem:[%s3 + $0x49] sm:$0x1]
    %v861 = vlaneseq
    %v862 = vshrl.u32 %v861, 7
    %v863 = vsub.s32 0, %v862
    %v864 = vrot.slane %v860, %v863
    %v869 = vunpack.c.l.b16 %v856
    %v870 = vunpack.c.l.b16 %v857
    %v871 = vunpack.c.l.b16 %v858
    %v872 = vunpack.c.l.b16 %v859
    %v873 = vpack.c.b16 %v870, %v869
    %v874 = vpack.c.b16 %v872, %v871
    %877 = vmatprep.subr.bf16.mxu0 0
    %878 = vmatpush1.bf16.msra.mxu0 0
    %879 = vmatprep.subr.bf16.mxu0 0
    %880 = vmatpush1.bf16.msra.mxu0 0
    %881 = vmatprep.subr.bf16.mxu0 0
    %882 = vmatpush1.bf16.msra.mxu0 0
    %883 = vmatprep.subr.bf16.mxu0 0
    %884 = vmatpush1.bf16.msra.mxu0 0
    %885 = vmatprep.subr.bf16.mxu0 0
    %886 = vmatpush1.bf16.msra.mxu0 0
    %887 = vmatprep.subr.bf16.mxu0 0
    %888 = vmatpush1.bf16.msra.mxu0 0
    %889 = vmatprep.subr.bf16.mxu0 0
    %890 = vmatpush1.bf16.msra.mxu0 %v874
    %891 = vmatprep.subr.bf16.mxu0 0
    %892 = vmatpush1.bf16.msra.mxu0 %v873
    %893 = vmatprep.subr.bf16.mxu0 0
    %894 = vmatpush2.bf16.msra.mxu0 0
    %895 = vmatprep.subr.bf16.mxu0 0
    %896 = vmatpush2.bf16.msra.mxu0 0
    %897 = vmatprep.subr.bf16.mxu0 0
    %898 = vmatpush2.bf16.msra.mxu0 0
    %899 = vmatprep.subr.bf16.mxu0 0
    %900 = vmatpush2.bf16.msra.mxu0 0
    %901 = vmatprep.subr.bf16.mxu0 0
    %902 = vmatpush2.bf16.msra.mxu0 0
    %903 = vmatprep.subr.bf16.mxu0 0
    %904 = vmatpush2.bf16.msra.mxu0 0
    %905 = vmatprep.subr.bf16.mxu0 0
    %906 = vmatpush2.bf16.msra.mxu0 0
    %907 = vmatprep.subr.bf16.mxu0 0
    %908 = vmatpush2.bf16.msra.mxu0 0
    %909 = vmatprep.mubr.bf16.mxu0 0
    %910 = vmatmul.mubr.bf16.gmra.mxu0 %v106
    %v911 = vpop.f32.mrf.mxu0
    %v912 = vadd.f32 %v864, %v911
    %v913 = vpop.f32.mrf.mxu0
    %v914 = vpop.f32.mrf.mxu0
    %v915 = vadd.f32 %v864, %v914
    %v916 = vpop.f32.mrf.mxu0
    %917 = vdwg.mxu0
    %v918 = vld [vmem:[#allocation2 + $0x80] sm:$0xf]
    %v919 = vld [vmem:[#allocation2 + $0x84] sm:$0xf]
    %v920 = vld [vmem:[#allocation2 + $0x88] sm:$0xf]
    %v921 = vld [vmem:[#allocation2 + $0x8c] sm:$0xf]
    %v922 = vld [vmem:[%s3 + $0x4a] sm:$0x1]
    %v923 = vlaneseq
    %v924 = vshrl.u32 %v923, 7
    %v925 = vsub.s32 0, %v924
    %v926 = vrot.slane %v922, %v925
    %v931 = vunpack.c.l.b16 %v918
    %v932 = vunpack.c.l.b16 %v919
    %v933 = vunpack.c.l.b16 %v920
    %v934 = vunpack.c.l.b16 %v921
    %v935 = vpack.c.b16 %v932, %v931
    %v936 = vpack.c.b16 %v934, %v933
    %939 = vmatprep.subr.bf16.mxu0 0
    %940 = vmatpush1.bf16.msra.mxu0 0
    %941 = vmatprep.subr.bf16.mxu0 0
    %942 = vmatpush1.bf16.msra.mxu0 0
    %943 = vmatprep.subr.bf16.mxu0 0
    %944 = vmatpush1.bf16.msra.mxu0 0
    %945 = vmatprep.subr.bf16.mxu0 0
    %946 = vmatpush1.bf16.msra.mxu0 0
    %947 = vmatprep.subr.bf16.mxu0 0
    %948 = vmatpush1.bf16.msra.mxu0 0
    %949 = vmatprep.subr.bf16.mxu0 0
    %950 = vmatpush1.bf16.msra.mxu0 0
    %951 = vmatprep.subr.bf16.mxu0 0
    %952 = vmatpush1.bf16.msra.mxu0 %v936
    %953 = vmatprep.subr.bf16.mxu0 0
    %954 = vmatpush1.bf16.msra.mxu0 %v935
    %955 = vmatprep.subr.bf16.mxu0 0
    %956 = vmatpush2.bf16.msra.mxu0 0
    %957 = vmatprep.subr.bf16.mxu0 0
    %958 = vmatpush2.bf16.msra.mxu0 0
    %959 = vmatprep.subr.bf16.mxu0 0
    %960 = vmatpush2.bf16.msra.mxu0 0
    %961 = vmatprep.subr.bf16.mxu0 0
    %962 = vmatpush2.bf16.msra.mxu0 0
    %963 = vmatprep.subr.bf16.mxu0 0
    %964 = vmatpush2.bf16.msra.mxu0 0
    %965 = vmatprep.subr.bf16.mxu0 0
    %966 = vmatpush2.bf16.msra.mxu0 0
    %967 = vmatprep.subr.bf16.mxu0 0
    %968 = vmatpush2.bf16.msra.mxu0 0
    %969 = vmatprep.subr.bf16.mxu0 0
    %970 = vmatpush2.bf16.msra.mxu0 0
    %971 = vmatprep.mubr.bf16.mxu0 0
    %972 = vmatmul.mubr.bf16.gmra.mxu0 %v106
    %v973 = vpop.f32.mrf.mxu0
    %v974 = vadd.f32 %v926, %v973
    %v975 = vpop.f32.mrf.mxu0
    %v976 = vpop.f32.mrf.mxu0
    %v977 = vadd.f32 %v926, %v976
    %v978 = vpop.f32.mrf.mxu0
    %979 = vdwg.mxu0
    %v980 = vpack.c.bf16 %v853, %v850
    %v981 = vpack.c.bf16 %v915, %v912
    %v983 = vsel %vm275, %v980, 0
    %v986 = vsel %vm275, %v981, 0
    %988 = vmatprep.subr.bf16.mxu0 0
    %989 = vmatpush1.bf16.xpose.msra.mxu0 0
    %990 = vmatprep.subr.bf16.mxu0 0
    %991 = vmatpush1.bf16.xpose.msra.mxu0 0
    %992 = vmatprep.subr.bf16.mxu0 0
    %993 = vmatpush1.bf16.xpose.msra.mxu0 0
    %994 = vmatprep.subr.bf16.mxu0 0
    %995 = vmatpush1.bf16.xpose.msra.mxu0 0
    %996 = vmatprep.subr.bf16.mxu0 0
    %997 = vmatpush1.bf16.xpose.msra.mxu0 0
    %998 = vmatprep.subr.bf16.mxu0 0
    %999 = vmatpush1.bf16.xpose.msra.mxu0 0
    %1000 = vmatprep.subr.bf16.mxu0 0
    %1001 = vmatpush1.bf16.xpose.msra.mxu0 0
    %1002 = vmatprep.subr.bf16.mxu0 0
    %1003 = vmatpush1.bf16.xpose.msra.mxu0 %v986
    %1004 = vmatprep.subr.bf16.mxu0 0
    %1005 = vmatpush2.bf16.xpose.msra.mxu0 0
    %1006 = vmatprep.subr.bf16.mxu0 0
    %1007 = vmatpush2.bf16.xpose.msra.mxu0 0
    %1008 = vmatprep.subr.bf16.mxu0 0
    %1009 = vmatpush2.bf16.xpose.msra.mxu0 0
    %1010 = vmatprep.subr.bf16.mxu0 0
    %1011 = vmatpush2.bf16.xpose.msra.mxu0 0
    %1012 = vmatprep.subr.bf16.mxu0 0
    %1013 = vmatpush2.bf16.xpose.msra.mxu0 0
    %1014 = vmatprep.subr.bf16.mxu0 0
    %1015 = vmatpush2.bf16.xpose.msra.mxu0 0
    %1016 = vmatprep.subr.bf16.mxu0 0
    %1017 = vmatpush2.bf16.xpose.msra.mxu0 0
    %1018 = vmatprep.subr.bf16.mxu0 0
    %1019 = vmatpush2.bf16.xpose.msra.mxu0 0
    %1020 = vmatprep.mubr.bf16.mxu0 0
    %1021 = vmatmul.mubr.bf16.gmra.mxu0 %v983
    %v1022 = vpop.f32.mrf.mxu0
    %v1023 = vadd.f32 %v77, %v1022
    %v1024 = vpop.f32.mrf.mxu0
    %v1025 = vpop.f32.mrf.mxu0
    %v1026 = vadd.f32 %v78, %v1025
    %v1027 = vpop.f32.mrf.mxu0
    %1028 = vdwg.mxu0
    %v1029 = vsel %vm323, %v1023, -inf
    %1030 = vmax.xlane.f32.xlu0 %v1029
    %v1031 = vpop.xlane.xlu0 %1030
    %v1032 = vsel %vm323, %v1026, -inf
    %1033 = vmax.xlane.f32.xlu0 %v1032
    %v1034 = vpop.xlane.xlu0 %1033
    %v1035 = vsub.f32 %v1023, %v1031
    %v1036 = vsub.f32 %v1026, %v1034
    %v1037 = vmul.f32 %v1035, 1.442695
    %v1038 = vpow.pop %v1037
    %v1039 = vmul.f32 %v1036, 1.442695
    %v1040 = vpow.pop %v1039
    %v1041 = vsel %vm323, %v1038, 0.0
    %1042 = vadd.xlane.f32.xlu0 %v1041
    %v1043 = vpop.xlane.xlu0 %1042
    %v1044 = vsel %vm323, %v1040, 0.0
    %1045 = vadd.xlane.f32.xlu0 %v1044
    %v1046 = vpop.xlane.xlu0 %1045
    %v1047 = vrcp.pop %v1043
    %v1048 = vrcp.pop %v1046
    %v1049 = vmul.f32 %v1038, %v1047
    %v1050 = vmul.f32 %v1040, %v1048
    %v1051 = vpack.c.bf16 %v1050, %v1049
    %v1052 = vpack.c.bf16 %v977, %v974
    %v1054 = vsel %vm323, %v1051, 0
    %1056 = vmatprep.subr.bf16.mxu0 0
    %1057 = vmatpush1.bf16.msra.mxu0 0
    %1058 = vmatprep.subr.bf16.mxu0 0
    %1059 = vmatpush1.bf16.msra.mxu0 0
    %1060 = vmatprep.subr.bf16.mxu0 0
    %1061 = vmatpush1.bf16.msra.mxu0 0
    %1062 = vmatprep.subr.bf16.mxu0 0
    %1063 = vmatpush1.bf16.msra.mxu0 0
    %1064 = vmatprep.subr.bf16.mxu0 0
    %1065 = vmatpush1.bf16.msra.mxu0 0
    %1066 = vmatprep.subr.bf16.mxu0 0
    %1067 = vmatpush1.bf16.msra.mxu0 0
    %1068 = vmatprep.subr.bf16.mxu0 0
    %1069 = vmatpush1.bf16.msra.mxu0 0
    %1070 = vmatprep.subr.bf16.mxu0 0
    %1071 = vmatpush1.bf16.msra.mxu0 %v1052
    %1072 = vmatprep.subr.bf16.mxu0 0
    %1073 = vmatpush2.bf16.msra.mxu0 0
    %1074 = vmatprep.subr.bf16.mxu0 0
    %1075 = vmatpush2.bf16.msra.mxu0 0
    %1076 = vmatprep.subr.bf16.mxu0 0
    %1077 = vmatpush2.bf16.msra.mxu0 0
    %1078 = vmatprep.subr.bf16.mxu0 0
    %1079 = vmatpush2.bf16.msra.mxu0 0
    %1080 = vmatprep.subr.bf16.mxu0 0
    %1081 = vmatpush2.bf16.msra.mxu0 0
    %1082 = vmatprep.subr.bf16.mxu0 0
    %1083 = vmatpush2.bf16.msra.mxu0 0
    %1084 = vmatprep.subr.bf16.mxu0 0
    %1085 = vmatpush2.bf16.msra.mxu0 0
    %1086 = vmatprep.subr.bf16.mxu0 0
    %1087 = vmatpush2.bf16.msra.mxu0 0
    %1088 = vmatprep.mubr.bf16.mxu0 0
    %1089 = vmatmul.mubr.bf16.gmra.mxu0 %v1054
    %v1090 = vpop.f32.mrf.mxu0
    %v1091 = vadd.f32 0.0, %v1090
    %v1092 = vpop.f32.mrf.mxu0
    %v1093 = vpop.f32.mrf.mxu0
    %v1094 = vadd.f32 0.0, %v1093
    %v1095 = vpop.f32.mrf.mxu0
    %1096 = vdwg.mxu0
    %v1097 = vpack.c.bf16 %v82, %v82
    %v1098 = vpack.c.bf16 %v1094, %v1091
    %v1100 = vsel %vm275, %v1098, 0
    %v1103 = vsel %vm702, %v1097, 0
    %1105 = vmatprep.subr.bf16.mxu0 0
    %1106 = vmatpush1.bf16.msra.mxu0 0
    %1107 = vmatprep.subr.bf16.mxu0 0
    %1108 = vmatpush1.bf16.msra.mxu0 0
    %1109 = vmatprep.subr.bf16.mxu0 0
    %1110 = vmatpush1.bf16.msra.mxu0 0
    %1111 = vmatprep.subr.bf16.mxu0 0
    %1112 = vmatpush1.bf16.msra.mxu0 0
    %1113 = vmatprep.subr.bf16.mxu0 0
    %1114 = vmatpush1.bf16.msra.mxu0 0
    %1115 = vmatprep.subr.bf16.mxu0 0
    %1116 = vmatpush1.bf16.msra.mxu0 0
    %1117 = vmatprep.subr.bf16.mxu0 0
    %1118 = vmatpush1.bf16.msra.mxu0 0
    %1119 = vmatprep.subr.bf16.mxu0 0
    %1120 = vmatpush1.bf16.msra.mxu0 %v1103
    %1121 = vmatprep.subr.bf16.mxu0 0
    %1122 = vmatpush2.bf16.msra.mxu0 0
    %1123 = vmatprep.subr.bf16.mxu0 0
    %1124 = vmatpush2.bf16.msra.mxu0 0
    %1125 = vmatprep.subr.bf16.mxu0 0
    %1126 = vmatpush2.bf16.msra.mxu0 0
    %1127 = vmatprep.subr.bf16.mxu0 0
    %1128 = vmatpush2.bf16.msra.mxu0 0
    %1129 = vmatprep.subr.bf16.mxu0 0
    %1130 = vmatpush2.bf16.msra.mxu0 0
    %1131 = vmatprep.subr.bf16.mxu0 0
    %1132 = vmatpush2.bf16.msra.mxu0 0
    %1133 = vmatprep.subr.bf16.mxu0 0
    %1134 = vmatpush2.bf16.msra.mxu0 0
    %1135 = vmatprep.subr.bf16.mxu0 0
    %1136 = vmatpush2.bf16.msra.mxu0 0
    %1137 = vmatprep.mubr.bf16.mxu0 0
    %1138 = vmatmul.mubr.bf16.gmra.mxu0 %v1100
    %v1139 = vpop.f32.mrf.mxu0
    %v1140 = vadd.f32 0.0, %v1139
    %v1141 = vpop.f32.mrf.mxu0
    %v1142 = vpop.f32.mrf.mxu0
    %v1143 = vadd.f32 0.0, %v1142
    %v1144 = vpop.f32.mrf.mxu0
    %1145 = vdwg.mxu0
    %v1146 = vadd.f32 %v788, %v1140
    %v1147 = vadd.f32 %v791, %v1143
    %v1148 = vld [vmem:[#allocation2 + $0x90] sm:$0xf]
    %v1149 = vld [vmem:[#allocation2 + $0x94] sm:$0xf]
    %v1150 = vld [vmem:[#allocation2 + $0x98] sm:$0xf]
    %v1151 = vld [vmem:[#allocation2 + $0x9c] sm:$0xf]
    %v1152 = vld [vmem:[%s3 + $0x4b] sm:$0x1]
    %v1153 = vlaneseq
    %v1154 = vshrl.u32 %v1153, 7
    %v1155 = vsub.s32 0, %v1154
    %v1156 = vrot.slane %v1152, %v1155
    %v1161 = vunpack.c.l.b16 %v1148
    %v1162 = vunpack.c.l.b16 %v1149
    %v1163 = vunpack.c.l.b16 %v1150
    %v1164 = vunpack.c.l.b16 %v1151
    %v1165 = vpack.c.b16 %v1162, %v1161
    %v1166 = vpack.c.b16 %v1164, %v1163
    %1169 = vmatprep.subr.bf16.mxu0 0
    %1170 = vmatpush1.bf16.msra.mxu0 0
    %1171 = vmatprep.subr.bf16.mxu0 0
    %1172 = vmatpush1.bf16.msra.mxu0 0
    %1173 = vmatprep.subr.bf16.mxu0 0
    %1174 = vmatpush1.bf16.msra.mxu0 0
    %1175 = vmatprep.subr.bf16.mxu0 0
    %1176 = vmatpush1.bf16.msra.mxu0 0
    %1177 = vmatprep.subr.bf16.mxu0 0
    %1178 = vmatpush1.bf16.msra.mxu0 0
    %1179 = vmatprep.subr.bf16.mxu0 0
    %1180 = vmatpush1.bf16.msra.mxu0 0
    %1181 = vmatprep.subr.bf16.mxu0 0
    %1182 = vmatpush1.bf16.msra.mxu0 %v1166
    %1183 = vmatprep.subr.bf16.mxu0 0
    %1184 = vmatpush1.bf16.msra.mxu0 %v1165
    %1185 = vmatprep.subr.bf16.mxu0 0
    %1186 = vmatpush2.bf16.msra.mxu0 0
    %1187 = vmatprep.subr.bf16.mxu0 0
    %1188 = vmatpush2.bf16.msra.mxu0 0
    %1189 = vmatprep.subr.bf16.mxu0 0
    %1190 = vmatpush2.bf16.msra.mxu0 0
    %1191 = vmatprep.subr.bf16.mxu0 0
    %1192 = vmatpush2.bf16.msra.mxu0 0
    %1193 = vmatprep.subr.bf16.mxu0 0
    %1194 = vmatpush2.bf16.msra.mxu0 0
    %1195 = vmatprep.subr.bf16.mxu0 0
    %1196 = vmatpush2.bf16.msra.mxu0 0
    %1197 = vmatprep.subr.bf16.mxu0 0
    %1198 = vmatpush2.bf16.msra.mxu0 0
    %1199 = vmatprep.subr.bf16.mxu0 0
    %1200 = vmatpush2.bf16.msra.mxu0 0
    %1201 = vmatprep.mubr.bf16.mxu0 0
    %1202 = vmatmul.mubr.bf16.gmra.mxu0 %v106
    %v1203 = vpop.f32.mrf.mxu0
    %v1204 = vadd.f32 %v1156, %v1203
    %v1205 = vpop.f32.mrf.mxu0
    %v1206 = vpop.f32.mrf.mxu0
    %v1207 = vadd.f32 %v1156, %v1206
    %v1208 = vpop.f32.mrf.mxu0
    %1209 = vdwg.mxu0
    %v1210 = vld [vmem:[#allocation2 + $0xa0] sm:$0xf]
    %v1211 = vld [vmem:[#allocation2 + $0xa4] sm:$0xf]
    %v1212 = vld [vmem:[#allocation2 + $0xa8] sm:$0xf]
    %v1213 = vld [vmem:[#allocation2 + $0xac] sm:$0xf]
    %v1214 = vld [vmem:[%s3 + $0x4c] sm:$0x1]
    %v1215 = vlaneseq
    %v1216 = vshrl.u32 %v1215, 7
    %v1217 = vsub.s32 0, %v1216
    %v1218 = vrot.slane %v1214, %v1217
    %v1223 = vunpack.c.l.b16 %v1210
    %v1224 = vunpack.c.l.b16 %v1211
    %v1225 = vunpack.c.l.b16 %v1212
    %v1226 = vunpack.c.l.b16 %v1213
    %v1227 = vpack.c.b16 %v1224, %v1223
    %v1228 = vpack.c.b16 %v1226, %v1225
    %1231 = vmatprep.subr.bf16.mxu0 0
    %1232 = vmatpush1.bf16.msra.mxu0 0
    %1233 = vmatprep.subr.bf16.mxu0 0
    %1234 = vmatpush1.bf16.msra.mxu0 0
    %1235 = vmatprep.subr.bf16.mxu0 0
    %1236 = vmatpush1.bf16.msra.mxu0 0
    %1237 = vmatprep.subr.bf16.mxu0 0
    %1238 = vmatpush1.bf16.msra.mxu0 0
    %1239 = vmatprep.subr.bf16.mxu0 0
    %1240 = vmatpush1.bf16.msra.mxu0 0
    %1241 = vmatprep.subr.bf16.mxu0 0
    %1242 = vmatpush1.bf16.msra.mxu0 0
    %1243 = vmatprep.subr.bf16.mxu0 0
    %1244 = vmatpush1.bf16.msra.mxu0 %v1228
    %1245 = vmatprep.subr.bf16.mxu0 0
    %1246 = vmatpush1.bf16.msra.mxu0 %v1227
    %1247 = vmatprep.subr.bf16.mxu0 0
    %1248 = vmatpush2.bf16.msra.mxu0 0
    %1249 = vmatprep.subr.bf16.mxu0 0
    %1250 = vmatpush2.bf16.msra.mxu0 0
    %1251 = vmatprep.subr.bf16.mxu0 0
    %1252 = vmatpush2.bf16.msra.mxu0 0
    %1253 = vmatprep.subr.bf16.mxu0 0
    %1254 = vmatpush2.bf16.msra.mxu0 0
    %1255 = vmatprep.subr.bf16.mxu0 0
    %1256 = vmatpush2.bf16.msra.mxu0 0
    %1257 = vmatprep.subr.bf16.mxu0 0
    %1258 = vmatpush2.bf16.msra.mxu0 0
    %1259 = vmatprep.subr.bf16.mxu0 0
    %1260 = vmatpush2.bf16.msra.mxu0 0
    %1261 = vmatprep.subr.bf16.mxu0 0
    %1262 = vmatpush2.bf16.msra.mxu0 0
    %1263 = vmatprep.mubr.bf16.mxu0 0
    %1264 = vmatmul.mubr.bf16.gmra.mxu0 %v106
    %v1265 = vpop.f32.mrf.mxu0
    %v1266 = vadd.f32 %v1218, %v1265
    %v1267 = vpop.f32.mrf.mxu0
    %v1268 = vpop.f32.mrf.mxu0
    %v1269 = vadd.f32 %v1218, %v1268
    %v1270 = vpop.f32.mrf.mxu0
    %1271 = vdwg.mxu0
    %v1272 = vld [vmem:[#allocation2 + $0xb0] sm:$0xf]
    %v1273 = vld [vmem:[#allocation2 + $0xb4] sm:$0xf]
    %v1274 = vld [vmem:[#allocation2 + $0xb8] sm:$0xf]
    %v1275 = vld [vmem:[#allocation2 + $0xbc] sm:$0xf]
    %v1276 = vld [vmem:[%s3 + $0x4d] sm:$0x1]
    %v1277 = vlaneseq
    %v1278 = vshrl.u32 %v1277, 7
    %v1279 = vsub.s32 0, %v1278
    %v1280 = vrot.slane %v1276, %v1279
    %v1285 = vunpack.c.l.b16 %v1272
    %v1286 = vunpack.c.l.b16 %v1273
    %v1287 = vunpack.c.l.b16 %v1274
    %v1288 = vunpack.c.l.b16 %v1275
    %v1289 = vpack.c.b16 %v1286, %v1285
    %v1290 = vpack.c.b16 %v1288, %v1287
    %1293 = vmatprep.subr.bf16.mxu0 0
    %1294 = vmatpush1.bf16.msra.mxu0 0
    %1295 = vmatprep.subr.bf16.mxu0 0
    %1296 = vmatpush1.bf16.msra.mxu0 0
    %1297 = vmatprep.subr.bf16.mxu0 0
    %1298 = vmatpush1.bf16.msra.mxu0 0
    %1299 = vmatprep.subr.bf16.mxu0 0
    %1300 = vmatpush1.bf16.msra.mxu0 0
    %1301 = vmatprep.subr.bf16.mxu0 0
    %1302 = vmatpush1.bf16.msra.mxu0 0
    %1303 = vmatprep.subr.bf16.mxu0 0
    %1304 = vmatpush1.bf16.msra.mxu0 0
    %1305 = vmatprep.subr.bf16.mxu0 0
    %1306 = vmatpush1.bf16.msra.mxu0 %v1290
    %1307 = vmatprep.subr.bf16.mxu0 0
    %1308 = vmatpush1.bf16.msra.mxu0 %v1289
    %1309 = vmatprep.subr.bf16.mxu0 0
    %1310 = vmatpush2.bf16.msra.mxu0 0
    %1311 = vmatprep.subr.bf16.mxu0 0
    %1312 = vmatpush2.bf16.msra.mxu0 0
    %1313 = vmatprep.subr.bf16.mxu0 0
    %1314 = vmatpush2.bf16.msra.mxu0 0
    %1315 = vmatprep.subr.bf16.mxu0 0
    %1316 = vmatpush2.bf16.msra.mxu0 0
    %1317 = vmatprep.subr.bf16.mxu0 0
    %1318 = vmatpush2.bf16.msra.mxu0 0
    %1319 = vmatprep.subr.bf16.mxu0 0
    %1320 = vmatpush2.bf16.msra.mxu0 0
    %1321 = vmatprep.subr.bf16.mxu0 0
    %1322 = vmatpush2.bf16.msra.mxu0 0
    %1323 = vmatprep.subr.bf16.mxu0 0
    %1324 = vmatpush2.bf16.msra.mxu0 0
    %1325 = vmatprep.mubr.bf16.mxu0 0
    %1326 = vmatmul.mubr.bf16.gmra.mxu0 %v106
    %v1327 = vpop.f32.mrf.mxu0
    %v1328 = vadd.f32 %v1280, %v1327
    %v1329 = vpop.f32.mrf.mxu0
    %v1330 = vpop.f32.mrf.mxu0
    %v1331 = vadd.f32 %v1280, %v1330
    %v1332 = vpop.f32.mrf.mxu0
    %1333 = vdwg.mxu0
    %v1334 = vpack.c.bf16 %v1207, %v1204
    %v1335 = vpack.c.bf16 %v1269, %v1266
    %v1337 = vsel %vm275, %v1334, 0
    %v1340 = vsel %vm275, %v1335, 0
    %1342 = vmatprep.subr.bf16.mxu0 0
    %1343 = vmatpush1.bf16.xpose.msra.mxu0 0
    %1344 = vmatprep.subr.bf16.mxu0 0
    %1345 = vmatpush1.bf16.xpose.msra.mxu0 0
    %1346 = vmatprep.subr.bf16.mxu0 0
    %1347 = vmatpush1.bf16.xpose.msra.mxu0 0
    %1348 = vmatprep.subr.bf16.mxu0 0
    %1349 = vmatpush1.bf16.xpose.msra.mxu0 0
    %1350 = vmatprep.subr.bf16.mxu0 0
    %1351 = vmatpush1.bf16.xpose.msra.mxu0 0
    %1352 = vmatprep.subr.bf16.mxu0 0
    %1353 = vmatpush1.bf16.xpose.msra.mxu0 0
    %1354 = vmatprep.subr.bf16.mxu0 0
    %1355 = vmatpush1.bf16.xpose.msra.mxu0 0
    %1356 = vmatprep.subr.bf16.mxu0 0
    %1357 = vmatpush1.bf16.xpose.msra.mxu0 %v1340
    %1358 = vmatprep.subr.bf16.mxu0 0
    %1359 = vmatpush2.bf16.xpose.msra.mxu0 0
    %1360 = vmatprep.subr.bf16.mxu0 0
    %1361 = vmatpush2.bf16.xpose.msra.mxu0 0
    %1362 = vmatprep.subr.bf16.mxu0 0
    %1363 = vmatpush2.bf16.xpose.msra.mxu0 0
    %1364 = vmatprep.subr.bf16.mxu0 0
    %1365 = vmatpush2.bf16.xpose.msra.mxu0 0
    %1366 = vmatprep.subr.bf16.mxu0 0
    %1367 = vmatpush2.bf16.xpose.msra.mxu0 0
    %1368 = vmatprep.subr.bf16.mxu0 0
    %1369 = vmatpush2.bf16.xpose.msra.mxu0 0
    %1370 = vmatprep.subr.bf16.mxu0 0
    %1371 = vmatpush2.bf16.xpose.msra.mxu0 0
    %1372 = vmatprep.subr.bf16.mxu0 0
    %1373 = vmatpush2.bf16.xpose.msra.mxu0 0
    %1374 = vmatprep.mubr.bf16.mxu0 0
    %1375 = vmatmul.mubr.bf16.gmra.mxu0 %v1337
    %v1376 = vpop.f32.mrf.mxu0
    %v1377 = vadd.f32 %v77, %v1376
    %v1378 = vpop.f32.mrf.mxu0
    %v1379 = vpop.f32.mrf.mxu0
    %v1380 = vadd.f32 %v78, %v1379
    %v1381 = vpop.f32.mrf.mxu0
    %1382 = vdwg.mxu0
    %v1383 = vsel %vm323, %v1377, -inf
    %1384 = vmax.xlane.f32.xlu0 %v1383
    %v1385 = vpop.xlane.xlu0 %1384
    %v1386 = vsel %vm323, %v1380, -inf
    %1387 = vmax.xlane.f32.xlu0 %v1386
    %v1388 = vpop.xlane.xlu0 %1387
    %v1389 = vsub.f32 %v1377, %v1385
    %v1390 = vsub.f32 %v1380, %v1388
    %v1391 = vmul.f32 %v1389, 1.442695
    %v1392 = vpow.pop %v1391
    %v1393 = vmul.f32 %v1390, 1.442695
    %v1394 = vpow.pop %v1393
    %v1395 = vsel %vm323, %v1392, 0.0
    %1396 = vadd.xlane.f32.xlu0 %v1395
    %v1397 = vpop.xlane.xlu0 %1396
    %v1398 = vsel %vm323, %v1394, 0.0
    %1399 = vadd.xlane.f32.xlu0 %v1398
    %v1400 = vpop.xlane.xlu0 %1399
    %v1401 = vrcp.pop %v1397
    %v1402 = vrcp.pop %v1400
    %v1403 = vmul.f32 %v1392, %v1401
    %v1404 = vmul.f32 %v1394, %v1402
    %v1405 = vpack.c.bf16 %v1404, %v1403
    %v1406 = vpack.c.bf16 %v1331, %v1328
    %v1408 = vsel %vm323, %v1405, 0
    %1410 = vmatprep.subr.bf16.mxu0 0
    %1411 = vmatpush1.bf16.msra.mxu0 0
    %1412 = vmatprep.subr.bf16.mxu0 0
    %1413 = vmatpush1.bf16.msra.mxu0 0
    %1414 = vmatprep.subr.bf16.mxu0 0
    %1415 = vmatpush1.bf16.msra.mxu0 0
    %1416 = vmatprep.subr.bf16.mxu0 0
    %1417 = vmatpush1.bf16.msra.mxu0 0
    %1418 = vmatprep.subr.bf16.mxu0 0
    %1419 = vmatpush1.bf16.msra.mxu0 0
    %1420 = vmatprep.subr.bf16.mxu0 0
    %1421 = vmatpush1.bf16.msra.mxu0 0
    %1422 = vmatprep.subr.bf16.mxu0 0
    %1423 = vmatpush1.bf16.msra.mxu0 0
    %1424 = vmatprep.subr.bf16.mxu0 0
    %1425 = vmatpush1.bf16.msra.mxu0 %v1406
    %1426 = vmatprep.subr.bf16.mxu0 0
    %1427 = vmatpush2.bf16.msra.mxu0 0
    %1428 = vmatprep.subr.bf16.mxu0 0
    %1429 = vmatpush2.bf16.msra.mxu0 0
    %1430 = vmatprep.subr.bf16.mxu0 0
    %1431 = vmatpush2.bf16.msra.mxu0 0
    %1432 = vmatprep.subr.bf16.mxu0 0
    %1433 = vmatpush2.bf16.msra.mxu0 0
    %1434 = vmatprep.subr.bf16.mxu0 0
    %1435 = vmatpush2.bf16.msra.mxu0 0
    %1436 = vmatprep.subr.bf16.mxu0 0
    %1437 = vmatpush2.bf16.msra.mxu0 0
    %1438 = vmatprep.subr.bf16.mxu0 0
    %1439 = vmatpush2.bf16.msra.mxu0 0
    %1440 = vmatprep.subr.bf16.mxu0 0
    %1441 = vmatpush2.bf16.msra.mxu0 0
    %1442 = vmatprep.mubr.bf16.mxu0 0
    %1443 = vmatmul.mubr.bf16.gmra.mxu0 %v1408
    %v1444 = vpop.f32.mrf.mxu0
    %v1445 = vadd.f32 0.0, %v1444
    %v1446 = vpop.f32.mrf.mxu0
    %v1447 = vpop.f32.mrf.mxu0
    %v1448 = vadd.f32 0.0, %v1447
    %v1449 = vpop.f32.mrf.mxu0
    %1450 = vdwg.mxu0
    %v1451 = vpack.c.bf16 %v83, %v83
    %v1452 = vpack.c.bf16 %v1448, %v1445
    %v1454 = vsel %vm275, %v1452, 0
    %v1457 = vsel %vm702, %v1451, 0
    %1459 = vmatprep.subr.bf16.mxu0 0
    %1460 = vmatpush1.bf16.msra.mxu0 0
    %1461 = vmatprep.subr.bf16.mxu0 0
    %1462 = vmatpush1.bf16.msra.mxu0 0
    %1463 = vmatprep.subr.bf16.mxu0 0
    %1464 = vmatpush1.bf16.msra.mxu0 0
    %1465 = vmatprep.subr.bf16.mxu0 0
    %1466 = vmatpush1.bf16.msra.mxu0 0
    %1467 = vmatprep.subr.bf16.mxu0 0
    %1468 = vmatpush1.bf16.msra.mxu0 0
    %1469 = vmatprep.subr.bf16.mxu0 0
    %1470 = vmatpush1.bf16.msra.mxu0 0
    %1471 = vmatprep.subr.bf16.mxu0 0
    %1472 = vmatpush1.bf16.msra.mxu0 0
    %1473 = vmatprep.subr.bf16.mxu0 0
    %1474 = vmatpush1.bf16.msra.mxu0 %v1457
    %1475 = vmatprep.subr.bf16.mxu0 0
    %1476 = vmatpush2.bf16.msra.mxu0 0
    %1477 = vmatprep.subr.bf16.mxu0 0
    %1478 = vmatpush2.bf16.msra.mxu0 0
    %1479 = vmatprep.subr.bf16.mxu0 0
    %1480 = vmatpush2.bf16.msra.mxu0 0
    %1481 = vmatprep.subr.bf16.mxu0 0
    %1482 = vmatpush2.bf16.msra.mxu0 0
    %1483 = vmatprep.subr.bf16.mxu0 0
    %1484 = vmatpush2.bf16.msra.mxu0 0
    %1485 = vmatprep.subr.bf16.mxu0 0
    %1486 = vmatpush2.bf16.msra.mxu0 0
    %1487 = vmatprep.subr.bf16.mxu0 0
    %1488 = vmatpush2.bf16.msra.mxu0 0
    %1489 = vmatprep.subr.bf16.mxu0 0
    %1490 = vmatpush2.bf16.msra.mxu0 0
    %1491 = vmatprep.mubr.bf16.mxu0 0
    %1492 = vmatmul.mubr.bf16.gmra.mxu0 %v1454
    %v1493 = vpop.f32.mrf.mxu0
    %v1494 = vadd.f32 0.0, %v1493
    %v1495 = vpop.f32.mrf.mxu0
    %v1496 = vpop.f32.mrf.mxu0
    %v1497 = vadd.f32 0.0, %v1496
    %v1498 = vpop.f32.mrf.mxu0
    %1499 = vdwg.mxu0
    %v1500 = vadd.f32 %v1146, %v1494
    %v1501 = vadd.f32 %v1147, %v1497
    %v1502 = vld [vmem:[%s3 + $0x4e] sm:$0x1]
    %v1503 = vlaneseq
    %v1504 = vshrl.u32 %v1503, 7
    %v1505 = vsub.s32 0, %v1504
    %v1506 = vrot.slane %v1502, %v1505
    %v1507 = vadd.f32 %v1500, %v1506
    %v1508 = vadd.f32 %v1501, %v1506
    %v1509 = vadd.f32 %v1507, %v75
    %v1510 = vadd.f32 %v1508, %v76
    %v1511 = vld [vmem:[%s3 + $0x4f] sm:$0x1]
    %v1512 = vld [vmem:[%s3 + $0x50] sm:$0x1]
    %v1513 = vsel %vm37, %v1509, 0.0
    %1514 = vadd.xlane.f32.xlu0 %v1513
    %v1515 = vpop.xlane.xlu0 %1514
    %v1516 = vsel %vm37, %v1510, 0.0
    %1517 = vadd.xlane.f32.xlu0 %v1516
    %v1518 = vpop.xlane.xlu0 %1517
    %v1519 = vmul.f32 %v1515, %v44
    %v1520 = vmul.f32 %v1518, %v44
    %v1521 = vsub.f32 %v1509, %v1519
    %v1522 = vsub.f32 %v1510, %v1520
    %v1523 = vmul.f32 %v1521, %v1521
    %v1524 = vmul.f32 %v1522, %v1522
    %v1525 = vsel %vm37, %v1523, 0.0
    %1526 = vadd.xlane.f32.xlu0 %v1525
    %v1527 = vpop.xlane.xlu0 %1526
    %v1528 = vsel %vm37, %v1524, 0.0
    %1529 = vadd.xlane.f32.xlu0 %v1528
    %v1530 = vpop.xlane.xlu0 %1529
    %v1531 = vmul.f32 %v1527, %v44
    %v1532 = vmul.f32 %v1530, %v44
    %v1533 = vadd.f32 %v1531, 1e-12
    %v1534 = vadd.f32 %v1532, 1e-12
    %v1535 = vrsqrt.pop %v1533
    %v1536 = vrsqrt.pop %v1534
    %v1537 = vmul.f32 %v1521, %v1535
    %v1538 = vmul.f32 %v1522, %v1536
    %v1539 = vlaneseq
    %v1540 = vshrl.u32 %v1539, 7
    %v1541 = vsub.s32 0, %v1540
    %v1542 = vrot.slane %v1511, %v1541
    %v1543 = vmul.f32 %v1537, %v1542
    %v1544 = vmul.f32 %v1538, %v1542
    %v1545 = vlaneseq
    %v1546 = vshrl.u32 %v1545, 7
    %v1547 = vsub.s32 0, %v1546
    %v1548 = vrot.slane %v1512, %v1547
    %v1549 = vadd.f32 %v1543, %v1548
    %v1550 = vadd.f32 %v1544, %v1548
    %v1551 = vpack.c.bf16 %v1550, %v1549
    %v1552 = vld [vmem:[#allocation2 + $0xc0] sm:$0xf]
    %v1553 = vld [vmem:[#allocation2 + $0xc4] sm:$0xf]
    %v1554 = vld [vmem:[#allocation2 + $0xc8] sm:$0xf]
    %v1555 = vld [vmem:[#allocation2 + $0xcc] sm:$0xf]
    %v1556 = vld [vmem:[%s3 + $0x51] sm:$0x1]
    %v1557 = vlaneseq
    %v1558 = vshrl.u32 %v1557, 7
    %v1559 = vsub.s32 0, %v1558
    %v1560 = vrot.slane %v1556, %v1559
    %v1565 = vunpack.c.l.b16 %v1552
    %v1566 = vunpack.c.l.b16 %v1553
    %v1567 = vunpack.c.l.b16 %v1554
    %v1568 = vunpack.c.l.b16 %v1555
    %v1569 = vpack.c.b16 %v1566, %v1565
    %v1570 = vpack.c.b16 %v1568, %v1567
    %v1574 = vsel %vm37, %v1551, 0
    %1576 = vmatprep.subr.bf16.mxu0 0
    %1577 = vmatpush1.bf16.msra.mxu0 0
    %1578 = vmatprep.subr.bf16.mxu0 0
    %1579 = vmatpush1.bf16.msra.mxu0 0
    %1580 = vmatprep.subr.bf16.mxu0 0
    %1581 = vmatpush1.bf16.msra.mxu0 0
    %1582 = vmatprep.subr.bf16.mxu0 0
    %1583 = vmatpush1.bf16.msra.mxu0 0
    %1584 = vmatprep.subr.bf16.mxu0 0
    %1585 = vmatpush1.bf16.msra.mxu0 0
    %1586 = vmatprep.subr.bf16.mxu0 0
    %1587 = vmatpush1.bf16.msra.mxu0 0
    %1588 = vmatprep.subr.bf16.mxu0 0
    %1589 = vmatpush1.bf16.msra.mxu0 %v1570
    %1590 = vmatprep.subr.bf16.mxu0 0
    %1591 = vmatpush1.bf16.msra.mxu0 %v1569
    %1592 = vmatprep.subr.bf16.mxu0 0
    %1593 = vmatpush2.bf16.msra.mxu0 0
    %1594 = vmatprep.subr.bf16.mxu0 0
    %1595 = vmatpush2.bf16.msra.mxu0 0
    %1596 = vmatprep.subr.bf16.mxu0 0
    %1597 = vmatpush2.bf16.msra.mxu0 0
    %1598 = vmatprep.subr.bf16.mxu0 0
    %1599 = vmatpush2.bf16.msra.mxu0 0
    %1600 = vmatprep.subr.bf16.mxu0 0
    %1601 = vmatpush2.bf16.msra.mxu0 0
    %1602 = vmatprep.subr.bf16.mxu0 0
    %1603 = vmatpush2.bf16.msra.mxu0 0
    %1604 = vmatprep.subr.bf16.mxu0 0
    %1605 = vmatpush2.bf16.msra.mxu0 0
    %1606 = vmatprep.subr.bf16.mxu0 0
    %1607 = vmatpush2.bf16.msra.mxu0 0
    %1608 = vmatprep.mubr.bf16.mxu0 0
    %1609 = vmatmul.mubr.bf16.gmra.mxu0 %v1574
    %v1610 = vpop.f32.mrf.mxu0
    %v1611 = vadd.f32 %v1560, %v1610
    %v1612 = vpop.f32.mrf.mxu0
    %v1613 = vpop.f32.mrf.mxu0
    %v1614 = vadd.f32 %v1560, %v1613
    %v1615 = vpop.f32.mrf.mxu0
    %1616 = vdwg.mxu0
    %v1617 = vmul.f32 %v1611, %v1611
    %v1618 = vmul.f32 %v1614, %v1614
    %v1619 = vmul.f32 %v1611, %v1617
    %v1620 = vmul.f32 %v1614, %v1618
    %v1621 = vmul.f32 %v1619, 0.044715
    %v1622 = vmul.f32 %v1620, 0.044715
    %v1623 = vadd.f32 %v1611, %v1621
    %v1624 = vadd.f32 %v1614, %v1622
    %v1625 = vmul.f32 %v1623, 0.7978846
    %v1626 = vmul.f32 %v1624, 0.7978846
    %v1627 = vtanh.pop %v1625
    %v1628 = vtanh.pop %v1626
    %v1629 = vadd.f32 %v1627, 1.0
    %v1630 = vadd.f32 %v1628, 1.0
    %v1631 = vmul.f32 %v1629, 0.5
    %v1632 = vmul.f32 %v1630, 0.5
    %v1633 = vmul.f32 %v1611, %v1631
    %v1634 = vmul.f32 %v1614, %v1632
    %v1635 = vpack.c.bf16 %v1634, %v1633
    %v1636 = vld [vmem:[#allocation2 + $0xd0] sm:$0xf]
    %v1637 = vld [vmem:[#allocation2 + $0xd4] sm:$0xf]
    %v1638 = vld [vmem:[#allocation2 + $0xd8] sm:$0xf]
    %v1639 = vld [vmem:[#allocation2 + $0xdc] sm:$0xf]
    %v1640 = vld [vmem:[#allocation2 + $0xe0] sm:$0xf]
    %v1641 = vld [vmem:[#allocation2 + $0xe4] sm:$0xf]
    %v1642 = vld [vmem:[#allocation2 + $0xe8] sm:$0xf]
    %v1643 = vld [vmem:[#allocation2 + $0xec] sm:$0xf]
    %v1644 = vld [vmem:[%s3 + $0x52] sm:$0x1]
    %v1645 = vlaneseq
    %v1646 = vshrl.u32 %v1645, 7
    %v1647 = vsub.s32 0, %v1646
    %v1648 = vrot.slane %v1644, %v1647
    %v1657 = vunpack.c.l.b16 %v1636
    %v1658 = vunpack.c.l.b16 %v1637
    %v1659 = vunpack.c.l.b16 %v1638
    %v1660 = vunpack.c.l.b16 %v1639
    %v1661 = vunpack.c.l.b16 %v1640
    %v1662 = vunpack.c.l.b16 %v1641
    %v1663 = vunpack.c.l.b16 %v1642
    %v1664 = vunpack.c.l.b16 %v1643
    %v1665 = vpack.c.b16 %v1658, %v1657
    %v1666 = vpack.c.b16 %v1660, %v1659
    %v1667 = vpack.c.b16 %v1662, %v1661
    %v1668 = vpack.c.b16 %v1664, %v1663
    %vm1673 = vcmask 523264
    %v1675 = vsel %vm1673, %v1635, 0
    %1677 = vmatprep.subr.bf16.mxu0 0
    %1678 = vmatpush1.bf16.msra.mxu0 0
    %1679 = vmatprep.subr.bf16.mxu0 0
    %1680 = vmatpush1.bf16.msra.mxu0 0
    %1681 = vmatprep.subr.bf16.mxu0 0
    %1682 = vmatpush1.bf16.msra.mxu0 0
    %1683 = vmatprep.subr.bf16.mxu0 0
    %1684 = vmatpush1.bf16.msra.mxu0 0
    %1685 = vmatprep.subr.bf16.mxu0 0
    %1686 = vmatpush1.bf16.msra.mxu0 %v1668
    %1687 = vmatprep.subr.bf16.mxu0 0
    %1688 = vmatpush1.bf16.msra.mxu0 %v1667
    %1689 = vmatprep.subr.bf16.mxu0 0
    %1690 = vmatpush1.bf16.msra.mxu0 %v1666
    %1691 = vmatprep.subr.bf16.mxu0 0
    %1692 = vmatpush1.bf16.msra.mxu0 %v1665
    %1693 = vmatprep.subr.bf16.mxu0 0
    %1694 = vmatpush2.bf16.msra.mxu0 0
    %1695 = vmatprep.subr.bf16.mxu0 0
    %1696 = vmatpush2.bf16.msra.mxu0 0
    %1697 = vmatprep.subr.bf16.mxu0 0
    %1698 = vmatpush2.bf16.msra.mxu0 0
    %1699 = vmatprep.subr.bf16.mxu0 0
    %1700 = vmatpush2.bf16.msra.mxu0 0
    %1701 = vmatprep.subr.bf16.mxu0 0
    %1702 = vmatpush2.bf16.msra.mxu0 0
    %1703 = vmatprep.subr.bf16.mxu0 0
    %1704 = vmatpush2.bf16.msra.mxu0 0
    %1705 = vmatprep.subr.bf16.mxu0 0
    %1706 = vmatpush2.bf16.msra.mxu0 0
    %1707 = vmatprep.subr.bf16.mxu0 0
    %1708 = vmatpush2.bf16.msra.mxu0 0
    %1709 = vmatprep.mubr.bf16.mxu0 0
    %1710 = vmatmul.mubr.bf16.gmra.mxu0 %v1675
    %v1711 = vpop.f32.mrf.mxu0
    %v1712 = vadd.f32 %v1648, %v1711
    %v1713 = vpop.f32.mrf.mxu0
    %v1714 = vpop.f32.mrf.mxu0
    %v1715 = vadd.f32 %v1648, %v1714
    %v1716 = vpop.f32.mrf.mxu0
    %1717 = vdwg.mxu0
    %v1718 = vadd.f32 %v1712, %v1549
    %v1719 = vadd.f32 %v1715, %v1550
    %v1720 = vld [vmem:[%s3 + $0x53] sm:$0x1]
    %v1721 = vld [vmem:[%s3 + $0x54] sm:$0x1]
    %v1722 = vsel %vm37, %v1718, 0.0
    %1723 = vadd.xlane.f32.xlu0 %v1722
    %v1724 = vpop.xlane.xlu0 %1723
    %v1725 = vsel %vm37, %v1719, 0.0
    %1726 = vadd.xlane.f32.xlu0 %v1725
    %v1727 = vpop.xlane.xlu0 %1726
    %v1728 = vmul.f32 %v1724, %v44
    %v1729 = vmul.f32 %v1727, %v44
    %v1730 = vsub.f32 %v1718, %v1728
    %v1731 = vsub.f32 %v1719, %v1729
    %v1732 = vmul.f32 %v1730, %v1730
    %v1733 = vmul.f32 %v1731, %v1731
    %v1734 = vsel %vm37, %v1732, 0.0
    %1735 = vadd.xlane.f32.xlu0 %v1734
    %v1736 = vpop.xlane.xlu0 %1735
    %v1737 = vsel %vm37, %v1733, 0.0
    %1738 = vadd.xlane.f32.xlu0 %v1737
    %v1739 = vpop.xlane.xlu0 %1738
    %v1740 = vmul.f32 %v1736, %v44
    %v1741 = vmul.f32 %v1739, %v44
    %v1742 = vadd.f32 %v1740, 1e-12
    %v1743 = vadd.f32 %v1741, 1e-12
    %v1744 = vrsqrt.pop %v1742
    %v1745 = vrsqrt.pop %v1743
    %v1746 = vmul.f32 %v1730, %v1744
    %v1747 = vmul.f32 %v1731, %v1745
    %v1748 = vlaneseq
    %v1749 = vshrl.u32 %v1748, 7
    %v1750 = vsub.s32 0, %v1749
    %v1751 = vrot.slane %v1720, %v1750
    %v1752 = vmul.f32 %v1746, %v1751
    %v1753 = vmul.f32 %v1747, %v1751
    %v1754 = vlaneseq
    %v1755 = vshrl.u32 %v1754, 7
    %v1756 = vsub.s32 0, %v1755
    %v1757 = vrot.slane %v1721, %v1756
    %v1758 = vadd.f32 %v1752, %v1757
    %v1759 = vadd.f32 %v1753, %v1757
    %v1760 = vpack.c.bf16 %v1759, %v1758
    %v1761 = vld [vmem:[%s3 + $0x20] sm:$0xff]
    %v1762 = vld [vmem:[%s3 + $0x28] sm:$0xff]
    %v1763 = vld [vmem:[%s3 + $0x30] sm:$0xff]
    %v1764 = vld [vmem:[%s3 + $0x38] sm:$0xff]
    %v1765 = vld [vmem:[#allocation2 + $0xf0] sm:$0xf]
    %v1766 = vld [vmem:[#allocation2 + $0xf4] sm:$0xf]
    %v1767 = vld [vmem:[#allocation2 + $0xf8] sm:$0xf]
    %v1768 = vld [vmem:[#allocation2 + $0xfc] sm:$0xf]
    %v1769 = vld [vmem:[%s3 + $0x55] sm:$0x1]
    %v1770 = vlaneseq
    %v1771 = vshrl.u32 %v1770, 7
    %v1772 = vsub.s32 0, %v1771
    %v1773 = vrot.slane %v1769, %v1772
    %v1778 = vunpack.c.l.b16 %v1765
    %v1779 = vunpack.c.l.b16 %v1766
    %v1780 = vunpack.c.l.b16 %v1767
    %v1781 = vunpack.c.l.b16 %v1768
    %v1782 = vpack.c.b16 %v1779, %v1778
    %v1783 = vpack.c.b16 %v1781, %v1780
    %v1787 = vsel %vm37, %v1760, 0
    %1789 = vmatprep.subr.bf16.mxu0 0
    %1790 = vmatpush1.bf16.msra.mxu0 0
    %1791 = vmatprep.subr.bf16.mxu0 0
    %1792 = vmatpush1.bf16.msra.mxu0 0
    %1793 = vmatprep.subr.bf16.mxu0 0
    %1794 = vmatpush1.bf16.msra.mxu0 0
    %1795 = vmatprep.subr.bf16.mxu0 0
    %1796 = vmatpush1.bf16.msra.mxu0 0
    %1797 = vmatprep.subr.bf16.mxu0 0
    %1798 = vmatpush1.bf16.msra.mxu0 0
    %1799 = vmatprep.subr.bf16.mxu0 0
    %1800 = vmatpush1.bf16.msra.mxu0 0
    %1801 = vmatprep.subr.bf16.mxu0 0
    %1802 = vmatpush1.bf16.msra.mxu0 %v1783
    %1803 = vmatprep.subr.bf16.mxu0 0
    %1804 = vmatpush1.bf16.msra.mxu0 %v1782
    %1805 = vmatprep.subr.bf16.mxu0 0
    %1806 = vmatpush2.bf16.msra.mxu0 0
    %1807 = vmatprep.subr.bf16.mxu0 0
    %1808 = vmatpush2.bf16.msra.mxu0 0
    %1809 = vmatprep.subr.bf16.mxu0 0
    %1810 = vmatpush2.bf16.msra.mxu0 0
    %1811 = vmatprep.subr.bf16.mxu0 0
    %1812 = vmatpush2.bf16.msra.mxu0 0
    %1813 = vmatprep.subr.bf16.mxu0 0
    %1814 = vmatpush2.bf16.msra.mxu0 0
    %1815 = vmatprep.subr.bf16.mxu0 0
    %1816 = vmatpush2.bf16.msra.mxu0 0
    %1817 = vmatprep.subr.bf16.mxu0 0
    %1818 = vmatpush2.bf16.msra.mxu0 0
    %1819 = vmatprep.subr.bf16.mxu0 0
    %1820 = vmatpush2.bf16.msra.mxu0 0
    %1821 = vmatprep.mubr.bf16.mxu0 0
    %1822 = vmatmul.mubr.bf16.gmra.mxu0 %v1787
    %v1823 = vpop.f32.mrf.mxu0
    %v1824 = vadd.f32 %v1773, %v1823
    %v1825 = vpop.f32.mrf.mxu0
    %v1826 = vpop.f32.mrf.mxu0
    %v1827 = vadd.f32 %v1773, %v1826
    %v1828 = vpop.f32.mrf.mxu0
    %1829 = vdwg.mxu0
    %v1830 = vld [vmem:[#allocation2 + $0x100] sm:$0xf]
    %v1831 = vld [vmem:[#allocation2 + $0x104] sm:$0xf]
    %v1832 = vld [vmem:[#allocation2 + $0x108] sm:$0xf]
    %v1833 = vld [vmem:[#allocation2 + $0x10c] sm:$0xf]
    %v1834 = vld [vmem:[%s3 + $0x56] sm:$0x1]
    %v1835 = vlaneseq
    %v1836 = vshrl.u32 %v1835, 7
    %v1837 = vsub.s32 0, %v1836
    %v1838 = vrot.slane %v1834, %v1837
    %v1843 = vunpack.c.l.b16 %v1830
    %v1844 = vunpack.c.l.b16 %v1831
    %v1845 = vunpack.c.l.b16 %v1832
    %v1846 = vunpack.c.l.b16 %v1833
    %v1847 = vpack.c.b16 %v1844, %v1843
    %v1848 = vpack.c.b16 %v1846, %v1845
    %1851 = vmatprep.subr.bf16.mxu0 0
    %1852 = vmatpush1.bf16.msra.mxu0 0
    %1853 = vmatprep.subr.bf16.mxu0 0
    %1854 = vmatpush1.bf16.msra.mxu0 0
    %1855 = vmatprep.subr.bf16.mxu0 0
    %1856 = vmatpush1.bf16.msra.mxu0 0
    %1857 = vmatprep.subr.bf16.mxu0 0
    %1858 = vmatpush1.bf16.msra.mxu0 0
    %1859 = vmatprep.subr.bf16.mxu0 0
    %1860 = vmatpush1.bf16.msra.mxu0 0
    %1861 = vmatprep.subr.bf16.mxu0 0
    %1862 = vmatpush1.bf16.msra.mxu0 0
    %1863 = vmatprep.subr.bf16.mxu0 0
    %1864 = vmatpush1.bf16.msra.mxu0 %v1848
    %1865 = vmatprep.subr.bf16.mxu0 0
    %1866 = vmatpush1.bf16.msra.mxu0 %v1847
    %1867 = vmatprep.subr.bf16.mxu0 0
    %1868 = vmatpush2.bf16.msra.mxu0 0
    %1869 = vmatprep.subr.bf16.mxu0 0
    %1870 = vmatpush2.bf16.msra.mxu0 0
    %1871 = vmatprep.subr.bf16.mxu0 0
    %1872 = vmatpush2.bf16.msra.mxu0 0
    %1873 = vmatprep.subr.bf16.mxu0 0
    %1874 = vmatpush2.bf16.msra.mxu0 0
    %1875 = vmatprep.subr.bf16.mxu0 0
    %1876 = vmatpush2.bf16.msra.mxu0 0
    %1877 = vmatprep.subr.bf16.mxu0 0
    %1878 = vmatpush2.bf16.msra.mxu0 0
    %1879 = vmatprep.subr.bf16.mxu0 0
    %1880 = vmatpush2.bf16.msra.mxu0 0
    %1881 = vmatprep.subr.bf16.mxu0 0
    %1882 = vmatpush2.bf16.msra.mxu0 0
    %1883 = vmatprep.mubr.bf16.mxu0 0
    %1884 = vmatmul.mubr.bf16.gmra.mxu0 %v1787
    %v1885 = vpop.f32.mrf.mxu0
    %v1886 = vadd.f32 %v1838, %v1885
    %v1887 = vpop.f32.mrf.mxu0
    %v1888 = vpop.f32.mrf.mxu0
    %v1889 = vadd.f32 %v1838, %v1888
    %v1890 = vpop.f32.mrf.mxu0
    %1891 = vdwg.mxu0
    %v1892 = vld [vmem:[#allocation2 + $0x110] sm:$0xf]
    %v1893 = vld [vmem:[#allocation2 + $0x114] sm:$0xf]
    %v1894 = vld [vmem:[#allocation2 + $0x118] sm:$0xf]
    %v1895 = vld [vmem:[#allocation2 + $0x11c] sm:$0xf]
    %v1896 = vld [vmem:[%s3 + $0x57] sm:$0x1]
    %v1897 = vlaneseq
    %v1898 = vshrl.u32 %v1897, 7
    %v1899 = vsub.s32 0, %v1898
    %v1900 = vrot.slane %v1896, %v1899
    %v1905 = vunpack.c.l.b16 %v1892
    %v1906 = vunpack.c.l.b16 %v1893
    %v1907 = vunpack.c.l.b16 %v1894
    %v1908 = vunpack.c.l.b16 %v1895
    %v1909 = vpack.c.b16 %v1906, %v1905
    %v1910 = vpack.c.b16 %v1908, %v1907
    %1913 = vmatprep.subr.bf16.mxu0 0
    %1914 = vmatpush1.bf16.msra.mxu0 0
    %1915 = vmatprep.subr.bf16.mxu0 0
    %1916 = vmatpush1.bf16.msra.mxu0 0
    %1917 = vmatprep.subr.bf16.mxu0 0
    %1918 = vmatpush1.bf16.msra.mxu0 0
    %1919 = vmatprep.subr.bf16.mxu0 0
    %1920 = vmatpush1.bf16.msra.mxu0 0
    %1921 = vmatprep.subr.bf16.mxu0 0
    %1922 = vmatpush1.bf16.msra.mxu0 0
    %1923 = vmatprep.subr.bf16.mxu0 0
    %1924 = vmatpush1.bf16.msra.mxu0 0
    %1925 = vmatprep.subr.bf16.mxu0 0
    %1926 = vmatpush1.bf16.msra.mxu0 %v1910
    %1927 = vmatprep.subr.bf16.mxu0 0
    %1928 = vmatpush1.bf16.msra.mxu0 %v1909
    %1929 = vmatprep.subr.bf16.mxu0 0
    %1930 = vmatpush2.bf16.msra.mxu0 0
    %1931 = vmatprep.subr.bf16.mxu0 0
    %1932 = vmatpush2.bf16.msra.mxu0 0
    %1933 = vmatprep.subr.bf16.mxu0 0
    %1934 = vmatpush2.bf16.msra.mxu0 0
    %1935 = vmatprep.subr.bf16.mxu0 0
    %1936 = vmatpush2.bf16.msra.mxu0 0
    %1937 = vmatprep.subr.bf16.mxu0 0
    %1938 = vmatpush2.bf16.msra.mxu0 0
    %1939 = vmatprep.subr.bf16.mxu0 0
    %1940 = vmatpush2.bf16.msra.mxu0 0
    %1941 = vmatprep.subr.bf16.mxu0 0
    %1942 = vmatpush2.bf16.msra.mxu0 0
    %1943 = vmatprep.subr.bf16.mxu0 0
    %1944 = vmatpush2.bf16.msra.mxu0 0
    %1945 = vmatprep.mubr.bf16.mxu0 0
    %1946 = vmatmul.mubr.bf16.gmra.mxu0 %v1787
    %v1947 = vpop.f32.mrf.mxu0
    %v1948 = vadd.f32 %v1900, %v1947
    %v1949 = vpop.f32.mrf.mxu0
    %v1950 = vpop.f32.mrf.mxu0
    %v1951 = vadd.f32 %v1900, %v1950
    %v1952 = vpop.f32.mrf.mxu0
    %1953 = vdwg.mxu0
    %v1954 = vpack.c.bf16 %v1827, %v1824
    %v1955 = vpack.c.bf16 %v1889, %v1886
    %v1957 = vsel %vm275, %v1954, 0
    %v1960 = vsel %vm275, %v1955, 0
    %1962 = vmatprep.subr.bf16.mxu0 0
    %1963 = vmatpush1.bf16.xpose.msra.mxu0 0
    %1964 = vmatprep.subr.bf16.mxu0 0
    %1965 = vmatpush1.bf16.xpose.msra.mxu0 0
    %1966 = vmatprep.subr.bf16.mxu0 0
    %1967 = vmatpush1.bf16.xpose.msra.mxu0 0
    %1968 = vmatprep.subr.bf16.mxu0 0
    %1969 = vmatpush1.bf16.xpose.msra.mxu0 0
    %1970 = vmatprep.subr.bf16.mxu0 0
    %1971 = vmatpush1.bf16.xpose.msra.mxu0 0
    %1972 = vmatprep.subr.bf16.mxu0 0
    %1973 = vmatpush1.bf16.xpose.msra.mxu0 0
    %1974 = vmatprep.subr.bf16.mxu0 0
    %1975 = vmatpush1.bf16.xpose.msra.mxu0 0
    %1976 = vmatprep.subr.bf16.mxu0 0
    %1977 = vmatpush1.bf16.xpose.msra.mxu0 %v1960
    %1978 = vmatprep.subr.bf16.mxu0 0
    %1979 = vmatpush2.bf16.xpose.msra.mxu0 0
    %1980 = vmatprep.subr.bf16.mxu0 0
    %1981 = vmatpush2.bf16.xpose.msra.mxu0 0
    %1982 = vmatprep.subr.bf16.mxu0 0
    %1983 = vmatpush2.bf16.xpose.msra.mxu0 0
    %1984 = vmatprep.subr.bf16.mxu0 0
    %1985 = vmatpush2.bf16.xpose.msra.mxu0 0
    %1986 = vmatprep.subr.bf16.mxu0 0
    %1987 = vmatpush2.bf16.xpose.msra.mxu0 0
    %1988 = vmatprep.subr.bf16.mxu0 0
    %1989 = vmatpush2.bf16.xpose.msra.mxu0 0
    %1990 = vmatprep.subr.bf16.mxu0 0
    %1991 = vmatpush2.bf16.xpose.msra.mxu0 0
    %1992 = vmatprep.subr.bf16.mxu0 0
    %1993 = vmatpush2.bf16.xpose.msra.mxu0 0
    %1994 = vmatprep.mubr.bf16.mxu0 0
    %1995 = vmatmul.mubr.bf16.gmra.mxu0 %v1957
    %v1996 = vpop.f32.mrf.mxu0
    %v1997 = vadd.f32 %v77, %v1996
    %v1998 = vpop.f32.mrf.mxu0
    %v1999 = vpop.f32.mrf.mxu0
    %v2000 = vadd.f32 %v78, %v1999
    %v2001 = vpop.f32.mrf.mxu0
    %2002 = vdwg.mxu0
    %v2003 = vsel %vm323, %v1997, -inf
    %2004 = vmax.xlane.f32.xlu0 %v2003
    %v2005 = vpop.xlane.xlu0 %2004
    %v2006 = vsel %vm323, %v2000, -inf
    %2007 = vmax.xlane.f32.xlu0 %v2006
    %v2008 = vpop.xlane.xlu0 %2007
    %v2009 = vsub.f32 %v1997, %v2005
    %v2010 = vsub.f32 %v2000, %v2008
    %v2011 = vmul.f32 %v2009, 1.442695
    %v2012 = vpow.pop %v2011
    %v2013 = vmul.f32 %v2010, 1.442695
    %v2014 = vpow.pop %v2013
    %v2015 = vsel %vm323, %v2012, 0.0
    %2016 = vadd.xlane.f32.xlu0 %v2015
    %v2017 = vpop.xlane.xlu0 %2016
    %v2018 = vsel %vm323, %v2014, 0.0
    %2019 = vadd.xlane.f32.xlu0 %v2018
    %v2020 = vpop.xlane.xlu0 %2019
    %v2021 = vrcp.pop %v2017
    %v2022 = vrcp.pop %v2020
    %v2023 = vmul.f32 %v2012, %v2021
    %v2024 = vmul.f32 %v2014, %v2022
    %v2025 = vpack.c.bf16 %v2024, %v2023
    %v2026 = vpack.c.bf16 %v1951, %v1948
    %v2028 = vsel %vm323, %v2025, 0
    %2030 = vmatprep.subr.bf16.mxu0 0
    %2031 = vmatpush1.bf16.msra.mxu0 0
    %2032 = vmatprep.subr.bf16.mxu0 0
    %2033 = vmatpush1.bf16.msra.mxu0 0
    %2034 = vmatprep.subr.bf16.mxu0 0
    %2035 = vmatpush1.bf16.msra.mxu0 0
    %2036 = vmatprep.subr.bf16.mxu0 0
    %2037 = vmatpush1.bf16.msra.mxu0 0
    %2038 = vmatprep.subr.bf16.mxu0 0
    %2039 = vmatpush1.bf16.msra.mxu0 0
    %2040 = vmatprep.subr.bf16.mxu0 0
    %2041 = vmatpush1.bf16.msra.mxu0 0
    %2042 = vmatprep.subr.bf16.mxu0 0
    %2043 = vmatpush1.bf16.msra.mxu0 0
    %2044 = vmatprep.subr.bf16.mxu0 0
    %2045 = vmatpush1.bf16.msra.mxu0 %v2026
    %2046 = vmatprep.subr.bf16.mxu0 0
    %2047 = vmatpush2.bf16.msra.mxu0 0
    %2048 = vmatprep.subr.bf16.mxu0 0
    %2049 = vmatpush2.bf16.msra.mxu0 0
    %2050 = vmatprep.subr.bf16.mxu0 0
    %2051 = vmatpush2.bf16.msra.mxu0 0
    %2052 = vmatprep.subr.bf16.mxu0 0
    %2053 = vmatpush2.bf16.msra.mxu0 0
    %2054 = vmatprep.subr.bf16.mxu0 0
    %2055 = vmatpush2.bf16.msra.mxu0 0
    %2056 = vmatprep.subr.bf16.mxu0 0
    %2057 = vmatpush2.bf16.msra.mxu0 0
    %2058 = vmatprep.subr.bf16.mxu0 0
    %2059 = vmatpush2.bf16.msra.mxu0 0
    %2060 = vmatprep.subr.bf16.mxu0 0
    %2061 = vmatpush2.bf16.msra.mxu0 0
    %2062 = vmatprep.mubr.bf16.mxu0 0
    %2063 = vmatmul.mubr.bf16.gmra.mxu0 %v2028
    %v2064 = vpop.f32.mrf.mxu0
    %v2065 = vadd.f32 0.0, %v2064
    %v2066 = vpop.f32.mrf.mxu0
    %v2067 = vpop.f32.mrf.mxu0
    %v2068 = vadd.f32 0.0, %v2067
    %v2069 = vpop.f32.mrf.mxu0
    %2070 = vdwg.mxu0
    %v2071 = vpack.c.bf16 %v1761, %v1761
    %v2072 = vpack.c.bf16 %v2068, %v2065
    %v2073 = vld [vmem:[#allocation2 + $0x120] sm:$0xf]
    %v2074 = vld [vmem:[#allocation2 + $0x124] sm:$0xf]
    %v2075 = vld [vmem:[#allocation2 + $0x128] sm:$0xf]
    %v2076 = vld [vmem:[#allocation2 + $0x12c] sm:$0xf]
    %v2077 = vld [vmem:[%s3 + $0x58] sm:$0x1]
    %v2078 = vlaneseq
    %v2079 = vshrl.u32 %v2078, 7
    %v2080 = vsub.s32 0, %v2079
    %v2081 = vrot.slane %v2077, %v2080
    %v2086 = vunpack.c.l.b16 %v2073
    %v2087 = vunpack.c.l.b16 %v2074
    %v2088 = vunpack.c.l.b16 %v2075
    %v2089 = vunpack.c.l.b16 %v2076
    %v2090 = vpack.c.b16 %v2087, %v2086
    %v2091 = vpack.c.b16 %v2089, %v2088
    %2094 = vmatprep.subr.bf16.mxu0 0
    %2095 = vmatpush1.bf16.msra.mxu0 0
    %2096 = vmatprep.subr.bf16.mxu0 0
    %2097 = vmatpush1.bf16.msra.mxu0 0
    %2098 = vmatprep.subr.bf16.mxu0 0
    %2099 = vmatpush1.bf16.msra.mxu0 0
    %2100 = vmatprep.subr.bf16.mxu0 0
    %2101 = vmatpush1.bf16.msra.mxu0 0
    %2102 = vmatprep.subr.bf16.mxu0 0
    %2103 = vmatpush1.bf16.msra.mxu0 0
    %2104 = vmatprep.subr.bf16.mxu0 0
    %2105 = vmatpush1.bf16.msra.mxu0 0
    %2106 = vmatprep.subr.bf16.mxu0 0
    %2107 = vmatpush1.bf16.msra.mxu0 %v2091
    %2108 = vmatprep.subr.bf16.mxu0 0
    %2109 = vmatpush1.bf16.msra.mxu0 %v2090
    %2110 = vmatprep.subr.bf16.mxu0 0
    %2111 = vmatpush2.bf16.msra.mxu0 0
    %2112 = vmatprep.subr.bf16.mxu0 0
    %2113 = vmatpush2.bf16.msra.mxu0 0
    %2114 = vmatprep.subr.bf16.mxu0 0
    %2115 = vmatpush2.bf16.msra.mxu0 0
    %2116 = vmatprep.subr.bf16.mxu0 0
    %2117 = vmatpush2.bf16.msra.mxu0 0
    %2118 = vmatprep.subr.bf16.mxu0 0
    %2119 = vmatpush2.bf16.msra.mxu0 0
    %2120 = vmatprep.subr.bf16.mxu0 0
    %2121 = vmatpush2.bf16.msra.mxu0 0
    %2122 = vmatprep.subr.bf16.mxu0 0
    %2123 = vmatpush2.bf16.msra.mxu0 0
    %2124 = vmatprep.subr.bf16.mxu0 0
    %2125 = vmatpush2.bf16.msra.mxu0 0
    %2126 = vmatprep.mubr.bf16.mxu0 0
    %2127 = vmatmul.mubr.bf16.gmra.mxu0 %v1787
    %v2128 = vpop.f32.mrf.mxu0
    %v2129 = vadd.f32 %v2081, %v2128
    %v2130 = vpop.f32.mrf.mxu0
    %v2131 = vpop.f32.mrf.mxu0
    %v2132 = vadd.f32 %v2081, %v2131
    %v2133 = vpop.f32.mrf.mxu0
    %2134 = vdwg.mxu0
    %v2135 = vld [vmem:[#allocation2 + $0x130] sm:$0xf]
    %v2136 = vld [vmem:[#allocation2 + $0x134] sm:$0xf]
    %v2137 = vld [vmem:[#allocation2 + $0x138] sm:$0xf]
    %v2138 = vld [vmem:[#allocation2 + $0x13c] sm:$0xf]
    %v2139 = vld [vmem:[%s3 + $0x59] sm:$0x1]
    %v2140 = vlaneseq
    %v2141 = vshrl.u32 %v2140, 7
    %v2142 = vsub.s32 0, %v2141
    %v2143 = vrot.slane %v2139, %v2142
    %v2148 = vunpack.c.l.b16 %v2135
    %v2149 = vunpack.c.l.b16 %v2136
    %v2150 = vunpack.c.l.b16 %v2137
    %v2151 = vunpack.c.l.b16 %v2138
    %v2152 = vpack.c.b16 %v2149, %v2148
    %v2153 = vpack.c.b16 %v2151, %v2150
    %2156 = vmatprep.subr.bf16.mxu0 0
    %2157 = vmatpush1.bf16.msra.mxu0 0
    %2158 = vmatprep.subr.bf16.mxu0 0
    %2159 = vmatpush1.bf16.msra.mxu0 0
    %2160 = vmatprep.subr.bf16.mxu0 0
    %2161 = vmatpush1.bf16.msra.mxu0 0
    %2162 = vmatprep.subr.bf16.mxu0 0
    %2163 = vmatpush1.bf16.msra.mxu0 0
    %2164 = vmatprep.subr.bf16.mxu0 0
    %2165 = vmatpush1.bf16.msra.mxu0 0
    %2166 = vmatprep.subr.bf16.mxu0 0
    %2167 = vmatpush1.bf16.msra.mxu0 0
    %2168 = vmatprep.subr.bf16.mxu0 0
    %2169 = vmatpush1.bf16.msra.mxu0 %v2153
    %2170 = vmatprep.subr.bf16.mxu0 0
    %2171 = vmatpush1.bf16.msra.mxu0 %v2152
    %2172 = vmatprep.subr.bf16.mxu0 0
    %2173 = vmatpush2.bf16.msra.mxu0 0
    %2174 = vmatprep.subr.bf16.mxu0 0
    %2175 = vmatpush2.bf16.msra.mxu0 0
    %2176 = vmatprep.subr.bf16.mxu0 0
    %2177 = vmatpush2.bf16.msra.mxu0 0
    %2178 = vmatprep.subr.bf16.mxu0 0
    %2179 = vmatpush2.bf16.msra.mxu0 0
    %2180 = vmatprep.subr.bf16.mxu0 0
    %2181 = vmatpush2.bf16.msra.mxu0 0
    %2182 = vmatprep.subr.bf16.mxu0 0
    %2183 = vmatpush2.bf16.msra.mxu0 0
    %2184 = vmatprep.subr.bf16.mxu0 0
    %2185 = vmatpush2.bf16.msra.mxu0 0
    %2186 = vmatprep.subr.bf16.mxu0 0
    %2187 = vmatpush2.bf16.msra.mxu0 0
    %2188 = vmatprep.mubr.bf16.mxu0 0
    %2189 = vmatmul.mubr.bf16.gmra.mxu0 %v1787
    %v2190 = vpop.f32.mrf.mxu0
    %v2191 = vadd.f32 %v2143, %v2190
    %v2192 = vpop.f32.mrf.mxu0
    %v2193 = vpop.f32.mrf.mxu0
    %v2194 = vadd.f32 %v2143, %v2193
    %v2195 = vpop.f32.mrf.mxu0
    %2196 = vdwg.mxu0
    %v2197 = vld [vmem:[#allocation2 + $0x140] sm:$0xf]
    %v2198 = vld [vmem:[#allocation2 + $0x144] sm:$0xf]
    %v2199 = vld [vmem:[#allocation2 + $0x148] sm:$0xf]
    %v2200 = vld [vmem:[#allocation2 + $0x14c] sm:$0xf]
    %v2201 = vld [vmem:[%s3 + $0x5a] sm:$0x1]
    %v2202 = vlaneseq
    %v2203 = vshrl.u32 %v2202, 7
    %v2204 = vsub.s32 0, %v2203
    %v2205 = vrot.slane %v2201, %v2204
    %v2210 = vunpack.c.l.b16 %v2197
    %v2211 = vunpack.c.l.b16 %v2198
    %v2212 = vunpack.c.l.b16 %v2199
    %v2213 = vunpack.c.l.b16 %v2200
    %v2214 = vpack.c.b16 %v2211, %v2210
    %v2215 = vpack.c.b16 %v2213, %v2212
    %2218 = vmatprep.subr.bf16.mxu0 0
    %2219 = vmatpush1.bf16.msra.mxu0 0
    %2220 = vmatprep.subr.bf16.mxu0 0
    %2221 = vmatpush1.bf16.msra.mxu0 0
    %2222 = vmatprep.subr.bf16.mxu0 0
    %2223 = vmatpush1.bf16.msra.mxu0 0
    %2224 = vmatprep.subr.bf16.mxu0 0
    %2225 = vmatpush1.bf16.msra.mxu0 0
    %2226 = vmatprep.subr.bf16.mxu0 0
    %2227 = vmatpush1.bf16.msra.mxu0 0
    %2228 = vmatprep.subr.bf16.mxu0 0
    %2229 = vmatpush1.bf16.msra.mxu0 0
    %2230 = vmatprep.subr.bf16.mxu0 0
    %2231 = vmatpush1.bf16.msra.mxu0 %v2215
    %2232 = vmatprep.subr.bf16.mxu0 0
    %2233 = vmatpush1.bf16.msra.mxu0 %v2214
    %2234 = vmatprep.subr.bf16.mxu0 0
    %2235 = vmatpush2.bf16.msra.mxu0 0
    %2236 = vmatprep.subr.bf16.mxu0 0
    %2237 = vmatpush2.bf16.msra.mxu0 0
    %2238 = vmatprep.subr.bf16.mxu0 0
    %2239 = vmatpush2.bf16.msra.mxu0 0
    %2240 = vmatprep.subr.bf16.mxu0 0
    %2241 = vmatpush2.bf16.msra.mxu0 0
    %2242 = vmatprep.subr.bf16.mxu0 0
    %2243 = vmatpush2.bf16.msra.mxu0 0
    %2244 = vmatprep.subr.bf16.mxu0 0
    %2245 = vmatpush2.bf16.msra.mxu0 0
    %2246 = vmatprep.subr.bf16.mxu0 0
    %2247 = vmatpush2.bf16.msra.mxu0 0
    %2248 = vmatprep.subr.bf16.mxu0 0
    %2249 = vmatpush2.bf16.msra.mxu0 0
    %2250 = vmatprep.mubr.bf16.mxu0 0
    %2251 = vmatmul.mubr.bf16.gmra.mxu0 %v1787
    %v2252 = vpop.f32.mrf.mxu0
    %v2253 = vadd.f32 %v2205, %v2252
    %v2254 = vpop.f32.mrf.mxu0
    %v2255 = vpop.f32.mrf.mxu0
    %v2256 = vadd.f32 %v2205, %v2255
    %v2257 = vpop.f32.mrf.mxu0
    %2258 = vdwg.mxu0
    %v2259 = vpack.c.bf16 %v2132, %v2129
    %v2260 = vpack.c.bf16 %v2194, %v2191
    %v2262 = vsel %vm275, %v2259, 0
    %v2265 = vsel %vm275, %v2260, 0
    %2267 = vmatprep.subr.bf16.mxu0 0
    %2268 = vmatpush1.bf16.xpose.msra.mxu0 0
    %2269 = vmatprep.subr.bf16.mxu0 0
    %2270 = vmatpush1.bf16.xpose.msra.mxu0 0
    %2271 = vmatprep.subr.bf16.mxu0 0
    %2272 = vmatpush1.bf16.xpose.msra.mxu0 0
    %2273 = vmatprep.subr.bf16.mxu0 0
    %2274 = vmatpush1.bf16.xpose.msra.mxu0 0
    %2275 = vmatprep.subr.bf16.mxu0 0
    %2276 = vmatpush1.bf16.xpose.msra.mxu0 0
    %2277 = vmatprep.subr.bf16.mxu0 0
    %2278 = vmatpush1.bf16.xpose.msra.mxu0 0
    %2279 = vmatprep.subr.bf16.mxu0 0
    %2280 = vmatpush1.bf16.xpose.msra.mxu0 0
    %2281 = vmatprep.subr.bf16.mxu0 0
    %2282 = vmatpush1.bf16.xpose.msra.mxu0 %v2265
    %2283 = vmatprep.subr.bf16.mxu0 0
    %2284 = vmatpush2.bf16.xpose.msra.mxu0 0
    %2285 = vmatprep.subr.bf16.mxu0 0
    %2286 = vmatpush2.bf16.xpose.msra.mxu0 0
    %2287 = vmatprep.subr.bf16.mxu0 0
    %2288 = vmatpush2.bf16.xpose.msra.mxu0 0
    %2289 = vmatprep.subr.bf16.mxu0 0
    %2290 = vmatpush2.bf16.xpose.msra.mxu0 0
    %2291 = vmatprep.subr.bf16.mxu0 0
    %2292 = vmatpush2.bf16.xpose.msra.mxu0 0
    %2293 = vmatprep.subr.bf16.mxu0 0
    %2294 = vmatpush2.bf16.xpose.msra.mxu0 0
    %2295 = vmatprep.subr.bf16.mxu0 0
    %2296 = vmatpush2.bf16.xpose.msra.mxu0 0
    %2297 = vmatprep.subr.bf16.mxu0 0
    %2298 = vmatpush2.bf16.xpose.msra.mxu0 0
    %2299 = vmatprep.mubr.bf16.mxu0 0
    %2300 = vmatmul.mubr.bf16.gmra.mxu0 %v2262
    %v2301 = vpop.f32.mrf.mxu0
    %v2302 = vadd.f32 %v77, %v2301
    %v2303 = vpop.f32.mrf.mxu0
    %v2304 = vpop.f32.mrf.mxu0
    %v2305 = vadd.f32 %v78, %v2304
    %v2306 = vpop.f32.mrf.mxu0
    %2307 = vdwg.mxu0
    %v2308 = vsel %vm323, %v2302, -inf
    %2309 = vmax.xlane.f32.xlu0 %v2308
    %v2310 = vpop.xlane.xlu0 %2309
    %v2311 = vsel %vm323, %v2305, -inf
    %2312 = vmax.xlane.f32.xlu0 %v2311
    %v2313 = vpop.xlane.xlu0 %2312
    %v2314 = vsub.f32 %v2302, %v2310
    %v2315 = vsub.f32 %v2305, %v2313
    %v2316 = vmul.f32 %v2314, 1.442695
    %v2317 = vpow.pop %v2316
    %v2318 = vmul.f32 %v2315, 1.442695
    %v2319 = vpow.pop %v2318
    %v2320 = vsel %vm323, %v2317, 0.0
    %2321 = vadd.xlane.f32.xlu0 %v2320
    %v2322 = vpop.xlane.xlu0 %2321
    %v2323 = vsel %vm323, %v2319, 0.0
    %2324 = vadd.xlane.f32.xlu0 %v2323
    %v2325 = vpop.xlane.xlu0 %2324
    %v2326 = vrcp.pop %v2322
    %v2327 = vrcp.pop %v2325
    %v2328 = vmul.f32 %v2317, %v2326
    %v2329 = vmul.f32 %v2319, %v2327
    %v2330 = vpack.c.bf16 %v2329, %v2328
    %v2331 = vpack.c.bf16 %v2256, %v2253
    %v2333 = vsel %vm323, %v2330, 0
    %2335 = vmatprep.subr.bf16.mxu0 0
    %2336 = vmatpush1.bf16.msra.mxu0 0
    %2337 = vmatprep.subr.bf16.mxu0 0
    %2338 = vmatpush1.bf16.msra.mxu0 0
    %2339 = vmatprep.subr.bf16.mxu0 0
    %2340 = vmatpush1.bf16.msra.mxu0 0
    %2341 = vmatprep.subr.bf16.mxu0 0
    %2342 = vmatpush1.bf16.msra.mxu0 0
    %2343 = vmatprep.subr.bf16.mxu0 0
    %2344 = vmatpush1.bf16.msra.mxu0 0
    %2345 = vmatprep.subr.bf16.mxu0 0
    %2346 = vmatpush1.bf16.msra.mxu0 0
    %2347 = vmatprep.subr.bf16.mxu0 0
    %2348 = vmatpush1.bf16.msra.mxu0 0
    %2349 = vmatprep.subr.bf16.mxu0 0
    %2350 = vmatpush1.bf16.msra.mxu0 %v2331
    %2351 = vmatprep.subr.bf16.mxu0 0
    %2352 = vmatpush2.bf16.msra.mxu0 0
    %2353 = vmatprep.subr.bf16.mxu0 0
    %2354 = vmatpush2.bf16.msra.mxu0 0
    %2355 = vmatprep.subr.bf16.mxu0 0
    %2356 = vmatpush2.bf16.msra.mxu0 0
    %2357 = vmatprep.subr.bf16.mxu0 0
    %2358 = vmatpush2.bf16.msra.mxu0 0
    %2359 = vmatprep.subr.bf16.mxu0 0
    %2360 = vmatpush2.bf16.msra.mxu0 0
    %2361 = vmatprep.subr.bf16.mxu0 0
    %2362 = vmatpush2.bf16.msra.mxu0 0
    %2363 = vmatprep.subr.bf16.mxu0 0
    %2364 = vmatpush2.bf16.msra.mxu0 0
    %2365 = vmatprep.subr.bf16.mxu0 0
    %2366 = vmatpush2.bf16.msra.mxu0 0
    %2367 = vmatprep.mubr.bf16.mxu0 0
    %2368 = vmatmul.mubr.bf16.gmra.mxu0 %v2333
    %v2369 = vpop.f32.mrf.mxu0
    %v2370 = vadd.f32 0.0, %v2369
    %v2371 = vpop.f32.mrf.mxu0
    %v2372 = vpop.f32.mrf.mxu0
    %v2373 = vadd.f32 0.0, %v2372
    %v2374 = vpop.f32.mrf.mxu0
    %2375 = vdwg.mxu0
    %v2376 = vpack.c.bf16 %v1762, %v1762
    %v2377 = vpack.c.bf16 %v2373, %v2370
    %v2379 = vsel %vm275, %v2377, 0
    %v2382 = vsel %vm702, %v2376, 0
    %2384 = vmatprep.subr.bf16.mxu0 0
    %2385 = vmatpush1.bf16.msra.mxu0 0
    %2386 = vmatprep.subr.bf16.mxu0 0
    %2387 = vmatpush1.bf16.msra.mxu0 0
    %2388 = vmatprep.subr.bf16.mxu0 0
    %2389 = vmatpush1.bf16.msra.mxu0 0
    %2390 = vmatprep.subr.bf16.mxu0 0
    %2391 = vmatpush1.bf16.msra.mxu0 0
    %2392 = vmatprep.subr.bf16.mxu0 0
    %2393 = vmatpush1.bf16.msra.mxu0 0
    %2394 = vmatprep.subr.bf16.mxu0 0
    %2395 = vmatpush1.bf16.msra.mxu0 0
    %2396 = vmatprep.subr.bf16.mxu0 0
    %2397 = vmatpush1.bf16.msra.mxu0 0
    %2398 = vmatprep.subr.bf16.mxu0 0
    %2399 = vmatpush1.bf16.msra.mxu0 %v2382
    %2400 = vmatprep.subr.bf16.mxu0 0
    %2401 = vmatpush2.bf16.msra.mxu0 0
    %2402 = vmatprep.subr.bf16.mxu0 0
    %2403 = vmatpush2.bf16.msra.mxu0 0
    %2404 = vmatprep.subr.bf16.mxu0 0
    %2405 = vmatpush2.bf16.msra.mxu0 0
    %2406 = vmatprep.subr.bf16.mxu0 0
    %2407 = vmatpush2.bf16.msra.mxu0 0
    %2408 = vmatprep.subr.bf16.mxu0 0
    %2409 = vmatpush2.bf16.msra.mxu0 0
    %2410 = vmatprep.subr.bf16.mxu0 0
    %2411 = vmatpush2.bf16.msra.mxu0 0
    %2412 = vmatprep.subr.bf16.mxu0 0
    %2413 = vmatpush2.bf16.msra.mxu0 0
    %2414 = vmatprep.subr.bf16.mxu0 0
    %2415 = vmatpush2.bf16.msra.mxu0 0
    %2416 = vmatprep.mubr.bf16.mxu0 0
    %2417 = vmatmul.mubr.bf16.gmra.mxu0 %v2379
    %v2418 = vpop.f32.mrf.mxu0
    %v2419 = vadd.f32 0.0, %v2418
    %v2420 = vpop.f32.mrf.mxu0
    %v2421 = vpop.f32.mrf.mxu0
    %v2422 = vadd.f32 0.0, %v2421
    %v2423 = vpop.f32.mrf.mxu0
    %2424 = vdwg.mxu0
    %v2426 = vsel %vm275, %v2072, 0
    %v2429 = vsel %vm702, %v2071, 0
    %2431 = vmatprep.subr.bf16.mxu0 0
    %2432 = vmatpush1.bf16.msra.mxu0 0
    %2433 = vmatprep.subr.bf16.mxu0 0
    %2434 = vmatpush1.bf16.msra.mxu0 0
    %2435 = vmatprep.subr.bf16.mxu0 0
    %2436 = vmatpush1.bf16.msra.mxu0 0
    %2437 = vmatprep.subr.bf16.mxu0 0
    %2438 = vmatpush1.bf16.msra.mxu0 0
    %2439 = vmatprep.subr.bf16.mxu0 0
    %2440 = vmatpush1.bf16.msra.mxu0 0
    %2441 = vmatprep.subr.bf16.mxu0 0
    %2442 = vmatpush1.bf16.msra.mxu0 0
    %2443 = vmatprep.subr.bf16.mxu0 0
    %2444 = vmatpush1.bf16.msra.mxu0 0
    %2445 = vmatprep.subr.bf16.mxu0 0
    %2446 = vmatpush1.bf16.msra.mxu0 %v2429
    %2447 = vmatprep.subr.bf16.mxu0 0
    %2448 = vmatpush2.bf16.msra.mxu0 0
    %2449 = vmatprep.subr.bf16.mxu0 0
    %2450 = vmatpush2.bf16.msra.mxu0 0
    %2451 = vmatprep.subr.bf16.mxu0 0
    %2452 = vmatpush2.bf16.msra.mxu0 0
    %2453 = vmatprep.subr.bf16.mxu0 0
    %2454 = vmatpush2.bf16.msra.mxu0 0
    %2455 = vmatprep.subr.bf16.mxu0 0
    %2456 = vmatpush2.bf16.msra.mxu0 0
    %2457 = vmatprep.subr.bf16.mxu0 0
    %2458 = vmatpush2.bf16.msra.mxu0 0
    %2459 = vmatprep.subr.bf16.mxu0 0
    %2460 = vmatpush2.bf16.msra.mxu0 0
    %2461 = vmatprep.subr.bf16.mxu0 0
    %2462 = vmatpush2.bf16.msra.mxu0 0
    %2463 = vmatprep.mubr.bf16.mxu0 0
    %2464 = vmatmul.mubr.bf16.gmra.mxu0 %v2426
    %v2465 = vpop.f32.mrf.mxu0
    %v2466 = vadd.f32 %v2419, %v2465
    %v2467 = vpop.f32.mrf.mxu0
    %v2468 = vpop.f32.mrf.mxu0
    %v2469 = vadd.f32 %v2422, %v2468
    %v2470 = vpop.f32.mrf.mxu0
    %2471 = vdwg.mxu0
    %v2472 = vld [vmem:[#allocation2 + $0x150] sm:$0xf]
    %v2473 = vld [vmem:[#allocation2 + $0x154] sm:$0xf]
    %v2474 = vld [vmem:[#allocation2 + $0x158] sm:$0xf]
    %v2475 = vld [vmem:[#allocation2 + $0x15c] sm:$0xf]
    %v2476 = vld [vmem:[%s3 + $0x5b] sm:$0x1]
    %v2477 = vlaneseq
    %v2478 = vshrl.u32 %v2477, 7
    %v2479 = vsub.s32 0, %v2478
    %v2480 = vrot.slane %v2476, %v2479
    %v2485 = vunpack.c.l.b16 %v2472
    %v2486 = vunpack.c.l.b16 %v2473
    %v2487 = vunpack.c.l.b16 %v2474
    %v2488 = vunpack.c.l.b16 %v2475
    %v2489 = vpack.c.b16 %v2486, %v2485
    %v2490 = vpack.c.b16 %v2488, %v2487
    %2493 = vmatprep.subr.bf16.mxu0 0
    %2494 = vmatpush1.bf16.msra.mxu0 0
    %2495 = vmatprep.subr.bf16.mxu0 0
    %2496 = vmatpush1.bf16.msra.mxu0 0
    %2497 = vmatprep.subr.bf16.mxu0 0
    %2498 = vmatpush1.bf16.msra.mxu0 0
    %2499 = vmatprep.subr.bf16.mxu0 0
    %2500 = vmatpush1.bf16.msra.mxu0 0
    %2501 = vmatprep.subr.bf16.mxu0 0
    %2502 = vmatpush1.bf16.msra.mxu0 0
    %2503 = vmatprep.subr.bf16.mxu0 0
    %2504 = vmatpush1.bf16.msra.mxu0 0
    %2505 = vmatprep.subr.bf16.mxu0 0
    %2506 = vmatpush1.bf16.msra.mxu0 %v2490
    %2507 = vmatprep.subr.bf16.mxu0 0
    %2508 = vmatpush1.bf16.msra.mxu0 %v2489
    %2509 = vmatprep.subr.bf16.mxu0 0
    %2510 = vmatpush2.bf16.msra.mxu0 0
    %2511 = vmatprep.subr.bf16.mxu0 0
    %2512 = vmatpush2.bf16.msra.mxu0 0
    %2513 = vmatprep.subr.bf16.mxu0 0
    %2514 = vmatpush2.bf16.msra.mxu0 0
    %2515 = vmatprep.subr.bf16.mxu0 0
    %2516 = vmatpush2.bf16.msra.mxu0 0
    %2517 = vmatprep.subr.bf16.mxu0 0
    %2518 = vmatpush2.bf16.msra.mxu0 0
    %2519 = vmatprep.subr.bf16.mxu0 0
    %2520 = vmatpush2.bf16.msra.mxu0 0
    %2521 = vmatprep.subr.bf16.mxu0 0
    %2522 = vmatpush2.bf16.msra.mxu0 0
    %2523 = vmatprep.subr.bf16.mxu0 0
    %2524 = vmatpush2.bf16.msra.mxu0 0
    %2525 = vmatprep.mubr.bf16.mxu0 0
    %2526 = vmatmul.mubr.bf16.gmra.mxu0 %v1787
    %v2527 = vpop.f32.mrf.mxu0
    %v2528 = vadd.f32 %v2480, %v2527
    %v2529 = vpop.f32.mrf.mxu0
    %v2530 = vpop.f32.mrf.mxu0
    %v2531 = vadd.f32 %v2480, %v2530
    %v2532 = vpop.f32.mrf.mxu0
    %2533 = vdwg.mxu0
    %v2534 = vld [vmem:[#allocation2 + $0x160] sm:$0xf]
    %v2535 = vld [vmem:[#allocation2 + $0x164] sm:$0xf]
    %v2536 = vld [vmem:[#allocation2 + $0x168] sm:$0xf]
    %v2537 = vld [vmem:[#allocation2 + $0x16c] sm:$0xf]
    %v2538 = vld [vmem:[%s3 + $0x5c] sm:$0x1]
    %v2539 = vlaneseq
    %v2540 = vshrl.u32 %v2539, 7
    %v2541 = vsub.s32 0, %v2540
    %v2542 = vrot.slane %v2538, %v2541
    %v2547 = vunpack.c.l.b16 %v2534
    %v2548 = vunpack.c.l.b16 %v2535
    %v2549 = vunpack.c.l.b16 %v2536
    %v2550 = vunpack.c.l.b16 %v2537
    %v2551 = vpack.c.b16 %v2548, %v2547
    %v2552 = vpack.c.b16 %v2550, %v2549
    %2555 = vmatprep.subr.bf16.mxu0 0
    %2556 = vmatpush1.bf16.msra.mxu0 0
    %2557 = vmatprep.subr.bf16.mxu0 0
    %2558 = vmatpush1.bf16.msra.mxu0 0
    %2559 = vmatprep.subr.bf16.mxu0 0
    %2560 = vmatpush1.bf16.msra.mxu0 0
    %2561 = vmatprep.subr.bf16.mxu0 0
    %2562 = vmatpush1.bf16.msra.mxu0 0
    %2563 = vmatprep.subr.bf16.mxu0 0
    %2564 = vmatpush1.bf16.msra.mxu0 0
    %2565 = vmatprep.subr.bf16.mxu0 0
    %2566 = vmatpush1.bf16.msra.mxu0 0
    %2567 = vmatprep.subr.bf16.mxu0 0
    %2568 = vmatpush1.bf16.msra.mxu0 %v2552
    %2569 = vmatprep.subr.bf16.mxu0 0
    %2570 = vmatpush1.bf16.msra.mxu0 %v2551
    %2571 = vmatprep.subr.bf16.mxu0 0
    %2572 = vmatpush2.bf16.msra.mxu0 0
    %2573 = vmatprep.subr.bf16.mxu0 0
    %2574 = vmatpush2.bf16.msra.mxu0 0
    %2575 = vmatprep.subr.bf16.mxu0 0
    %2576 = vmatpush2.bf16.msra.mxu0 0
    %2577 = vmatprep.subr.bf16.mxu0 0
    %2578 = vmatpush2.bf16.msra.mxu0 0
    %2579 = vmatprep.subr.bf16.mxu0 0
    %2580 = vmatpush2.bf16.msra.mxu0 0
    %2581 = vmatprep.subr.bf16.mxu0 0
    %2582 = vmatpush2.bf16.msra.mxu0 0
    %2583 = vmatprep.subr.bf16.mxu0 0
    %2584 = vmatpush2.bf16.msra.mxu0 0
    %2585 = vmatprep.subr.bf16.mxu0 0
    %2586 = vmatpush2.bf16.msra.mxu0 0
    %2587 = vmatprep.mubr.bf16.mxu0 0
    %2588 = vmatmul.mubr.bf16.gmra.mxu0 %v1787
    %v2589 = vpop.f32.mrf.mxu0
    %v2590 = vadd.f32 %v2542, %v2589
    %v2591 = vpop.f32.mrf.mxu0
    %v2592 = vpop.f32.mrf.mxu0
    %v2593 = vadd.f32 %v2542, %v2592
    %v2594 = vpop.f32.mrf.mxu0
    %2595 = vdwg.mxu0
    %v2596 = vld [vmem:[#allocation2 + $0x170] sm:$0xf]
    %v2597 = vld [vmem:[#allocation2 + $0x174] sm:$0xf]
    %v2598 = vld [vmem:[#allocation2 + $0x178] sm:$0xf]
    %v2599 = vld [vmem:[#allocation2 + $0x17c] sm:$0xf]
    %v2600 = vld [vmem:[%s3 + $0x5d] sm:$0x1]
    %v2601 = vlaneseq
    %v2602 = vshrl.u32 %v2601, 7
    %v2603 = vsub.s32 0, %v2602
    %v2604 = vrot.slane %v2600, %v2603
    %v2609 = vunpack.c.l.b16 %v2596
    %v2610 = vunpack.c.l.b16 %v2597
    %v2611 = vunpack.c.l.b16 %v2598
    %v2612 = vunpack.c.l.b16 %v2599
    %v2613 = vpack.c.b16 %v2610, %v2609
    %v2614 = vpack.c.b16 %v2612, %v2611
    %2617 = vmatprep.subr.bf16.mxu0 0
    %2618 = vmatpush1.bf16.msra.mxu0 0
    %2619 = vmatprep.subr.bf16.mxu0 0
    %2620 = vmatpush1.bf16.msra.mxu0 0
    %2621 = vmatprep.subr.bf16.mxu0 0
    %2622 = vmatpush1.bf16.msra.mxu0 0
    %2623 = vmatprep.subr.bf16.mxu0 0
    %2624 = vmatpush1.bf16.msra.mxu0 0
    %2625 = vmatprep.subr.bf16.mxu0 0
    %2626 = vmatpush1.bf16.msra.mxu0 0
    %2627 = vmatprep.subr.bf16.mxu0 0
    %2628 = vmatpush1.bf16.msra.mxu0 0
    %2629 = vmatprep.subr.bf16.mxu0 0
    %2630 = vmatpush1.bf16.msra.mxu0 %v2614
    %2631 = vmatprep.subr.bf16.mxu0 0
    %2632 = vmatpush1.bf16.msra.mxu0 %v2613
    %2633 = vmatprep.subr.bf16.mxu0 0
    %2634 = vmatpush2.bf16.msra.mxu0 0
    %2635 = vmatprep.subr.bf16.mxu0 0
    %2636 = vmatpush2.bf16.msra.mxu0 0
    %2637 = vmatprep.subr.bf16.mxu0 0
    %2638 = vmatpush2.bf16.msra.mxu0 0
    %2639 = vmatprep.subr.bf16.mxu0 0
    %2640 = vmatpush2.bf16.msra.mxu0 0
    %2641 = vmatprep.subr.bf16.mxu0 0
    %2642 = vmatpush2.bf16.msra.mxu0 0
    %2643 = vmatprep.subr.bf16.mxu0 0
    %2644 = vmatpush2.bf16.msra.mxu0 0
    %2645 = vmatprep.subr.bf16.mxu0 0
    %2646 = vmatpush2.bf16.msra.mxu0 0
    %2647 = vmatprep.subr.bf16.mxu0 0
    %2648 = vmatpush2.bf16.msra.mxu0 0
    %2649 = vmatprep.mubr.bf16.mxu0 0
    %2650 = vmatmul.mubr.bf16.gmra.mxu0 %v1787
    %v2651 = vpop.f32.mrf.mxu0
    %v2652 = vadd.f32 %v2604, %v2651
    %v2653 = vpop.f32.mrf.mxu0
    %v2654 = vpop.f32.mrf.mxu0
    %v2655 = vadd.f32 %v2604, %v2654
    %v2656 = vpop.f32.mrf.mxu0
    %2657 = vdwg.mxu0
    %v2658 = vpack.c.bf16 %v2531, %v2528
    %v2659 = vpack.c.bf16 %v2593, %v2590
    %v2661 = vsel %vm275, %v2658, 0
    %v2664 = vsel %vm275, %v2659, 0
    %2666 = vmatprep.subr.bf16.mxu0 0
    %2667 = vmatpush1.bf16.xpose.msra.mxu0 0
    %2668 = vmatprep.subr.bf16.mxu0 0
    %2669 = vmatpush1.bf16.xpose.msra.mxu0 0
    %2670 = vmatprep.subr.bf16.mxu0 0
    %2671 = vmatpush1.bf16.xpose.msra.mxu0 0
    %2672 = vmatprep.subr.bf16.mxu0 0
    %2673 = vmatpush1.bf16.xpose.msra.mxu0 0
    %2674 = vmatprep.subr.bf16.mxu0 0
    %2675 = vmatpush1.bf16.xpose.msra.mxu0 0
    %2676 = vmatprep.subr.bf16.mxu0 0
    %2677 = vmatpush1.bf16.xpose.msra.mxu0 0
    %2678 = vmatprep.subr.bf16.mxu0 0
    %2679 = vmatpush1.bf16.xpose.msra.mxu0 0
    %2680 = vmatprep.subr.bf16.mxu0 0
    %2681 = vmatpush1.bf16.xpose.msra.mxu0 %v2664
    %2682 = vmatprep.subr.bf16.mxu0 0
    %2683 = vmatpush2.bf16.xpose.msra.mxu0 0
    %2684 = vmatprep.subr.bf16.mxu0 0
    %2685 = vmatpush2.bf16.xpose.msra.mxu0 0
    %2686 = vmatprep.subr.bf16.mxu0 0
    %2687 = vmatpush2.bf16.xpose.msra.mxu0 0
    %2688 = vmatprep.subr.bf16.mxu0 0
    %2689 = vmatpush2.bf16.xpose.msra.mxu0 0
    %2690 = vmatprep.subr.bf16.mxu0 0
    %2691 = vmatpush2.bf16.xpose.msra.mxu0 0
    %2692 = vmatprep.subr.bf16.mxu0 0
    %2693 = vmatpush2.bf16.xpose.msra.mxu0 0
    %2694 = vmatprep.subr.bf16.mxu0 0
    %2695 = vmatpush2.bf16.xpose.msra.mxu0 0
    %2696 = vmatprep.subr.bf16.mxu0 0
    %2697 = vmatpush2.bf16.xpose.msra.mxu0 0
    %2698 = vmatprep.mubr.bf16.mxu0 0
    %2699 = vmatmul.mubr.bf16.gmra.mxu0 %v2661
    %v2700 = vpop.f32.mrf.mxu0
    %v2701 = vadd.f32 %v77, %v2700
    %v2702 = vpop.f32.mrf.mxu0
    %v2703 = vpop.f32.mrf.mxu0
    %v2704 = vadd.f32 %v78, %v2703
    %v2705 = vpop.f32.mrf.mxu0
    %2706 = vdwg.mxu0
    %v2707 = vsel %vm323, %v2701, -inf
    %2708 = vmax.xlane.f32.xlu0 %v2707
    %v2709 = vpop.xlane.xlu0 %2708
    %v2710 = vsel %vm323, %v2704, -inf
    %2711 = vmax.xlane.f32.xlu0 %v2710
    %v2712 = vpop.xlane.xlu0 %2711
    %v2713 = vsub.f32 %v2701, %v2709
    %v2714 = vsub.f32 %v2704, %v2712
    %v2715 = vmul.f32 %v2713, 1.442695
    %v2716 = vpow.pop %v2715
    %v2717 = vmul.f32 %v2714, 1.442695
    %v2718 = vpow.pop %v2717
    %v2719 = vsel %vm323, %v2716, 0.0
    %2720 = vadd.xlane.f32.xlu0 %v2719
    %v2721 = vpop.xlane.xlu0 %2720
    %v2722 = vsel %vm323, %v2718, 0.0
    %2723 = vadd.xlane.f32.xlu0 %v2722
    %v2724 = vpop.xlane.xlu0 %2723
    %v2725 = vrcp.pop %v2721
    %v2726 = vrcp.pop %v2724
    %v2727 = vmul.f32 %v2716, %v2725
    %v2728 = vmul.f32 %v2718, %v2726
    %v2729 = vpack.c.bf16 %v2728, %v2727
    %v2730 = vpack.c.bf16 %v2655, %v2652
    %v2732 = vsel %vm323, %v2729, 0
    %2734 = vmatprep.subr.bf16.mxu0 0
    %2735 = vmatpush1.bf16.msra.mxu0 0
    %2736 = vmatprep.subr.bf16.mxu0 0
    %2737 = vmatpush1.bf16.msra.mxu0 0
    %2738 = vmatprep.subr.bf16.mxu0 0
    %2739 = vmatpush1.bf16.msra.mxu0 0
    %2740 = vmatprep.subr.bf16.mxu0 0
    %2741 = vmatpush1.bf16.msra.mxu0 0
    %2742 = vmatprep.subr.bf16.mxu0 0
    %2743 = vmatpush1.bf16.msra.mxu0 0
    %2744 = vmatprep.subr.bf16.mxu0 0
    %2745 = vmatpush1.bf16.msra.mxu0 0
    %2746 = vmatprep.subr.bf16.mxu0 0
    %2747 = vmatpush1.bf16.msra.mxu0 0
    %2748 = vmatprep.subr.bf16.mxu0 0
    %2749 = vmatpush1.bf16.msra.mxu0 %v2730
    %2750 = vmatprep.subr.bf16.mxu0 0
    %2751 = vmatpush2.bf16.msra.mxu0 0
    %2752 = vmatprep.subr.bf16.mxu0 0
    %2753 = vmatpush2.bf16.msra.mxu0 0
    %2754 = vmatprep.subr.bf16.mxu0 0
    %2755 = vmatpush2.bf16.msra.mxu0 0
    %2756 = vmatprep.subr.bf16.mxu0 0
    %2757 = vmatpush2.bf16.msra.mxu0 0
    %2758 = vmatprep.subr.bf16.mxu0 0
    %2759 = vmatpush2.bf16.msra.mxu0 0
    %2760 = vmatprep.subr.bf16.mxu0 0
    %2761 = vmatpush2.bf16.msra.mxu0 0
    %2762 = vmatprep.subr.bf16.mxu0 0
    %2763 = vmatpush2.bf16.msra.mxu0 0
    %2764 = vmatprep.subr.bf16.mxu0 0
    %2765 = vmatpush2.bf16.msra.mxu0 0
    %2766 = vmatprep.mubr.bf16.mxu0 0
    %2767 = vmatmul.mubr.bf16.gmra.mxu0 %v2732
    %v2768 = vpop.f32.mrf.mxu0
    %v2769 = vadd.f32 0.0, %v2768
    %v2770 = vpop.f32.mrf.mxu0
    %v2771 = vpop.f32.mrf.mxu0
    %v2772 = vadd.f32 0.0, %v2771
    %v2773 = vpop.f32.mrf.mxu0
    %2774 = vdwg.mxu0
    %v2775 = vpack.c.bf16 %v1763, %v1763
    %v2776 = vpack.c.bf16 %v2772, %v2769
    %v2778 = vsel %vm275, %v2776, 0
    %v2781 = vsel %vm702, %v2775, 0
    %2783 = vmatprep.subr.bf16.mxu0 0
    %2784 = vmatpush1.bf16.msra.mxu0 0
    %2785 = vmatprep.subr.bf16.mxu0 0
    %2786 = vmatpush1.bf16.msra.mxu0 0
    %2787 = vmatprep.subr.bf16.mxu0 0
    %2788 = vmatpush1.bf16.msra.mxu0 0
    %2789 = vmatprep.subr.bf16.mxu0 0
    %2790 = vmatpush1.bf16.msra.mxu0 0
    %2791 = vmatprep.subr.bf16.mxu0 0
    %2792 = vmatpush1.bf16.msra.mxu0 0
    %2793 = vmatprep.subr.bf16.mxu0 0
    %2794 = vmatpush1.bf16.msra.mxu0 0
    %2795 = vmatprep.subr.bf16.mxu0 0
    %2796 = vmatpush1.bf16.msra.mxu0 0
    %2797 = vmatprep.subr.bf16.mxu0 0
    %2798 = vmatpush1.bf16.msra.mxu0 %v2781
    %2799 = vmatprep.subr.bf16.mxu0 0
    %2800 = vmatpush2.bf16.msra.mxu0 0
    %2801 = vmatprep.subr.bf16.mxu0 0
    %2802 = vmatpush2.bf16.msra.mxu0 0
    %2803 = vmatprep.subr.bf16.mxu0 0
    %2804 = vmatpush2.bf16.msra.mxu0 0
    %2805 = vmatprep.subr.bf16.mxu0 0
    %2806 = vmatpush2.bf16.msra.mxu0 0
    %2807 = vmatprep.subr.bf16.mxu0 0
    %2808 = vmatpush2.bf16.msra.mxu0 0
    %2809 = vmatprep.subr.bf16.mxu0 0
    %2810 = vmatpush2.bf16.msra.mxu0 0
    %2811 = vmatprep.subr.bf16.mxu0 0
    %2812 = vmatpush2.bf16.msra.mxu0 0
    %2813 = vmatprep.subr.bf16.mxu0 0
    %2814 = vmatpush2.bf16.msra.mxu0 0
    %2815 = vmatprep.mubr.bf16.mxu0 0
    %2816 = vmatmul.mubr.bf16.gmra.mxu0 %v2778
    %v2817 = vpop.f32.mrf.mxu0
    %v2818 = vadd.f32 0.0, %v2817
    %v2819 = vpop.f32.mrf.mxu0
    %v2820 = vpop.f32.mrf.mxu0
    %v2821 = vadd.f32 0.0, %v2820
    %v2822 = vpop.f32.mrf.mxu0
    %2823 = vdwg.mxu0
    %v2824 = vadd.f32 %v2466, %v2818
    %v2825 = vadd.f32 %v2469, %v2821
    %v2826 = vld [vmem:[#allocation2 + $0x180] sm:$0xf]
    %v2827 = vld [vmem:[#allocation2 + $0x184] sm:$0xf]
    %v2828 = vld [vmem:[#allocation2 + $0x188] sm:$0xf]
    %v2829 = vld [vmem:[#allocation2 + $0x18c] sm:$0xf]
    %v2830 = vld [vmem:[%s3 + $0x5e] sm:$0x1]
    %v2831 = vlaneseq
    %v2832 = vshrl.u32 %v2831, 7
    %v2833 = vsub.s32 0, %v2832
    %v2834 = vrot.slane %v2830, %v2833
    %v2839 = vunpack.c.l.b16 %v2826
    %v2840 = vunpack.c.l.b16 %v2827
    %v2841 = vunpack.c.l.b16 %v2828
    %v2842 = vunpack.c.l.b16 %v2829
    %v2843 = vpack.c.b16 %v2840, %v2839
    %v2844 = vpack.c.b16 %v2842, %v2841
    %2847 = vmatprep.subr.bf16.mxu0 0
    %2848 = vmatpush1.bf16.msra.mxu0 0
    %2849 = vmatprep.subr.bf16.mxu0 0
    %2850 = vmatpush1.bf16.msra.mxu0 0
    %2851 = vmatprep.subr.bf16.mxu0 0
    %2852 = vmatpush1.bf16.msra.mxu0 0
    %2853 = vmatprep.subr.bf16.mxu0 0
    %2854 = vmatpush1.bf16.msra.mxu0 0
    %2855 = vmatprep.subr.bf16.mxu0 0
    %2856 = vmatpush1.bf16.msra.mxu0 0
    %2857 = vmatprep.subr.bf16.mxu0 0
    %2858 = vmatpush1.bf16.msra.mxu0 0
    %2859 = vmatprep.subr.bf16.mxu0 0
    %2860 = vmatpush1.bf16.msra.mxu0 %v2844
    %2861 = vmatprep.subr.bf16.mxu0 0
    %2862 = vmatpush1.bf16.msra.mxu0 %v2843
    %2863 = vmatprep.subr.bf16.mxu0 0
    %2864 = vmatpush2.bf16.msra.mxu0 0
    %2865 = vmatprep.subr.bf16.mxu0 0
    %2866 = vmatpush2.bf16.msra.mxu0 0
    %2867 = vmatprep.subr.bf16.mxu0 0
    %2868 = vmatpush2.bf16.msra.mxu0 0
    %2869 = vmatprep.subr.bf16.mxu0 0
    %2870 = vmatpush2.bf16.msra.mxu0 0
    %2871 = vmatprep.subr.bf16.mxu0 0
    %2872 = vmatpush2.bf16.msra.mxu0 0
    %2873 = vmatprep.subr.bf16.mxu0 0
    %2874 = vmatpush2.bf16.msra.mxu0 0
    %2875 = vmatprep.subr.bf16.mxu0 0
    %2876 = vmatpush2.bf16.msra.mxu0 0
    %2877 = vmatprep.subr.bf16.mxu0 0
    %2878 = vmatpush2.bf16.msra.mxu0 0
    %2879 = vmatprep.mubr.bf16.mxu0 0
    %2880 = vmatmul.mubr.bf16.gmra.mxu0 %v1787
    %v2881 = vpop.f32.mrf.mxu0
    %v2882 = vadd.f32 %v2834, %v2881
    %v2883 = vpop.f32.mrf.mxu0
    %v2884 = vpop.f32.mrf.mxu0
    %v2885 = vadd.f32 %v2834, %v2884
    %v2886 = vpop.f32.mrf.mxu0
    %2887 = vdwg.mxu0
    %v2888 = vld [vmem:[#allocation2 + $0x190] sm:$0xf]
    %v2889 = vld [vmem:[#allocation2 + $0x194] sm:$0xf]
    %v2890 = vld [vmem:[#allocation2 + $0x198] sm:$0xf]
    %v2891 = vld [vmem:[#allocation2 + $0x19c] sm:$0xf]
    %v2892 = vld [vmem:[%s3 + $0x5f] sm:$0x1]
    %v2893 = vlaneseq
    %v2894 = vshrl.u32 %v2893, 7
    %v2895 = vsub.s32 0, %v2894
    %v2896 = vrot.slane %v2892, %v2895
    %v2901 = vunpack.c.l.b16 %v2888
    %v2902 = vunpack.c.l.b16 %v2889
    %v2903 = vunpack.c.l.b16 %v2890
    %v2904 = vunpack.c.l.b16 %v2891
    %v2905 = vpack.c.b16 %v2902, %v2901
    %v2906 = vpack.c.b16 %v2904, %v2903
    %2909 = vmatprep.subr.bf16.mxu0 0
    %2910 = vmatpush1.bf16.msra.mxu0 0
    %2911 = vmatprep.subr.bf16.mxu0 0
    %2912 = vmatpush1.bf16.msra.mxu0 0
    %2913 = vmatprep.subr.bf16.mxu0 0
    %2914 = vmatpush1.bf16.msra.mxu0 0
    %2915 = vmatprep.subr.bf16.mxu0 0
    %2916 = vmatpush1.bf16.msra.mxu0 0
    %2917 = vmatprep.subr.bf16.mxu0 0
    %2918 = vmatpush1.bf16.msra.mxu0 0
    %2919 = vmatprep.subr.bf16.mxu0 0
    %2920 = vmatpush1.bf16.msra.mxu0 0
    %2921 = vmatprep.subr.bf16.mxu0 0
    %2922 = vmatpush1.bf16.msra.mxu0 %v2906
    %2923 = vmatprep.subr.bf16.mxu0 0
    %2924 = vmatpush1.bf16.msra.mxu0 %v2905
    %2925 = vmatprep.subr.bf16.mxu0 0
    %2926 = vmatpush2.bf16.msra.mxu0 0
    %2927 = vmatprep.subr.bf16.mxu0 0
    %2928 = vmatpush2.bf16.msra.mxu0 0
    %2929 = vmatprep.subr.bf16.mxu0 0
    %2930 = vmatpush2.bf16.msra.mxu0 0
    %2931 = vmatprep.subr.bf16.mxu0 0
    %2932 = vmatpush2.bf16.msra.mxu0 0
    %2933 = vmatprep.subr.bf16.mxu0 0
    %2934 = vmatpush2.bf16.msra.mxu0 0
    %2935 = vmatprep.subr.bf16.mxu0 0
    %2936 = vmatpush2.bf16.msra.mxu0 0
    %2937 = vmatprep.subr.bf16.mxu0 0
    %2938 = vmatpush2.bf16.msra.mxu0 0
    %2939 = vmatprep.subr.bf16.mxu0 0
    %2940 = vmatpush2.bf16.msra.mxu0 0
    %2941 = vmatprep.mubr.bf16.mxu0 0
    %2942 = vmatmul.mubr.bf16.gmra.mxu0 %v1787
    %v2943 = vpop.f32.mrf.mxu0
    %v2944 = vadd.f32 %v2896, %v2943
    %v2945 = vpop.f32.mrf.mxu0
    %v2946 = vpop.f32.mrf.mxu0
    %v2947 = vadd.f32 %v2896, %v2946
    %v2948 = vpop.f32.mrf.mxu0
    %2949 = vdwg.mxu0
    %v2950 = vld [vmem:[#allocation2 + $0x1a0] sm:$0xf]
    %v2951 = vld [vmem:[#allocation2 + $0x1a4] sm:$0xf]
    %v2952 = vld [vmem:[#allocation2 + $0x1a8] sm:$0xf]
    %v2953 = vld [vmem:[#allocation2 + $0x1ac] sm:$0xf]
    %v2954 = vld [vmem:[%s3 + $0x60] sm:$0x1]
    %v2955 = vlaneseq
    %v2956 = vshrl.u32 %v2955, 7
    %v2957 = vsub.s32 0, %v2956
    %v2958 = vrot.slane %v2954, %v2957
    %v2963 = vunpack.c.l.b16 %v2950
    %v2964 = vunpack.c.l.b16 %v2951
    %v2965 = vunpack.c.l.b16 %v2952
    %v2966 = vunpack.c.l.b16 %v2953
    %v2967 = vpack.c.b16 %v2964, %v2963
    %v2968 = vpack.c.b16 %v2966, %v2965
    %2971 = vmatprep.subr.bf16.mxu0 0
    %2972 = vmatpush1.bf16.msra.mxu0 0
    %2973 = vmatprep.subr.bf16.mxu0 0
    %2974 = vmatpush1.bf16.msra.mxu0 0
    %2975 = vmatprep.subr.bf16.mxu0 0
    %2976 = vmatpush1.bf16.msra.mxu0 0
    %2977 = vmatprep.subr.bf16.mxu0 0
    %2978 = vmatpush1.bf16.msra.mxu0 0
    %2979 = vmatprep.subr.bf16.mxu0 0
    %2980 = vmatpush1.bf16.msra.mxu0 0
    %2981 = vmatprep.subr.bf16.mxu0 0
    %2982 = vmatpush1.bf16.msra.mxu0 0
    %2983 = vmatprep.subr.bf16.mxu0 0
    %2984 = vmatpush1.bf16.msra.mxu0 %v2968
    %2985 = vmatprep.subr.bf16.mxu0 0
    %2986 = vmatpush1.bf16.msra.mxu0 %v2967
    %2987 = vmatprep.subr.bf16.mxu0 0
    %2988 = vmatpush2.bf16.msra.mxu0 0
    %2989 = vmatprep.subr.bf16.mxu0 0
    %2990 = vmatpush2.bf16.msra.mxu0 0
    %2991 = vmatprep.subr.bf16.mxu0 0
    %2992 = vmatpush2.bf16.msra.mxu0 0
    %2993 = vmatprep.subr.bf16.mxu0 0
    %2994 = vmatpush2.bf16.msra.mxu0 0
    %2995 = vmatprep.subr.bf16.mxu0 0
    %2996 = vmatpush2.bf16.msra.mxu0 0
    %2997 = vmatprep.subr.bf16.mxu0 0
    %2998 = vmatpush2.bf16.msra.mxu0 0
    %2999 = vmatprep.subr.bf16.mxu0 0
    %3000 = vmatpush2.bf16.msra.mxu0 0
    %3001 = vmatprep.subr.bf16.mxu0 0
    %3002 = vmatpush2.bf16.msra.mxu0 0
    %3003 = vmatprep.mubr.bf16.mxu0 0
    %3004 = vmatmul.mubr.bf16.gmra.mxu0 %v1787
    %v3005 = vpop.f32.mrf.mxu0
    %v3006 = vadd.f32 %v2958, %v3005
    %v3007 = vpop.f32.mrf.mxu0
    %v3008 = vpop.f32.mrf.mxu0
    %v3009 = vadd.f32 %v2958, %v3008
    %v3010 = vpop.f32.mrf.mxu0
    %3011 = vdwg.mxu0
    %v3012 = vpack.c.bf16 %v2885, %v2882
    %v3013 = vpack.c.bf16 %v2947, %v2944
    %v3015 = vsel %vm275, %v3012, 0
    %v3018 = vsel %vm275, %v3013, 0
    %3020 = vmatprep.subr.bf16.mxu0 0
    %3021 = vmatpush1.bf16.xpose.msra.mxu0 0
    %3022 = vmatprep.subr.bf16.mxu0 0
    %3023 = vmatpush1.bf16.xpose.msra.mxu0 0
    %3024 = vmatprep.subr.bf16.mxu0 0
    %3025 = vmatpush1.bf16.xpose.msra.mxu0 0
    %3026 = vmatprep.subr.bf16.mxu0 0
    %3027 = vmatpush1.bf16.xpose.msra.mxu0 0
    %3028 = vmatprep.subr.bf16.mxu0 0
    %3029 = vmatpush1.bf16.xpose.msra.mxu0 0
    %3030 = vmatprep.subr.bf16.mxu0 0
    %3031 = vmatpush1.bf16.xpose.msra.mxu0 0
    %3032 = vmatprep.subr.bf16.mxu0 0
    %3033 = vmatpush1.bf16.xpose.msra.mxu0 0
    %3034 = vmatprep.subr.bf16.mxu0 0
    %3035 = vmatpush1.bf16.xpose.msra.mxu0 %v3018
    %3036 = vmatprep.subr.bf16.mxu0 0
    %3037 = vmatpush2.bf16.xpose.msra.mxu0 0
    %3038 = vmatprep.subr.bf16.mxu0 0
    %3039 = vmatpush2.bf16.xpose.msra.mxu0 0
    %3040 = vmatprep.subr.bf16.mxu0 0
    %3041 = vmatpush2.bf16.xpose.msra.mxu0 0
    %3042 = vmatprep.subr.bf16.mxu0 0
    %3043 = vmatpush2.bf16.xpose.msra.mxu0 0
    %3044 = vmatprep.subr.bf16.mxu0 0
    %3045 = vmatpush2.bf16.xpose.msra.mxu0 0
    %3046 = vmatprep.subr.bf16.mxu0 0
    %3047 = vmatpush2.bf16.xpose.msra.mxu0 0
    %3048 = vmatprep.subr.bf16.mxu0 0
    %3049 = vmatpush2.bf16.xpose.msra.mxu0 0
    %3050 = vmatprep.subr.bf16.mxu0 0
    %3051 = vmatpush2.bf16.xpose.msra.mxu0 0
    %3052 = vmatprep.mubr.bf16.mxu0 0
    %3053 = vmatmul.mubr.bf16.gmra.mxu0 %v3015
    %v3054 = vpop.f32.mrf.mxu0
    %v3055 = vadd.f32 %v77, %v3054
    %v3056 = vpop.f32.mrf.mxu0
    %v3057 = vpop.f32.mrf.mxu0
    %v3058 = vadd.f32 %v78, %v3057
    %v3059 = vpop.f32.mrf.mxu0
    %3060 = vdwg.mxu0
    %v3061 = vsel %vm323, %v3055, -inf
    %3062 = vmax.xlane.f32.xlu0 %v3061
    %v3063 = vpop.xlane.xlu0 %3062
    %v3064 = vsel %vm323, %v3058, -inf
    %3065 = vmax.xlane.f32.xlu0 %v3064
    %v3066 = vpop.xlane.xlu0 %3065
    %v3067 = vsub.f32 %v3055, %v3063
    %v3068 = vsub.f32 %v3058, %v3066
    %v3069 = vmul.f32 %v3067, 1.442695
    %v3070 = vpow.pop %v3069
    %v3071 = vmul.f32 %v3068, 1.442695
    %v3072 = vpow.pop %v3071
    %v3073 = vsel %vm323, %v3070, 0.0
    %3074 = vadd.xlane.f32.xlu0 %v3073
    %v3075 = vpop.xlane.xlu0 %3074
    %v3076 = vsel %vm323, %v3072, 0.0
    %3077 = vadd.xlane.f32.xlu0 %v3076
    %v3078 = vpop.xlane.xlu0 %3077
    %v3079 = vrcp.pop %v3075
    %v3080 = vrcp.pop %v3078
    %v3081 = vmul.f32 %v3070, %v3079
    %v3082 = vmul.f32 %v3072, %v3080
    %v3083 = vpack.c.bf16 %v3082, %v3081
    %v3084 = vpack.c.bf16 %v3009, %v3006
    %v3086 = vsel %vm323, %v3083, 0
    %3088 = vmatprep.subr.bf16.mxu0 0
    %3089 = vmatpush1.bf16.msra.mxu0 0
    %3090 = vmatprep.subr.bf16.mxu0 0
    %3091 = vmatpush1.bf16.msra.mxu0 0
    %3092 = vmatprep.subr.bf16.mxu0 0
    %3093 = vmatpush1.bf16.msra.mxu0 0
    %3094 = vmatprep.subr.bf16.mxu0 0
    %3095 = vmatpush1.bf16.msra.mxu0 0
    %3096 = vmatprep.subr.bf16.mxu0 0
    %3097 = vmatpush1.bf16.msra.mxu0 0
    %3098 = vmatprep.subr.bf16.mxu0 0
    %3099 = vmatpush1.bf16.msra.mxu0 0
    %3100 = vmatprep.subr.bf16.mxu0 0
    %3101 = vmatpush1.bf16.msra.mxu0 0
    %3102 = vmatprep.subr.bf16.mxu0 0
    %3103 = vmatpush1.bf16.msra.mxu0 %v3084
    %3104 = vmatprep.subr.bf16.mxu0 0
    %3105 = vmatpush2.bf16.msra.mxu0 0
    %3106 = vmatprep.subr.bf16.mxu0 0
    %3107 = vmatpush2.bf16.msra.mxu0 0
    %3108 = vmatprep.subr.bf16.mxu0 0
    %3109 = vmatpush2.bf16.msra.mxu0 0
    %3110 = vmatprep.subr.bf16.mxu0 0
    %3111 = vmatpush2.bf16.msra.mxu0 0
    %3112 = vmatprep.subr.bf16.mxu0 0
    %3113 = vmatpush2.bf16.msra.mxu0 0
    %3114 = vmatprep.subr.bf16.mxu0 0
    %3115 = vmatpush2.bf16.msra.mxu0 0
    %3116 = vmatprep.subr.bf16.mxu0 0
    %3117 = vmatpush2.bf16.msra.mxu0 0
    %3118 = vmatprep.subr.bf16.mxu0 0
    %3119 = vmatpush2.bf16.msra.mxu0 0
    %3120 = vmatprep.mubr.bf16.mxu0 0
    %3121 = vmatmul.mubr.bf16.gmra.mxu0 %v3086
    %v3122 = vpop.f32.mrf.mxu0
    %v3123 = vadd.f32 0.0, %v3122
    %v3124 = vpop.f32.mrf.mxu0
    %v3125 = vpop.f32.mrf.mxu0
    %v3126 = vadd.f32 0.0, %v3125
    %v3127 = vpop.f32.mrf.mxu0
    %3128 = vdwg.mxu0
    %v3129 = vpack.c.bf16 %v1764, %v1764
    %v3130 = vpack.c.bf16 %v3126, %v3123
    %v3132 = vsel %vm275, %v3130, 0
    %v3135 = vsel %vm702, %v3129, 0
    %3137 = vmatprep.subr.bf16.mxu0 0
    %3138 = vmatpush1.bf16.msra.mxu0 0
    %3139 = vmatprep.subr.bf16.mxu0 0
    %3140 = vmatpush1.bf16.msra.mxu0 0
    %3141 = vmatprep.subr.bf16.mxu0 0
    %3142 = vmatpush1.bf16.msra.mxu0 0
    %3143 = vmatprep.subr.bf16.mxu0 0
    %3144 = vmatpush1.bf16.msra.mxu0 0
    %3145 = vmatprep.subr.bf16.mxu0 0
    %3146 = vmatpush1.bf16.msra.mxu0 0
    %3147 = vmatprep.subr.bf16.mxu0 0
    %3148 = vmatpush1.bf16.msra.mxu0 0
    %3149 = vmatprep.subr.bf16.mxu0 0
    %3150 = vmatpush1.bf16.msra.mxu0 0
    %3151 = vmatprep.subr.bf16.mxu0 0
    %3152 = vmatpush1.bf16.msra.mxu0 %v3135
    %3153 = vmatprep.subr.bf16.mxu0 0
    %3154 = vmatpush2.bf16.msra.mxu0 0
    %3155 = vmatprep.subr.bf16.mxu0 0
    %3156 = vmatpush2.bf16.msra.mxu0 0
    %3157 = vmatprep.subr.bf16.mxu0 0
    %3158 = vmatpush2.bf16.msra.mxu0 0
    %3159 = vmatprep.subr.bf16.mxu0 0
    %3160 = vmatpush2.bf16.msra.mxu0 0
    %3161 = vmatprep.subr.bf16.mxu0 0
    %3162 = vmatpush2.bf16.msra.mxu0 0
    %3163 = vmatprep.subr.bf16.mxu0 0
    %3164 = vmatpush2.bf16.msra.mxu0 0
    %3165 = vmatprep.subr.bf16.mxu0 0
    %3166 = vmatpush2.bf16.msra.mxu0 0
    %3167 = vmatprep.subr.bf16.mxu0 0
    %3168 = vmatpush2.bf16.msra.mxu0 0
    %3169 = vmatprep.mubr.bf16.mxu0 0
    %3170 = vmatmul.mubr.bf16.gmra.mxu0 %v3132
    %v3171 = vpop.f32.mrf.mxu0
    %v3172 = vadd.f32 0.0, %v3171
    %v3173 = vpop.f32.mrf.mxu0
    %v3174 = vpop.f32.mrf.mxu0
    %v3175 = vadd.f32 0.0, %v3174
    %v3176 = vpop.f32.mrf.mxu0
    %3177 = vdwg.mxu0
    %v3178 = vadd.f32 %v2824, %v3172
    %v3179 = vadd.f32 %v2825, %v3175
    %v3180 = vld [vmem:[%s3 + $0x61] sm:$0x1]
    %v3181 = vlaneseq
    %v3182 = vshrl.u32 %v3181, 7
    %v3183 = vsub.s32 0, %v3182
    %v3184 = vrot.slane %v3180, %v3183
    %v3185 = vadd.f32 %v3178, %v3184
    %v3186 = vadd.f32 %v3179, %v3184
    %v3187 = vadd.f32 %v3185, %v1758
    %v3188 = vadd.f32 %v3186, %v1759
    %v3189 = vld [vmem:[%s3 + $0x62] sm:$0x1]
    %v3190 = vld [vmem:[%s3 + $0x63] sm:$0x1]
    %v3191 = vsel %vm37, %v3187, 0.0
    %3192 = vadd.xlane.f32.xlu0 %v3191
    %v3193 = vpop.xlane.xlu0 %3192
    %v3194 = vsel %vm37, %v3188, 0.0
    %3195 = vadd.xlane.f32.xlu0 %v3194
    %v3196 = vpop.xlane.xlu0 %3195
    %v3197 = vmul.f32 %v3193, %v44
    %v3198 = vmul.f32 %v3196, %v44
    %v3199 = vsub.f32 %v3187, %v3197
    %v3200 = vsub.f32 %v3188, %v3198
    %v3201 = vmul.f32 %v3199, %v3199
    %v3202 = vmul.f32 %v3200, %v3200
    %v3203 = vsel %vm37, %v3201, 0.0
    %3204 = vadd.xlane.f32.xlu0 %v3203
    %v3205 = vpop.xlane.xlu0 %3204
    %v3206 = vsel %vm37, %v3202, 0.0
    %3207 = vadd.xlane.f32.xlu0 %v3206
    %v3208 = vpop.xlane.xlu0 %3207
    %v3209 = vmul.f32 %v3205, %v44
    %v3210 = vmul.f32 %v3208, %v44
    %v3211 = vadd.f32 %v3209, 1e-12
    %v3212 = vadd.f32 %v3210, 1e-12
    %v3213 = vrsqrt.pop %v3211
    %v3214 = vrsqrt.pop %v3212
    %v3215 = vmul.f32 %v3199, %v3213
    %v3216 = vmul.f32 %v3200, %v3214
    %v3217 = vlaneseq
    %v3218 = vshrl.u32 %v3217, 7
    %v3219 = vsub.s32 0, %v3218
    %v3220 = vrot.slane %v3189, %v3219
    %v3221 = vmul.f32 %v3215, %v3220
    %v3222 = vmul.f32 %v3216, %v3220
    %v3223 = vlaneseq
    %v3224 = vshrl.u32 %v3223, 7
    %v3225 = vsub.s32 0, %v3224
    %v3226 = vrot.slane %v3190, %v3225
    %v3227 = vadd.f32 %v3221, %v3226
    %v3228 = vadd.f32 %v3222, %v3226
    %v3229 = vpack.c.bf16 %v3228, %v3227
    %v3230 = vld [vmem:[#allocation2 + $0x1b0] sm:$0xf]
    %v3231 = vld [vmem:[#allocation2 + $0x1b4] sm:$0xf]
    %v3232 = vld [vmem:[#allocation2 + $0x1b8] sm:$0xf]
    %v3233 = vld [vmem:[#allocation2 + $0x1bc] sm:$0xf]
    %v3234 = vld [vmem:[%s3 + $0x64] sm:$0x1]
    %v3235 = vlaneseq
    %v3236 = vshrl.u32 %v3235, 7
    %v3237 = vsub.s32 0, %v3236
    %v3238 = vrot.slane %v3234, %v3237
    %v3243 = vunpack.c.l.b16 %v3230
    %v3244 = vunpack.c.l.b16 %v3231
    %v3245 = vunpack.c.l.b16 %v3232
    %v3246 = vunpack.c.l.b16 %v3233
    %v3247 = vpack.c.b16 %v3244, %v3243
    %v3248 = vpack.c.b16 %v3246, %v3245
    %v3252 = vsel %vm37, %v3229, 0
    %3254 = vmatprep.subr.bf16.mxu0 0
    %3255 = vmatpush1.bf16.msra.mxu0 0
    %3256 = vmatprep.subr.bf16.mxu0 0
    %3257 = vmatpush1.bf16.msra.mxu0 0
    %3258 = vmatprep.subr.bf16.mxu0 0
    %3259 = vmatpush1.bf16.msra.mxu0 0
    %3260 = vmatprep.subr.bf16.mxu0 0
    %3261 = vmatpush1.bf16.msra.mxu0 0
    %3262 = vmatprep.subr.bf16.mxu0 0
    %3263 = vmatpush1.bf16.msra.mxu0 0
    %3264 = vmatprep.subr.bf16.mxu0 0
    %3265 = vmatpush1.bf16.msra.mxu0 0
    %3266 = vmatprep.subr.bf16.mxu0 0
    %3267 = vmatpush1.bf16.msra.mxu0 %v3248
    %3268 = vmatprep.subr.bf16.mxu0 0
    %3269 = vmatpush1.bf16.msra.mxu0 %v3247
    %3270 = vmatprep.subr.bf16.mxu0 0
    %3271 = vmatpush2.bf16.msra.mxu0 0
    %3272 = vmatprep.subr.bf16.mxu0 0
    %3273 = vmatpush2.bf16.msra.mxu0 0
    %3274 = vmatprep.subr.bf16.mxu0 0
    %3275 = vmatpush2.bf16.msra.mxu0 0
    %3276 = vmatprep.subr.bf16.mxu0 0
    %3277 = vmatpush2.bf16.msra.mxu0 0
    %3278 = vmatprep.subr.bf16.mxu0 0
    %3279 = vmatpush2.bf16.msra.mxu0 0
    %3280 = vmatprep.subr.bf16.mxu0 0
    %3281 = vmatpush2.bf16.msra.mxu0 0
    %3282 = vmatprep.subr.bf16.mxu0 0
    %3283 = vmatpush2.bf16.msra.mxu0 0
    %3284 = vmatprep.subr.bf16.mxu0 0
    %3285 = vmatpush2.bf16.msra.mxu0 0
    %3286 = vmatprep.mubr.bf16.mxu0 0
    %3287 = vmatmul.mubr.bf16.gmra.mxu0 %v3252
    %v3288 = vpop.f32.mrf.mxu0
    %v3289 = vadd.f32 %v3238, %v3288
    %v3290 = vpop.f32.mrf.mxu0
    %v3291 = vpop.f32.mrf.mxu0
    %v3292 = vadd.f32 %v3238, %v3291
    %v3293 = vpop.f32.mrf.mxu0
    %3294 = vdwg.mxu0
    %v3295 = vmul.f32 %v3289, %v3289
    %v3296 = vmul.f32 %v3292, %v3292
    %v3297 = vmul.f32 %v3289, %v3295
    %v3298 = vmul.f32 %v3292, %v3296
    %v3299 = vmul.f32 %v3297, 0.044715
    %v3300 = vmul.f32 %v3298, 0.044715
    %v3301 = vadd.f32 %v3289, %v3299
    %v3302 = vadd.f32 %v3292, %v3300
    %v3303 = vmul.f32 %v3301, 0.7978846
    %v3304 = vmul.f32 %v3302, 0.7978846
    %v3305 = vtanh.pop %v3303
    %v3306 = vtanh.pop %v3304
    %v3307 = vadd.f32 %v3305, 1.0
    %v3308 = vadd.f32 %v3306, 1.0
    %v3309 = vmul.f32 %v3307, 0.5
    %v3310 = vmul.f32 %v3308, 0.5
    %v3311 = vmul.f32 %v3289, %v3309
    %v3312 = vmul.f32 %v3292, %v3310
    %v3313 = vpack.c.bf16 %v3312, %v3311
    %v3314 = vld [vmem:[#allocation2 + $0x1c0] sm:$0xf]
    %v3315 = vld [vmem:[#allocation2 + $0x1c4] sm:$0xf]
    %v3316 = vld [vmem:[#allocation2 + $0x1c8] sm:$0xf]
    %v3317 = vld [vmem:[#allocation2 + $0x1cc] sm:$0xf]
    %v3318 = vld [vmem:[#allocation2 + $0x1d0] sm:$0xf]
    %v3319 = vld [vmem:[#allocation2 + $0x1d4] sm:$0xf]
    %v3320 = vld [vmem:[#allocation2 + $0x1d8] sm:$0xf]
    %v3321 = vld [vmem:[#allocation2 + $0x1dc] sm:$0xf]
    %v3322 = vld [vmem:[%s3 + $0x65] sm:$0x1]
    %v3323 = vlaneseq
    %v3324 = vshrl.u32 %v3323, 7
    %v3325 = vsub.s32 0, %v3324
    %v3326 = vrot.slane %v3322, %v3325
    %v3335 = vunpack.c.l.b16 %v3314
    %v3336 = vunpack.c.l.b16 %v3315
    %v3337 = vunpack.c.l.b16 %v3316
    %v3338 = vunpack.c.l.b16 %v3317
    %v3339 = vunpack.c.l.b16 %v3318
    %v3340 = vunpack.c.l.b16 %v3319
    %v3341 = vunpack.c.l.b16 %v3320
    %v3342 = vunpack.c.l.b16 %v3321
    %v3343 = vpack.c.b16 %v3336, %v3335
    %v3344 = vpack.c.b16 %v3338, %v3337
    %v3345 = vpack.c.b16 %v3340, %v3339
    %v3346 = vpack.c.b16 %v3342, %v3341
    %v3352 = vsel %vm1673, %v3313, 0
    %3354 = vmatprep.subr.bf16.mxu0 0
    %3355 = vmatpush1.bf16.msra.mxu0 0
    %3356 = vmatprep.subr.bf16.mxu0 0
    %3357 = vmatpush1.bf16.msra.mxu0 0
    %3358 = vmatprep.subr.bf16.mxu0 0
    %3359 = vmatpush1.bf16.msra.mxu0 0
    %3360 = vmatprep.subr.bf16.mxu0 0
    %3361 = vmatpush1.bf16.msra.mxu0 0
    %3362 = vmatprep.subr.bf16.mxu0 0
    %3363 = vmatpush1.bf16.msra.mxu0 %v3346
    %3364 = vmatprep.subr.bf16.mxu0 0
    %3365 = vmatpush1.bf16.msra.mxu0 %v3345
    %3366 = vmatprep.subr.bf16.mxu0 0
    %3367 = vmatpush1.bf16.msra.mxu0 %v3344
    %3368 = vmatprep.subr.bf16.mxu0 0
    %3369 = vmatpush1.bf16.msra.mxu0 %v3343
    %3370 = vmatprep.subr.bf16.mxu0 0
    %3371 = vmatpush2.bf16.msra.mxu0 0
    %3372 = vmatprep.subr.bf16.mxu0 0
    %3373 = vmatpush2.bf16.msra.mxu0 0
    %3374 = vmatprep.subr.bf16.mxu0 0
    %3375 = vmatpush2.bf16.msra.mxu0 0
    %3376 = vmatprep.subr.bf16.mxu0 0
    %3377 = vmatpush2.bf16.msra.mxu0 0
    %3378 = vmatprep.subr.bf16.mxu0 0
    %3379 = vmatpush2.bf16.msra.mxu0 0
    %3380 = vmatprep.subr.bf16.mxu0 0
    %3381 = vmatpush2.bf16.msra.mxu0 0
    %3382 = vmatprep.subr.bf16.mxu0 0
    %3383 = vmatpush2.bf16.msra.mxu0 0
    %3384 = vmatprep.subr.bf16.mxu0 0
    %3385 = vmatpush2.bf16.msra.mxu0 0
    %3386 = vmatprep.mubr.bf16.mxu0 0
    %3387 = vmatmul.mubr.bf16.gmra.mxu0 %v3352
    %v3388 = vpop.f32.mrf.mxu0
    %v3389 = vadd.f32 %v3326, %v3388
    %v3390 = vpop.f32.mrf.mxu0
    %v3391 = vpop.f32.mrf.mxu0
    %v3392 = vadd.f32 %v3326, %v3391
    %v3393 = vpop.f32.mrf.mxu0
    %3394 = vdwg.mxu0
    %v3395 = vadd.f32 %v3389, %v3227
    %v3396 = vadd.f32 %v3392, %v3228
    %v3397 = vld [vmem:[%s3 + $0x66] sm:$0x1]
    %v3398 = vld [vmem:[%s3 + $0x67] sm:$0x1]
    %v3399 = vsel %vm37, %v3395, 0.0
    %3400 = vadd.xlane.f32.xlu0 %v3399
    %v3401 = vpop.xlane.xlu0 %3400
    %v3402 = vsel %vm37, %v3396, 0.0
    %3403 = vadd.xlane.f32.xlu0 %v3402
    %v3404 = vpop.xlane.xlu0 %3403
    %v3405 = vmul.f32 %v3401, %v44
    %v3406 = vmul.f32 %v3404, %v44
    %v3407 = vsub.f32 %v3395, %v3405
    %v3408 = vsub.f32 %v3396, %v3406
    %v3409 = vmul.f32 %v3407, %v3407
    %v3410 = vmul.f32 %v3408, %v3408
    %v3411 = vsel %vm37, %v3409, 0.0
    %3412 = vadd.xlane.f32.xlu0 %v3411
    %v3413 = vpop.xlane.xlu0 %3412
    %v3414 = vsel %vm37, %v3410, 0.0
    %3415 = vadd.xlane.f32.xlu0 %v3414
    %v3416 = vpop.xlane.xlu0 %3415
    %v3417 = vmul.f32 %v3413, %v44
    %v3418 = vmul.f32 %v3416, %v44
    %v3419 = vadd.f32 %v3417, 1e-12
    %v3420 = vadd.f32 %v3418, 1e-12
    %v3421 = vrsqrt.pop %v3419
    %v3422 = vrsqrt.pop %v3420
    %v3423 = vmul.f32 %v3407, %v3421
    %v3424 = vmul.f32 %v3408, %v3422
    %v3425 = vlaneseq
    %v3426 = vshrl.u32 %v3425, 7
    %v3427 = vsub.s32 0, %v3426
    %v3428 = vrot.slane %v3397, %v3427
    %v3429 = vmul.f32 %v3423, %v3428
    %v3430 = vmul.f32 %v3424, %v3428
    %v3431 = vlaneseq
    %v3432 = vshrl.u32 %v3431, 7
    %v3433 = vsub.s32 0, %v3432
    %v3434 = vrot.slane %v3398, %v3433
    %v3435 = vadd.f32 %v3429, %v3434
    %v3436 = vadd.f32 %v3430, %v3434
    %v3437 = vpack.c.bf16 %v3436, %v3435
    %v3438 = vld [vmem:[#allocation2 + $0x1e0] sm:$0xf]
    %v3439 = vld [vmem:[#allocation2 + $0x1e4] sm:$0xf]
    %v3440 = vld [vmem:[#allocation2 + $0x1e8] sm:$0xf]
    %v3441 = vld [vmem:[#allocation2 + $0x1ec] sm:$0xf]
    %v3442 = vld [vmem:[%s3 + $0x68] sm:$0x1]
    %v3443 = vlaneseq
    %v3444 = vshrl.u32 %v3443, 7
    %v3445 = vsub.s32 0, %v3444
    %v3446 = vrot.slane %v3442, %v3445
    %v3451 = vunpack.c.l.b16 %v3438
    %v3452 = vunpack.c.l.b16 %v3439
    %v3453 = vunpack.c.l.b16 %v3440
    %v3454 = vunpack.c.l.b16 %v3441
    %v3455 = vpack.c.b16 %v3452, %v3451
    %v3456 = vpack.c.b16 %v3454, %v3453
    %v3460 = vsel %vm37, %v3437, 0
    %3462 = vmatprep.subr.bf16.mxu0 0
    %3463 = vmatpush1.bf16.msra.mxu0 0
    %3464 = vmatprep.subr.bf16.mxu0 0
    %3465 = vmatpush1.bf16.msra.mxu0 0
    %3466 = vmatprep.subr.bf16.mxu0 0
    %3467 = vmatpush1.bf16.msra.mxu0 0
    %3468 = vmatprep.subr.bf16.mxu0 0
    %3469 = vmatpush1.bf16.msra.mxu0 0
    %3470 = vmatprep.subr.bf16.mxu0 0
    %3471 = vmatpush1.bf16.msra.mxu0 0
    %3472 = vmatprep.subr.bf16.mxu0 0
    %3473 = vmatpush1.bf16.msra.mxu0 0
    %3474 = vmatprep.subr.bf16.mxu0 0
    %3475 = vmatpush1.bf16.msra.mxu0 %v3456
    %3476 = vmatprep.subr.bf16.mxu0 0
    %3477 = vmatpush1.bf16.msra.mxu0 %v3455
    %3478 = vmatprep.subr.bf16.mxu0 0
    %3479 = vmatpush2.bf16.msra.mxu0 0
    %3480 = vmatprep.subr.bf16.mxu0 0
    %3481 = vmatpush2.bf16.msra.mxu0 0
    %3482 = vmatprep.subr.bf16.mxu0 0
    %3483 = vmatpush2.bf16.msra.mxu0 0
    %3484 = vmatprep.subr.bf16.mxu0 0
    %3485 = vmatpush2.bf16.msra.mxu0 0
    %3486 = vmatprep.subr.bf16.mxu0 0
    %3487 = vmatpush2.bf16.msra.mxu0 0
    %3488 = vmatprep.subr.bf16.mxu0 0
    %3489 = vmatpush2.bf16.msra.mxu0 0
    %3490 = vmatprep.subr.bf16.mxu0 0
    %3491 = vmatpush2.bf16.msra.mxu0 0
    %3492 = vmatprep.subr.bf16.mxu0 0
    %3493 = vmatpush2.bf16.msra.mxu0 0
    %3494 = vmatprep.mubr.bf16.mxu0 0
    %3495 = vmatmul.mubr.bf16.gmra.mxu0 %v3460
    %v3496 = vpop.f32.mrf.mxu0
    %v3497 = vadd.f32 %v3446, %v3496
    %v3498 = vpop.f32.mrf.mxu0
    %v3499 = vpop.f32.mrf.mxu0
    %v3500 = vadd.f32 %v3446, %v3499
    %v3501 = vpop.f32.mrf.mxu0
    %3502 = vdwg.mxu0
    %v3503 = vld [vmem:[#allocation2 + $0x1f0] sm:$0xf]
    %v3504 = vld [vmem:[#allocation2 + $0x1f4] sm:$0xf]
    %v3506 = vrot.slane %v3500, 7
    %vm3508 = vcmask 1040384
    %v3509 = vsel %vm3508, %v3497, %v3506
    %v3512 = vunpack.c.l.b16 %v3503
    %v3513 = vunpack.c.l.b16 %v3504
    %v3514 = vpack.c.b16 %v3513, %v3512
    %v3517 = vsel %vm323, 0, 0
    %3519 = vmatprep.subr.bf16.mxu0 0
    %3520 = vmatpush1.bf16.msra.mxu0 0
    %3521 = vmatprep.subr.bf16.mxu0 0
    %3522 = vmatpush1.bf16.msra.mxu0 0
    %3523 = vmatprep.subr.bf16.mxu0 0
    %3524 = vmatpush1.bf16.msra.mxu0 0
    %3525 = vmatprep.subr.bf16.mxu0 0
    %3526 = vmatpush1.bf16.msra.mxu0 0
    %3527 = vmatprep.subr.bf16.mxu0 0
    %3528 = vmatpush1.bf16.msra.mxu0 0
    %3529 = vmatprep.subr.bf16.mxu0 0
    %3530 = vmatpush1.bf16.msra.mxu0 0
    %3531 = vmatprep.subr.bf16.mxu0 0
    %3532 = vmatpush1.bf16.msra.mxu0 0
    %3533 = vmatprep.subr.bf16.mxu0 0
    %3534 = vmatpush1.bf16.msra.mxu0 %v3514
    %3535 = vmatprep.subr.bf16.mxu0 0
    %3536 = vmatpush2.bf16.msra.mxu0 0
    %3537 = vmatprep.subr.bf16.mxu0 0
    %3538 = vmatpush2.bf16.msra.mxu0 0
    %3539 = vmatprep.subr.bf16.mxu0 0
    %3540 = vmatpush2.bf16.msra.mxu0 0
    %3541 = vmatprep.subr.bf16.mxu0 0
    %3542 = vmatpush2.bf16.msra.mxu0 0
    %3543 = vmatprep.subr.bf16.mxu0 0
    %3544 = vmatpush2.bf16.msra.mxu0 0
    %3545 = vmatprep.subr.bf16.mxu0 0
    %3546 = vmatpush2.bf16.msra.mxu0 0
    %3547 = vmatprep.subr.bf16.mxu0 0
    %3548 = vmatpush2.bf16.msra.mxu0 0
    %3549 = vmatprep.subr.bf16.mxu0 0
    %3550 = vmatpush2.bf16.msra.mxu0 0
    %3551 = vmatprep.mubr.bf16.mxu0 0
    %3552 = vmatmul.mubr.bf16.gmra.mxu0 %v3517
    %v3553 = vpop.f32.mrf.mxu0
    %v3554 = vadd.f32 0.0, %v3553
    %v3555 = vpop.f32.mrf.mxu0
    %v3556 = vpop.f32.mrf.mxu0
    %v3557 = vpop.f32.mrf.mxu0
    %3558 = vdwg.mxu0
    %v3559 = vadd.f32 %v3509, %v3554
    %v3560 = vxor.u32 %v3559, 2147483648
    %v3561 = vmul.f32 %v3560, 1.442695
    %v3562 = vpow.pop %v3561
    %v3563 = vadd.f32 %v3562, 1.0
    %v3564 = vrcp.pop %v3563
    %v3565 = vmul.f32 1.0, %v3564
    %v3566 = vtanh.pop %v3559
    %v3567 = vmul.f32 %v3565, 0.0
    %3569 = vrot.lane.b32.xlu0 %v3566, 80
    %v3570 = vpop.permute.xlu0 %3569
    %v3572 = vmul.f32 %v3565, %v3570
    %3574 = vrot.lane.b32.xlu0 %v3572, 16
    %v3575 = vpop.permute.xlu0 %3574
    %v3577 = vadd.f32 %v3567, %v3575
    %v3578 = vtanh.pop %v3577
    %3580 = vrot.lane.b32.xlu0 %v3578, 16
    %v3581 = vpop.permute.xlu0 %3580
    %v3583 = vmul.f32 %v3565, %v3581
    %v3585 = vrot.slane %v3497, 1
    %v3587 = vsel %vm3508, %v3585, %v3500
    %v3588 = vpack.c.bf16 %v3583, %v3583
    %3590 = vrot.lane.b32.xlu0 %v3588, 96
    %v3591 = vpop.permute.xlu0 %3590
    %v3593 = vsel %vm323, %v3591, 0
    %3595 = vmatprep.subr.bf16.mxu0 0
    %3596 = vmatpush1.bf16.msra.mxu0 0
    %3597 = vmatprep.subr.bf16.mxu0 0
    %3598 = vmatpush1.bf16.msra.mxu0 0
    %3599 = vmatprep.subr.bf16.mxu0 0
    %3600 = vmatpush1.bf16.msra.mxu0 0
    %3601 = vmatprep.subr.bf16.mxu0 0
    %3602 = vmatpush1.bf16.msra.mxu0 0
    %3603 = vmatprep.subr.bf16.mxu0 0
    %3604 = vmatpush1.bf16.msra.mxu0 0
    %3605 = vmatprep.subr.bf16.mxu0 0
    %3606 = vmatpush1.bf16.msra.mxu0 0
    %3607 = vmatprep.subr.bf16.mxu0 0
    %3608 = vmatpush1.bf16.msra.mxu0 0
    %3609 = vmatprep.subr.bf16.mxu0 0
    %3610 = vmatpush1.bf16.msra.mxu0 %v3514
    %3611 = vmatprep.subr.bf16.mxu0 0
    %3612 = vmatpush2.bf16.msra.mxu0 0
    %3613 = vmatprep.subr.bf16.mxu0 0
    %3614 = vmatpush2.bf16.msra.mxu0 0
    %3615 = vmatprep.subr.bf16.mxu0 0
    %3616 = vmatpush2.bf16.msra.mxu0 0
    %3617 = vmatprep.subr.bf16.mxu0 0
    %3618 = vmatpush2.bf16.msra.mxu0 0
    %3619 = vmatprep.subr.bf16.mxu0 0
    %3620 = vmatpush2.bf16.msra.mxu0 0
    %3621 = vmatprep.subr.bf16.mxu0 0
    %3622 = vmatpush2.bf16.msra.mxu0 0
    %3623 = vmatprep.subr.bf16.mxu0 0
    %3624 = vmatpush2.bf16.msra.mxu0 0
    %3625 = vmatprep.subr.bf16.mxu0 0
    %3626 = vmatpush2.bf16.msra.mxu0 0
    %3627 = vmatprep.mubr.bf16.mxu0 0
    %3628 = vmatmul.mubr.bf16.gmra.mxu0 %v3593
    %v3629 = vpop.f32.mrf.mxu0
    %v3630 = vadd.f32 0.0, %v3629
    %v3631 = vpop.f32.mrf.mxu0
    %v3632 = vpop.f32.mrf.mxu0
    %v3633 = vpop.f32.mrf.mxu0
    %3634 = vdwg.mxu0
    %v3635 = vadd.f32 %v3587, %v3630
    %v3636 = vxor.u32 %v3635, 2147483648
    %v3637 = vmul.f32 %v3636, 1.442695
    %v3638 = vpow.pop %v3637
    %v3639 = vadd.f32 %v3638, 1.0
    %v3640 = vrcp.pop %v3639
    %v3641 = vmul.f32 1.0, %v3640
    %v3642 = vtanh.pop %v3635
    %v3643 = vmul.f32 %v3641, %v3577
    %3645 = vrot.lane.b32.xlu0 %v3642, 80
    %v3646 = vpop.permute.xlu0 %3645
    %v3648 = vmul.f32 %v3641, %v3646
    %3650 = vrot.lane.b32.xlu0 %v3648, 16
    %v3651 = vpop.permute.xlu0 %3650
    %v3653 = vadd.f32 %v3643, %v3651
    %v3654 = vtanh.pop %v3653
    %3656 = vrot.lane.b32.xlu0 %v3654, 16
    %v3657 = vpop.permute.xlu0 %3656
    %v3659 = vmul.f32 %v3641, %v3657
    %v3660 = vrot.slane %v3497, 2
    %v3662 = vrot.slane %v3500, 1
    %v3664 = vsel %vm3508, %v3660, %v3662
    %v3665 = vpack.c.bf16 %v3659, %v3659
    %3667 = vrot.lane.b32.xlu0 %v3665, 96
    %v3668 = vpop.permute.xlu0 %3667
    %v3670 = vsel %vm323, %v3668, 0
    %3672 = vmatprep.subr.bf16.mxu0 0
    %3673 = vmatpush1.bf16.msra.mxu0 0
    %3674 = vmatprep.subr.bf16.mxu0 0
    %3675 = vmatpush1.bf16.msra.mxu0 0
    %3676 = vmatprep.subr.bf16.mxu0 0
    %3677 = vmatpush1.bf16.msra.mxu0 0
    %3678 = vmatprep.subr.bf16.mxu0 0
    %3679 = vmatpush1.bf16.msra.mxu0 0
    %3680 = vmatprep.subr.bf16.mxu0 0
    %3681 = vmatpush1.bf16.msra.mxu0 0
    %3682 = vmatprep.subr.bf16.mxu0 0
    %3683 = vmatpush1.bf16.msra.mxu0 0
    %3684 = vmatprep.subr.bf16.mxu0 0
    %3685 = vmatpush1.bf16.msra.mxu0 0
    %3686 = vmatprep.subr.bf16.mxu0 0
    %3687 = vmatpush1.bf16.msra.mxu0 %v3514
    %3688 = vmatprep.subr.bf16.mxu0 0
    %3689 = vmatpush2.bf16.msra.mxu0 0
    %3690 = vmatprep.subr.bf16.mxu0 0
    %3691 = vmatpush2.bf16.msra.mxu0 0
    %3692 = vmatprep.subr.bf16.mxu0 0
    %3693 = vmatpush2.bf16.msra.mxu0 0
    %3694 = vmatprep.subr.bf16.mxu0 0
    %3695 = vmatpush2.bf16.msra.mxu0 0
    %3696 = vmatprep.subr.bf16.mxu0 0
    %3697 = vmatpush2.bf16.msra.mxu0 0
    %3698 = vmatprep.subr.bf16.mxu0 0
    %3699 = vmatpush2.bf16.msra.mxu0 0
    %3700 = vmatprep.subr.bf16.mxu0 0
    %3701 = vmatpush2.bf16.msra.mxu0 0
    %3702 = vmatprep.subr.bf16.mxu0 0
    %3703 = vmatpush2.bf16.msra.mxu0 0
    %3704 = vmatprep.mubr.bf16.mxu0 0
    %3705 = vmatmul.mubr.bf16.gmra.mxu0 %v3670
    %v3706 = vpop.f32.mrf.mxu0
    %v3707 = vadd.f32 0.0, %v3706
    %v3708 = vpop.f32.mrf.mxu0
    %v3709 = vpop.f32.mrf.mxu0
    %v3710 = vpop.f32.mrf.mxu0
    %3711 = vdwg.mxu0
    %v3712 = vadd.f32 %v3664, %v3707
    %v3713 = vxor.u32 %v3712, 2147483648
    %v3714 = vmul.f32 %v3713, 1.442695
    %v3715 = vpow.pop %v3714
    %v3716 = vadd.f32 %v3715, 1.0
    %v3717 = vrcp.pop %v3716
    %v3718 = vmul.f32 1.0, %v3717
    %v3719 = vtanh.pop %v3712
    %v3720 = vmul.f32 %v3718, %v3653
    %3722 = vrot.lane.b32.xlu0 %v3719, 80
    %v3723 = vpop.permute.xlu0 %3722
    %v3725 = vmul.f32 %v3718, %v3723
    %3727 = vrot.lane.b32.xlu0 %v3725, 16
    %v3728 = vpop.permute.xlu0 %3727
    %v3730 = vadd.f32 %v3720, %v3728
    %v3731 = vtanh.pop %v3730
    %3733 = vrot.lane.b32.xlu0 %v3731, 16
    %v3734 = vpop.permute.xlu0 %3733
    %v3736 = vmul.f32 %v3718, %v3734
    %v3737 = vrot.slane %v3497, 3
    %v3739 = vrot.slane %v3500, 2
    %v3741 = vsel %vm3508, %v3737, %v3739
    %v3742 = vpack.c.bf16 %v3736, %v3736
    %3744 = vrot.lane.b32.xlu0 %v3742, 96
    %v3745 = vpop.permute.xlu0 %3744
    %v3747 = vsel %vm323, %v3745, 0
    %3749 = vmatprep.subr.bf16.mxu0 0
    %3750 = vmatpush1.bf16.msra.mxu0 0
    %3751 = vmatprep.subr.bf16.mxu0 0
    %3752 = vmatpush1.bf16.msra.mxu0 0
    %3753 = vmatprep.subr.bf16.mxu0 0
    %3754 = vmatpush1.bf16.msra.mxu0 0
    %3755 = vmatprep.subr.bf16.mxu0 0
    %3756 = vmatpush1.bf16.msra.mxu0 0
    %3757 = vmatprep.subr.bf16.mxu0 0
    %3758 = vmatpush1.bf16.msra.mxu0 0
    %3759 = vmatprep.subr.bf16.mxu0 0
    %3760 = vmatpush1.bf16.msra.mxu0 0
    %3761 = vmatprep.subr.bf16.mxu0 0
    %3762 = vmatpush1.bf16.msra.mxu0 0
    %3763 = vmatprep.subr.bf16.mxu0 0
    %3764 = vmatpush1.bf16.msra.mxu0 %v3514
    %3765 = vmatprep.subr.bf16.mxu0 0
    %3766 = vmatpush2.bf16.msra.mxu0 0
    %3767 = vmatprep.subr.bf16.mxu0 0
    %3768 = vmatpush2.bf16.msra.mxu0 0
    %3769 = vmatprep.subr.bf16.mxu0 0
    %3770 = vmatpush2.bf16.msra.mxu0 0
    %3771 = vmatprep.subr.bf16.mxu0 0
    %3772 = vmatpush2.bf16.msra.mxu0 0
    %3773 = vmatprep.subr.bf16.mxu0 0
    %3774 = vmatpush2.bf16.msra.mxu0 0
    %3775 = vmatprep.subr.bf16.mxu0 0
    %3776 = vmatpush2.bf16.msra.mxu0 0
    %3777 = vmatprep.subr.bf16.mxu0 0
    %3778 = vmatpush2.bf16.msra.mxu0 0
    %3779 = vmatprep.subr.bf16.mxu0 0
    %3780 = vmatpush2.bf16.msra.mxu0 0
    %3781 = vmatprep.mubr.bf16.mxu0 0
    %3782 = vmatmul.mubr.bf16.gmra.mxu0 %v3747
    %v3783 = vpop.f32.mrf.mxu0
    %v3784 = vadd.f32 0.0, %v3783
    %v3785 = vpop.f32.mrf.mxu0
    %v3786 = vpop.f32.mrf.mxu0
    %v3787 = vpop.f32.mrf.mxu0
    %3788 = vdwg.mxu0
    %v3789 = vadd.f32 %v3741, %v3784
    %v3790 = vxor.u32 %v3789, 2147483648
    %v3791 = vmul.f32 %v3790, 1.442695
    %v3792 = vpow.pop %v3791
    %v3793 = vadd.f32 %v3792, 1.0
    %v3794 = vrcp.pop %v3793
    %v3795 = vmul.f32 1.0, %v3794
    %v3796 = vtanh.pop %v3789
    %v3797 = vmul.f32 %v3795, %v3730
    %3799 = vrot.lane.b32.xlu0 %v3796, 80
    %v3800 = vpop.permute.xlu0 %3799
    %v3802 = vmul.f32 %v3795, %v3800
    %3804 = vrot.lane.b32.xlu0 %v3802, 16
    %v3805 = vpop.permute.xlu0 %3804
    %v3807 = vadd.f32 %v3797, %v3805
    %v3808 = vtanh.pop %v3807
    %3810 = vrot.lane.b32.xlu0 %v3808, 16
    %v3811 = vpop.permute.xlu0 %3810
    %v3813 = vmul.f32 %v3795, %v3811
    %v3814 = vrot.slane %v3497, 4
    %v3816 = vrot.slane %v3500, 3
    %v3818 = vsel %vm3508, %v3814, %v3816
    %v3819 = vpack.c.bf16 %v3813, %v3813
    %3821 = vrot.lane.b32.xlu0 %v3819, 96
    %v3822 = vpop.permute.xlu0 %3821
    %v3824 = vsel %vm323, %v3822, 0
    %3826 = vmatprep.subr.bf16.mxu0 0
    %3827 = vmatpush1.bf16.msra.mxu0 0
    %3828 = vmatprep.subr.bf16.mxu0 0
    %3829 = vmatpush1.bf16.msra.mxu0 0
    %3830 = vmatprep.subr.bf16.mxu0 0
    %3831 = vmatpush1.bf16.msra.mxu0 0
    %3832 = vmatprep.subr.bf16.mxu0 0
    %3833 = vmatpush1.bf16.msra.mxu0 0
    %3834 = vmatprep.subr.bf16.mxu0 0
    %3835 = vmatpush1.bf16.msra.mxu0 0
    %3836 = vmatprep.subr.bf16.mxu0 0
    %3837 = vmatpush1.bf16.msra.mxu0 0
    %3838 = vmatprep.subr.bf16.mxu0 0
    %3839 = vmatpush1.bf16.msra.mxu0 0
    %3840 = vmatprep.subr.bf16.mxu0 0
    %3841 = vmatpush1.bf16.msra.mxu0 %v3514
    %3842 = vmatprep.subr.bf16.mxu0 0
    %3843 = vmatpush2.bf16.msra.mxu0 0
    %3844 = vmatprep.subr.bf16.mxu0 0
    %3845 = vmatpush2.bf16.msra.mxu0 0
    %3846 = vmatprep.subr.bf16.mxu0 0
    %3847 = vmatpush2.bf16.msra.mxu0 0
    %3848 = vmatprep.subr.bf16.mxu0 0
    %3849 = vmatpush2.bf16.msra.mxu0 0
    %3850 = vmatprep.subr.bf16.mxu0 0
    %3851 = vmatpush2.bf16.msra.mxu0 0
    %3852 = vmatprep.subr.bf16.mxu0 0
    %3853 = vmatpush2.bf16.msra.mxu0 0
    %3854 = vmatprep.subr.bf16.mxu0 0
    %3855 = vmatpush2.bf16.msra.mxu0 0
    %3856 = vmatprep.subr.bf16.mxu0 0
    %3857 = vmatpush2.bf16.msra.mxu0 0
    %3858 = vmatprep.mubr.bf16.mxu0 0
    %3859 = vmatmul.mubr.bf16.gmra.mxu0 %v3824
    %v3860 = vpop.f32.mrf.mxu0
    %v3861 = vadd.f32 0.0, %v3860
    %v3862 = vpop.f32.mrf.mxu0
    %v3863 = vpop.f32.mrf.mxu0
    %v3864 = vpop.f32.mrf.mxu0
    %3865 = vdwg.mxu0
    %v3866 = vadd.f32 %v3818, %v3861
    %v3867 = vxor.u32 %v3866, 2147483648
    %v3868 = vmul.f32 %v3867, 1.442695
    %v3869 = vpow.pop %v3868
    %v3870 = vadd.f32 %v3869, 1.0
    %v3871 = vrcp.pop %v3870
    %v3872 = vmul.f32 1.0, %v3871
    %v3873 = vtanh.pop %v3866
    %v3874 = vmul.f32 %v3872, %v3807
    %3876 = vrot.lane.b32.xlu0 %v3873, 80
    %v3877 = vpop.permute.xlu0 %3876
    %v3879 = vmul.f32 %v3872, %v3877
    %3881 = vrot.lane.b32.xlu0 %v3879, 16
    %v3882 = vpop.permute.xlu0 %3881
    %v3884 = vadd.f32 %v3874, %v3882
    %v3885 = vtanh.pop %v3884
    %3887 = vrot.lane.b32.xlu0 %v3885, 16
    %v3888 = vpop.permute.xlu0 %3887
    %v3890 = vmul.f32 %v3872, %v3888
    %v3891 = vrot.slane %v3497, 5
    %v3893 = vrot.slane %v3500, 4
    %v3895 = vsel %vm3508, %v3891, %v3893
    %v3896 = vpack.c.bf16 %v3890, %v3890
    %3898 = vrot.lane.b32.xlu0 %v3896, 96
    %v3899 = vpop.permute.xlu0 %3898
    %v3901 = vsel %vm323, %v3899, 0
    %3903 = vmatprep.subr.bf16.mxu0 0
    %3904 = vmatpush1.bf16.msra.mxu0 0
    %3905 = vmatprep.subr.bf16.mxu0 0
    %3906 = vmatpush1.bf16.msra.mxu0 0
    %3907 = vmatprep.subr.bf16.mxu0 0
    %3908 = vmatpush1.bf16.msra.mxu0 0
    %3909 = vmatprep.subr.bf16.mxu0 0
    %3910 = vmatpush1.bf16.msra.mxu0 0
    %3911 = vmatprep.subr.bf16.mxu0 0
    %3912 = vmatpush1.bf16.msra.mxu0 0
    %3913 = vmatprep.subr.bf16.mxu0 0
    %3914 = vmatpush1.bf16.msra.mxu0 0
    %3915 = vmatprep.subr.bf16.mxu0 0
    %3916 = vmatpush1.bf16.msra.mxu0 0
    %3917 = vmatprep.subr.bf16.mxu0 0
    %3918 = vmatpush1.bf16.msra.mxu0 %v3514
    %3919 = vmatprep.subr.bf16.mxu0 0
    %3920 = vmatpush2.bf16.msra.mxu0 0
    %3921 = vmatprep.subr.bf16.mxu0 0
    %3922 = vmatpush2.bf16.msra.mxu0 0
    %3923 = vmatprep.subr.bf16.mxu0 0
    %3924 = vmatpush2.bf16.msra.mxu0 0
    %3925 = vmatprep.subr.bf16.mxu0 0
    %3926 = vmatpush2.bf16.msra.mxu0 0
    %3927 = vmatprep.subr.bf16.mxu0 0
    %3928 = vmatpush2.bf16.msra.mxu0 0
    %3929 = vmatprep.subr.bf16.mxu0 0
    %3930 = vmatpush2.bf16.msra.mxu0 0
    %3931 = vmatprep.subr.bf16.mxu0 0
    %3932 = vmatpush2.bf16.msra.mxu0 0
    %3933 = vmatprep.subr.bf16.mxu0 0
    %3934 = vmatpush2.bf16.msra.mxu0 0
    %3935 = vmatprep.mubr.bf16.mxu0 0
    %3936 = vmatmul.mubr.bf16.gmra.mxu0 %v3901
    %v3937 = vpop.f32.mrf.mxu0
    %v3938 = vadd.f32 0.0, %v3937
    %v3939 = vpop.f32.mrf.mxu0
    %v3940 = vpop.f32.mrf.mxu0
    %v3941 = vpop.f32.mrf.mxu0
    %3942 = vdwg.mxu0
    %v3943 = vadd.f32 %v3895, %v3938
    %v3944 = vxor.u32 %v3943, 2147483648
    %v3945 = vmul.f32 %v3944, 1.442695
    %v3946 = vpow.pop %v3945
    %v3947 = vadd.f32 %v3946, 1.0
    %v3948 = vrcp.pop %v3947
    %v3949 = vmul.f32 1.0, %v3948
    %v3950 = vtanh.pop %v3943
    %v3951 = vmul.f32 %v3949, %v3884
    %3953 = vrot.lane.b32.xlu0 %v3950, 80
    %v3954 = vpop.permute.xlu0 %3953
    %v3956 = vmul.f32 %v3949, %v3954
    %3958 = vrot.lane.b32.xlu0 %v3956, 16
    %v3959 = vpop.permute.xlu0 %3958
    %v3961 = vadd.f32 %v3951, %v3959
    %v3962 = vtanh.pop %v3961
    %3964 = vrot.lane.b32.xlu0 %v3962, 16
    %v3965 = vpop.permute.xlu0 %3964
    %v3967 = vmul.f32 %v3949, %v3965
    %v3968 = vrot.slane %v3497, 6
    %v3970 = vrot.slane %v3500, 5
    %v3972 = vsel %vm3508, %v3968, %v3970
    %v3973 = vpack.c.bf16 %v3967, %v3967
    %3975 = vrot.lane.b32.xlu0 %v3973, 96
    %v3976 = vpop.permute.xlu0 %3975
    %v3978 = vsel %vm323, %v3976, 0
    %3980 = vmatprep.subr.bf16.mxu0 0
    %3981 = vmatpush1.bf16.msra.mxu0 0
    %3982 = vmatprep.subr.bf16.mxu0 0
    %3983 = vmatpush1.bf16.msra.mxu0 0
    %3984 = vmatprep.subr.bf16.mxu0 0
    %3985 = vmatpush1.bf16.msra.mxu0 0
    %3986 = vmatprep.subr.bf16.mxu0 0
    %3987 = vmatpush1.bf16.msra.mxu0 0
    %3988 = vmatprep.subr.bf16.mxu0 0
    %3989 = vmatpush1.bf16.msra.mxu0 0
    %3990 = vmatprep.subr.bf16.mxu0 0
    %3991 = vmatpush1.bf16.msra.mxu0 0
    %3992 = vmatprep.subr.bf16.mxu0 0
    %3993 = vmatpush1.bf16.msra.mxu0 0
    %3994 = vmatprep.subr.bf16.mxu0 0
    %3995 = vmatpush1.bf16.msra.mxu0 %v3514
    %3996 = vmatprep.subr.bf16.mxu0 0
    %3997 = vmatpush2.bf16.msra.mxu0 0
    %3998 = vmatprep.subr.bf16.mxu0 0
    %3999 = vmatpush2.bf16.msra.mxu0 0
    %4000 = vmatprep.subr.bf16.mxu0 0
    %4001 = vmatpush2.bf16.msra.mxu0 0
    %4002 = vmatprep.subr.bf16.mxu0 0
    %4003 = vmatpush2.bf16.msra.mxu0 0
    %4004 = vmatprep.subr.bf16.mxu0 0
    %4005 = vmatpush2.bf16.msra.mxu0 0
    %4006 = vmatprep.subr.bf16.mxu0 0
    %4007 = vmatpush2.bf16.msra.mxu0 0
    %4008 = vmatprep.subr.bf16.mxu0 0
    %4009 = vmatpush2.bf16.msra.mxu0 0
    %4010 = vmatprep.subr.bf16.mxu0 0
    %4011 = vmatpush2.bf16.msra.mxu0 0
    %4012 = vmatprep.mubr.bf16.mxu0 0
    %4013 = vmatmul.mubr.bf16.gmra.mxu0 %v3978
    %v4014 = vpop.f32.mrf.mxu0
    %v4015 = vadd.f32 0.0, %v4014
    %v4016 = vpop.f32.mrf.mxu0
    %v4017 = vpop.f32.mrf.mxu0
    %v4018 = vpop.f32.mrf.mxu0
    %4019 = vdwg.mxu0
    %v4020 = vadd.f32 %v3972, %v4015
    %v4021 = vxor.u32 %v4020, 2147483648
    %v4022 = vmul.f32 %v4021, 1.442695
    %v4023 = vpow.pop %v4022
    %v4024 = vadd.f32 %v4023, 1.0
    %v4025 = vrcp.pop %v4024
    %v4026 = vmul.f32 1.0, %v4025
    %v4027 = vtanh.pop %v4020
    %v4028 = vmul.f32 %v4026, %v3961
    %4030 = vrot.lane.b32.xlu0 %v4027, 80
    %v4031 = vpop.permute.xlu0 %4030
    %v4033 = vmul.f32 %v4026, %v4031
    %4035 = vrot.lane.b32.xlu0 %v4033, 16
    %v4036 = vpop.permute.xlu0 %4035
    %v4038 = vadd.f32 %v4028, %v4036
    %v4039 = vtanh.pop %v4038
    %4041 = vrot.lane.b32.xlu0 %v4039, 16
    %v4042 = vpop.permute.xlu0 %4041
    %v4044 = vmul.f32 %v4026, %v4042
    %v4045 = vrot.slane %v3497, 7
    %v4047 = vrot.slane %v3500, 6
    %v4049 = vsel %vm3508, %v4045, %v4047
    %v4050 = vpack.c.bf16 %v4044, %v4044
    %4052 = vrot.lane.b32.xlu0 %v4050, 96
    %v4053 = vpop.permute.xlu0 %4052
    %v4055 = vsel %vm323, %v4053, 0
    %4057 = vmatprep.subr.bf16.mxu0 0
    %4058 = vmatpush1.bf16.msra.mxu0 0
    %4059 = vmatprep.subr.bf16.mxu0 0
    %4060 = vmatpush1.bf16.msra.mxu0 0
    %4061 = vmatprep.subr.bf16.mxu0 0
    %4062 = vmatpush1.bf16.msra.mxu0 0
    %4063 = vmatprep.subr.bf16.mxu0 0
    %4064 = vmatpush1.bf16.msra.mxu0 0
    %4065 = vmatprep.subr.bf16.mxu0 0
    %4066 = vmatpush1.bf16.msra.mxu0 0
    %4067 = vmatprep.subr.bf16.mxu0 0
    %4068 = vmatpush1.bf16.msra.mxu0 0
    %4069 = vmatprep.subr.bf16.mxu0 0
    %4070 = vmatpush1.bf16.msra.mxu0 0
    %4071 = vmatprep.subr.bf16.mxu0 0
    %4072 = vmatpush1.bf16.msra.mxu0 %v3514
    %4073 = vmatprep.subr.bf16.mxu0 0
    %4074 = vmatpush2.bf16.msra.mxu0 0
    %4075 = vmatprep.subr.bf16.mxu0 0
    %4076 = vmatpush2.bf16.msra.mxu0 0
    %4077 = vmatprep.subr.bf16.mxu0 0
    %4078 = vmatpush2.bf16.msra.mxu0 0
    %4079 = vmatprep.subr.bf16.mxu0 0
    %4080 = vmatpush2.bf16.msra.mxu0 0
    %4081 = vmatprep.subr.bf16.mxu0 0
    %4082 = vmatpush2.bf16.msra.mxu0 0
    %4083 = vmatprep.subr.bf16.mxu0 0
    %4084 = vmatpush2.bf16.msra.mxu0 0
    %4085 = vmatprep.subr.bf16.mxu0 0
    %4086 = vmatpush2.bf16.msra.mxu0 0
    %4087 = vmatprep.subr.bf16.mxu0 0
    %4088 = vmatpush2.bf16.msra.mxu0 0
    %4089 = vmatprep.mubr.bf16.mxu0 0
    %4090 = vmatmul.mubr.bf16.gmra.mxu0 %v4055
    %v4091 = vpop.f32.mrf.mxu0
    %v4092 = vadd.f32 0.0, %v4091
    %v4093 = vpop.f32.mrf.mxu0
    %v4094 = vpop.f32.mrf.mxu0
    %v4095 = vpop.f32.mrf.mxu0
    %4096 = vdwg.mxu0
    %v4097 = vadd.f32 %v4049, %v4092
    %v4098 = vxor.u32 %v4097, 2147483648
    %v4099 = vmul.f32 %v4098, 1.442695
    %v4100 = vpow.pop %v4099
    %v4101 = vadd.f32 %v4100, 1.0
    %v4102 = vrcp.pop %v4101
    %v4103 = vmul.f32 1.0, %v4102
    %v4104 = vtanh.pop %v4097
    %v4105 = vmul.f32 %v4103, %v4038
    %4107 = vrot.lane.b32.xlu0 %v4104, 80
    %v4108 = vpop.permute.xlu0 %4107
    %v4110 = vmul.f32 %v4103, %v4108
    %4112 = vrot.lane.b32.xlu0 %v4110, 16
    %v4113 = vpop.permute.xlu0 %4112
    %v4115 = vadd.f32 %v4105, %v4113
    %v4116 = vtanh.pop %v4115
    %4118 = vrot.lane.b32.xlu0 %v4116, 16
    %v4119 = vpop.permute.xlu0 %4118
    %v4121 = vmul.f32 %v4103, %v4119
    %v4122 = vpack.c.bf16 %v4121, %v4121
    %v4123 = vld [vmem:[#allocation2 + $0x1f8] sm:$0xf]
    %v4124 = vld [vmem:[#allocation2 + $0x1fc] sm:$0xf]
    %v4125 = vld [vmem:[%s3 + $0x69] sm:$0x1]
    %v4126 = vlaneseq
    %v4127 = vshrl.u32 %v4126, 7
    %v4128 = vsub.s32 0, %v4127
    %v4129 = vrot.slane %v4125, %v4128
    %4131 = vrot.lane.b32.xlu0 %v4122, 96
    %v4132 = vpop.permute.xlu0 %4131
    %v4135 = vunpack.c.l.b16 %v4123
    %v4136 = vunpack.c.l.b16 %v4124
    %v4137 = vpack.c.b16 %v4136, %v4135
    %v4140 = vsel %vm323, %v4132, 0
    %4142 = vmatprep.subr.bf16.mxu0 0
    %4143 = vmatpush1.bf16.msra.mxu0 0
    %4144 = vmatprep.subr.bf16.mxu0 0
    %4145 = vmatpush1.bf16.msra.mxu0 0
    %4146 = vmatprep.subr.bf16.mxu0 0
    %4147 = vmatpush1.bf16.msra.mxu0 0
    %4148 = vmatprep.subr.bf16.mxu0 0
    %4149 = vmatpush1.bf16.msra.mxu0 0
    %4150 = vmatprep.subr.bf16.mxu0 0
    %4151 = vmatpush1.bf16.msra.mxu0 0
    %4152 = vmatprep.subr.bf16.mxu0 0
    %4153 = vmatpush1.bf16.msra.mxu0 0
    %4154 = vmatprep.subr.bf16.mxu0 0
    %4155 = vmatpush1.bf16.msra.mxu0 0
    %4156 = vmatprep.subr.bf16.mxu0 0
    %4157 = vmatpush1.bf16.msra.mxu0 %v4137
    %4158 = vmatprep.subr.bf16.mxu0 0
    %4159 = vmatpush2.bf16.msra.mxu0 0
    %4160 = vmatprep.subr.bf16.mxu0 0
    %4161 = vmatpush2.bf16.msra.mxu0 0
    %4162 = vmatprep.subr.bf16.mxu0 0
    %4163 = vmatpush2.bf16.msra.mxu0 0
    %4164 = vmatprep.subr.bf16.mxu0 0
    %4165 = vmatpush2.bf16.msra.mxu0 0
    %4166 = vmatprep.subr.bf16.mxu0 0
    %4167 = vmatpush2.bf16.msra.mxu0 0
    %4168 = vmatprep.subr.bf16.mxu0 0
    %4169 = vmatpush2.bf16.msra.mxu0 0
    %4170 = vmatprep.subr.bf16.mxu0 0
    %4171 = vmatpush2.bf16.msra.mxu0 0
    %4172 = vmatprep.subr.bf16.mxu0 0
    %4173 = vmatpush2.bf16.msra.mxu0 0
    %4174 = vmatprep.mubr.bf16.mxu0 0
    %4175 = vmatmul.mubr.bf16.gmra.mxu0 %v4140
    %v4176 = vpop.f32.mrf.mxu0
    %v4177 = vadd.f32 %v4129, %v4176
    %v4178 = vpop.f32.mrf.mxu0
    %v4179 = vpop.f32.mrf.mxu0
    %v4180 = vpop.f32.mrf.mxu0
    %4181 = vdwg.mxu0
    %4182 = vst [vmem:[#allocation5] sm:$0x3] %v4177
    // Predicated region
    $region22: #{bert_lstm_classifier.1} parent=1 // pred_check
      _
    $region23: #{bert_lstm_classifier.1} parent=1 // pred_check_branch
      %4184 = sbr.rel (0) target = $region25
    $region24: #{bert_lstm_classifier.1} parent=1 // pred_region
      %s4186 = ssub.s32 32, 32
      %4187 = vsyncadd [#allocation4], %s4186
      %s4189 = sshll.u32 [#allocation5], 4
      %s4190 = int_to_ptr.vmem [resolvable:$true] %s4189
      %4192 = dma.vmem_to_hbm [thread:$0]  %s4190, 32, %s4, [#allocation4]
    $region25: #{bert_lstm_classifier.1} parent=1 // pred_fallthru
      _
    // Predicated region
    $region26: #{bert_lstm_classifier.1} parent=1 // pred_check
      _
    $region27: #{bert_lstm_classifier.1} parent=1 // pred_check_branch
      %4194 = sbr.rel (0) target = $region29
    $region28: #{bert_lstm_classifier.1} parent=1 // pred_region
      %4195 = dma.done [#allocation4], 32
    $region29: #{bert_lstm_classifier.1} parent=1 // pred_fallthru
      _
    %4196 = vsyncpa [#allocation3], 1
    %4197 = vsyncpa [#allocation4], 1

</llo_original>
